<compile_context>
chip_gen: v7x
topology: tpu7x:2x2x1
jax: 0.10.0
libtpu: 0.0.40
codegen_flags: <defaults>
</compile_context>

<pallas_src>
import jax
import jax.numpy as jnp
from jax import lax
from jax.experimental import pallas as pl
from jax.experimental.pallas import tpu as pltpu


def _vmem_limit_bytes():
    # Generation-aware VMEM budget: ~80% of physical VMEM (v5e/v6e 128 MiB,
    # v7x 64 MiB), clamped to [32 MiB, 100 MiB]. Falls back to 51 MiB.
    cap = 64 * 1024 * 1024
    try:
        cap = int(pltpu.get_tpu_info().vmem_capacity_bytes)
    except Exception:
        pass
    return min(max(int(cap * 0.8), 32 * 1024 * 1024), 100 * 1024 * 1024)


# --------------------------------------------------------------------------
# Single fused kernel: 3 GCN levels + 3 attention pools per graph (grid over
# the 2 graphs, pooled features kept in VMEM scratch), then the 3 NTN modules
# + SE-attention head on the last grid step.
# --------------------------------------------------------------------------

def egsct_kernel(a_ref, x_ref, seg_ref, inv_ref,
                 g1w_ref, g1b_ref, g2w_ref, g2b_ref, g3w_ref, g3b_ref,
                 a1w1_ref, a1b1_ref, a1w2_ref, a1b2_ref,
                 a2w1_ref, a2b1_ref, a2w2_ref, a2b2_ref,
                 a3w1_ref, a3b1_ref, a3w2_ref, a3b2_ref,
                 n1w_ref, n1wb_ref, n1b_ref,
                 n2w_ref, n2wb_ref, n2b_ref,
                 n3w_ref, n3wb_ref, n3b_ref,
                 hw1_ref, hb1_ref, hw2_ref, hb2_ref, hwf_ref, hbf_ref,
                 o_ref, p1_sc, p2_sc, p3_sc):
    gi = pl.program_id(0)

    a = a_ref[0]      # [Np, Np] bf16 normalized adjacency for this graph
    x = x_ref[0]      # [Np, L]  f32 node features
    seg = seg_ref[0]  # [Np, Bp] one-hot batch (zero rows for padded nodes)
    inv = inv_ref[0]  # [Bp, 1]  1/max(counts, 1)

    def gcn(feat, w, b):
        din, dout = w.shape
        if dout > din:
            # out > in: do the O(N^2) matmul at the narrower width (A@X first)
            h = jnp.dot(a, feat.astype(jnp.bfloat16),
                        preferred_element_type=jnp.float32)
            h = jnp.dot(h, w, preferred_element_type=jnp.float32)
        else:
            h = jnp.dot(feat, w, preferred_element_type=jnp.float32)
            h = jnp.dot(a, h.astype(jnp.bfloat16),
                        preferred_element_type=jnp.float32)
        # NOTE: padded node rows (>= N) come out as relu(b) != 0; they never
        # reach real outputs because their rows/cols of A and seg are zero.
        return jnp.maximum(h + b, 0.0)

    def seg_pool(v):
        # contract the node axis of seg: [Np, Bp] x [Np, D] -> [Bp, D]
        return lax.dot_general(seg, v, (((0,), (0,)), ((), ())),
                               preferred_element_type=jnp.float32)

    def att_pool(feat, w1, b1, w2, b2):
        h = jnp.maximum(
            jnp.dot(feat, w1, preferred_element_type=jnp.float32) + b1, 0.0)
        att = jnp.tanh(
            jnp.dot(h, w2, preferred_element_type=jnp.float32) + b2)
        mean = seg_pool(feat * att) * inv                       # scatter_mean
        tg = jnp.tanh(mean)
        tg_per_node = jnp.dot(seg, tg,
                              preferred_element_type=jnp.float32)  # mean[batch]
        coefs = jax.nn.sigmoid(
            jnp.sum(feat * tg_per_node, axis=1, keepdims=True))
        return seg_pool(coefs * feat)                            # scatter_add

    f1 = gcn(x, g1w_ref[...], g1b_ref[...])
    p1_sc[gi] = att_pool(f1, a1w1_ref[...], a1b1_ref[...],
                         a1w2_ref[...], a1b2_ref[...])
    f2 = gcn(f1, g2w_ref[...], g2b_ref[...])
    p2_sc[gi] = att_pool(f2, a2w1_ref[...], a2b1_ref[...],
                         a2w2_ref[...], a2b2_ref[...])
    f3 = gcn(f2, g3w_ref[...], g3b_ref[...])
    p3_sc[gi] = att_pool(f3, a3w1_ref[...], a3b1_ref[...],
                         a3w2_ref[...], a3b2_ref[...])

    # NTN + SE-attention head: run once, after the second graph's pools.
    @pl.when(gi == pl.num_programs(0) - 1)
    def _():
        def ntn(e1, e2, w2d, wb, bias):
            d = e1.shape[1]
            k = wb.shape[1]
            # bilinear term: one lane-dense matmul + per-group lane reduce
            # (no block-diagonal matmul, no in-kernel iota constant)
            t = jnp.dot(e1, w2d, preferred_element_type=jnp.float32)  # [Bp,K*D]
            scoring = jnp.sum(t.reshape(t.shape[0], k, d) * e2[:, None, :],
                              axis=-1)                                # [Bp, K]
            comb = jnp.concatenate([e1, e2], axis=1)                  # [Bp, 2D]
            block = jnp.dot(comb, wb, preferred_element_type=jnp.float32)
            return jnp.maximum(scoring + block + bias, 0.0)

        s1 = ntn(p1_sc[0], p1_sc[1], n1w_ref[...], n1wb_ref[...], n1b_ref[...])
        s2 = ntn(p2_sc[0], p2_sc[1], n2w_ref[...], n2wb_ref[...], n2b_ref[...])
        s3 = ntn(p3_sc[0], p3_sc[1], n3w_ref[...], n3wb_ref[...], n3b_ref[...])

        # matches torch.cat((scores_level3, scores_level2, scores_level1), 1)
        s = jnp.concatenate([s3, s2, s1], axis=1)                     # [Bp, feat]

        h = jnp.maximum(
            jnp.dot(s, hw1_ref[...], preferred_element_type=jnp.float32)
            + hb1_ref[...], 0.0)
        se = jax.nn.sigmoid(
            jnp.dot(h, hw2_ref[...], preferred_element_type=jnp.float32)
            + hb2_ref[...])
        g = se * s + s
        # NOTE: padded graph slots (rows >= num_graphs) carry garbage here;
        # the head has no cross-row coupling, caller slices [:num_graphs].
        o_ref[...] = jnp.maximum(
            jnp.dot(g, hwf_ref[...], preferred_element_type=jnp.float32)
            + hbf_ref[...], 0.0)


def egsct_generator_forward(params, graphs):
    # graphs: (a_hat[2,Np,Np] bf16, x[2,Np,L], seg[2,Np,Bp], invcnt[2,Bp,1])
    a, x, seg, inv = graphs
    g = x.shape[0]
    b_pad = seg.shape[2]
    f1 = params['gcn1_w'].shape[1]
    f2 = params['gcn2_w'].shape[1]
    f3 = params['gcn3_w'].shape[1]
    bott = params['head']['wf'].shape[1]

    def gspec(shape):
        nd = len(shape)
        return pl.BlockSpec((1,) + tuple(shape[1:]),
                            lambda gi, _nd=nd: (gi,) + (0,) * (_nd - 1))

    def wspec(shape):
        nd = len(shape)
        return pl.BlockSpec(tuple(shape), lambda gi, _nd=nd: (0,) * _nd)

    att1, att2, att3 = params['att1'], params['att2'], params['att3']
    n1, n2, n3 = params['ntn1'], params['ntn2'], params['ntn3']
    hd = params['head']
    ins = [a, x, seg, inv,
           params['gcn1_w'], params['gcn1_b'],
           params['gcn2_w'], params['gcn2_b'],
           params['gcn3_w'], params['gcn3_b'],
           att1['w1'], att1['b1'], att1['w2'], att1['b2'],
           att2['w1'], att2['b1'], att2['w2'], att2['b2'],
           att3['w1'], att3['b1'], att3['w2'], att3['b2'],
           n1['w2d'], n1['wb'], n1['bias'],
           n2['w2d'], n2['wb'], n2['bias'],
           n3['w2d'], n3['wb'], n3['bias'],
           hd['w1'], hd['b1'], hd['w2'], hd['b2'], hd['wf'], hd['bf']]
    in_specs = ([gspec(a.shape), gspec(x.shape), gspec(seg.shape),
                 gspec(inv.shape)]
                + [wspec(t.shape) for t in ins[4:]])

    return pl.pallas_call(
        egsct_kernel,
        out_shape=jax.ShapeDtypeStruct((b_pad, bott), jnp.float32),
        grid=(g,),
        in_specs=in_specs,
        out_specs=pl.BlockSpec((b_pad, bott), lambda gi: (0, 0)),
        scratch_shapes=[pltpu.VMEM((g, b_pad, f1), jnp.float32),
                        pltpu.VMEM((g, b_pad, f2), jnp.float32),
                        pltpu.VMEM((g, b_pad, f3), jnp.float32)],
        compiler_params=pltpu.CompilerParams(
            dimension_semantics=("arbitrary",),
            vmem_limit_bytes=_vmem_limit_bytes()),
    )(*ins)


# --------------------------- params & graph glue ---------------------------

def init_params(key, n_labels, f1, f2, f3, bottleneck):
    keys = iter(jax.random.split(key, 64))

    def dense(shape, scale=0.1):
        return scale * jax.random.normal(next(keys), shape, jnp.float32)

    def lin(din, dout):
        return dense((din, dout)), dense((1, dout))

    params = {}
    params['gcn1_w'], params['gcn1_b'] = lin(n_labels, f1)
    params['gcn2_w'], params['gcn2_b'] = lin(f1, f2)
    params['gcn3_w'], params['gcn3_b'] = lin(f2, f3)

    def att(d):
        w1, b1 = lin(d, d // 4)
        w2, b2 = lin(d // 4, d)
        return {'w1': w1, 'b1': b1, 'w2': w2, 'b2': b2}

    params['att1'], params['att2'], params['att3'] = att(f1), att(f2), att(f3)

    def ntn(d):
        k = d // 2                                   # tensor_neurons per level
        w = dense((k, d, d))
        # pre-flatten the bilinear weight for a single lane-dense matmul:
        # w2d[i, k*D + j] = w[k, i, j]
        w2d = jnp.transpose(w, (1, 0, 2)).reshape(d, k * d)
        return {'w2d': w2d, 'wb': dense((2 * d, k)), 'bias': dense((1, k))}

    params['ntn1'], params['ntn2'], params['ntn3'] = ntn(f1), ntn(f2), ntn(f3)

    feat = (f1 + f2 + f3) // 2
    se_w1, se_b1 = lin(feat, feat // 4)
    se_w2, se_b2 = lin(feat // 4, feat)
    fc_w, fc_b = lin(feat, bottleneck)
    params['head'] = {'w1': se_w1, 'b1': se_b1, 'w2': se_w2, 'b2': se_b2,
                      'wf': fc_w, 'bf': fc_b}
    return params


def dense_graph(edge_index, batch, num_nodes, n_pad, b_pad):
    # D^-1/2 (A+I) D^-1/2 (bf16) + one-hot segment matrix, zero-padded to
    # (n_pad, b_pad).  1/counts is guarded against empty (padded) graph slots.
    adj = jnp.zeros((num_nodes, num_nodes), jnp.float32)
    adj = adj.at[edge_index[0], edge_index[1]].set(1.0)
    a = adj + jnp.eye(num_nodes, dtype=jnp.float32)
    deg = jnp.sum(a, axis=1)
    dinv = 1.0 / jnp.sqrt(jnp.maximum(deg, 1.0))
    a_hat = a * dinv[:, None] * dinv[None, :]
    a_pad = jnp.zeros((n_pad, n_pad), jnp.float32).at[:num_nodes, :num_nodes].set(a_hat)

    seg = jax.nn.one_hot(batch, b_pad, dtype=jnp.float32)          # [N, Bp]
    seg = jnp.zeros((n_pad, b_pad), jnp.float32).at[:num_nodes].set(seg)
    counts = jnp.sum(seg, axis=0)[:, None]                          # [Bp, 1]
    invcnt = 1.0 / jnp.maximum(counts, 1.0)
    return a_pad.astype(jnp.bfloat16), seg, invcnt


# ---------------------------------- main -----------------------------------

if __name__ == "__main__":
    key = jax.random.PRNGKey(0)
    n_labels, f1, f2, f3, bottleneck = 16, 32, 16, 8, 16
    nodes_per_graph, num_graphs = 8, 2
    N = nodes_per_graph * num_graphs
    n_pad = ((N + 7) // 8) * 8
    b_pad = max(8, ((num_graphs + 7) // 8) * 8)     # pad graph axis to sublanes

    k_params, k_x1, k_x2 = jax.random.split(key, 3)
    params = init_params(k_params, n_labels, f1, f2, f3, bottleneck)

    def ring_edges(offset, n):
        src = jnp.arange(n) + offset
        dst = (jnp.arange(n) + 1) % n + offset
        return jnp.stack([jnp.concatenate([src, dst]),
                          jnp.concatenate([dst, src])])

    edge_index_1 = jnp.concatenate(
        [ring_edges(0, nodes_per_graph),
         ring_edges(nodes_per_graph, nodes_per_graph)], axis=1)
    edge_index_2 = edge_index_1
    batch = jnp.repeat(jnp.arange(num_graphs), nodes_per_graph)

    x1 = jax.random.normal(k_x1, (N, n_labels), jnp.float32)
    x2 = jax.random.normal(k_x2, (N, n_labels), jnp.float32)
    x1p = jnp.zeros((n_pad, n_labels), jnp.float32).at[:N].set(x1)
    x2p = jnp.zeros((n_pad, n_labels), jnp.float32).at[:N].set(x2)

    a1, seg1, inv1 = dense_graph(edge_index_1, batch, N, n_pad, b_pad)
    a2, seg2, inv2 = dense_graph(edge_index_2, batch, N, n_pad, b_pad)

    graphs = (jnp.stack([a1, a2]), jnp.stack([x1p, x2p]),
              jnp.stack([seg1, seg2]), jnp.stack([inv1, inv2]))

    out_padded = egsct_generator_forward(params, graphs)
    out = jax.block_until_ready(out_padded)[:num_graphs]

    assert out.shape == (num_graphs, bottleneck)
    assert bool(jnp.all(jnp.isfinite(out)))
    print("KERNEL_OK")
</pallas_src>

<mosaic_0001>
module attributes {stable_mosaic.version = 11 : i64} {
  func.func @egsct_kernel(%arg0: i32, %arg1: memref<1x16x16xbf16, #tpu.memory_space<vmem>>, %arg2: memref<1x16x16xf32, #tpu.memory_space<vmem>>, %arg3: memref<1x16x8xf32, #tpu.memory_space<vmem>>, %arg4: memref<1x8x1xf32, #tpu.memory_space<vmem>>, %arg5: memref<16x32xf32, #tpu.memory_space<vmem>>, %arg6: memref<1x32xf32, #tpu.memory_space<vmem>>, %arg7: memref<32x16xf32, #tpu.memory_space<vmem>>, %arg8: memref<1x16xf32, #tpu.memory_space<vmem>>, %arg9: memref<16x8xf32, #tpu.memory_space<vmem>>, %arg10: memref<1x8xf32, #tpu.memory_space<vmem>>, %arg11: memref<32x8xf32, #tpu.memory_space<vmem>>, %arg12: memref<1x8xf32, #tpu.memory_space<vmem>>, %arg13: memref<8x32xf32, #tpu.memory_space<vmem>>, %arg14: memref<1x32xf32, #tpu.memory_space<vmem>>, %arg15: memref<16x4xf32, #tpu.memory_space<vmem>>, %arg16: memref<1x4xf32, #tpu.memory_space<vmem>>, %arg17: memref<4x16xf32, #tpu.memory_space<vmem>>, %arg18: memref<1x16xf32, #tpu.memory_space<vmem>>, %arg19: memref<8x2xf32, #tpu.memory_space<vmem>>, %arg20: memref<1x2xf32, #tpu.memory_space<vmem>>, %arg21: memref<2x8xf32, #tpu.memory_space<vmem>>, %arg22: memref<1x8xf32, #tpu.memory_space<vmem>>, %arg23: memref<32x512xf32, #tpu.memory_space<vmem>>, %arg24: memref<64x16xf32, #tpu.memory_space<vmem>>, %arg25: memref<1x16xf32, #tpu.memory_space<vmem>>, %arg26: memref<16x128xf32, #tpu.memory_space<vmem>>, %arg27: memref<32x8xf32, #tpu.memory_space<vmem>>, %arg28: memref<1x8xf32, #tpu.memory_space<vmem>>, %arg29: memref<8x32xf32, #tpu.memory_space<vmem>>, %arg30: memref<16x4xf32, #tpu.memory_space<vmem>>, %arg31: memref<1x4xf32, #tpu.memory_space<vmem>>, %arg32: memref<28x7xf32, #tpu.memory_space<vmem>>, %arg33: memref<1x7xf32, #tpu.memory_space<vmem>>, %arg34: memref<7x28xf32, #tpu.memory_space<vmem>>, %arg35: memref<1x28xf32, #tpu.memory_space<vmem>>, %arg36: memref<28x16xf32, #tpu.memory_space<vmem>>, %arg37: memref<1x16xf32, #tpu.memory_space<vmem>>, %arg38: memref<8x16xf32, #tpu.memory_space<vmem>>, %arg39: memref<2x8x32xf32, #tpu.memory_space<vmem>>, %arg40: memref<2x8x16xf32, #tpu.memory_space<vmem>>, %arg41: memref<2x8x8xf32, #tpu.memory_space<vmem>>) attributes {dimension_semantics = [#tpu.dimension_semantics<arbitrary>], iteration_bounds = array<i64: 2>, scalar_prefetch = 0 : i64, scratch_operands = 3 : i64, tpu.core_type = #tpu.core_type<tc>, window_params = [{transform_indices = @transform_0, window_bounds = array<i64: 1, 16, 16>}, {transform_indices = @transform_1, window_bounds = array<i64: 1, 16, 16>}, {transform_indices = @transform_2, window_bounds = array<i64: 1, 16, 8>}, {transform_indices = @transform_3, window_bounds = array<i64: 1, 8, 1>}, {pipeline_mode = #tpu.pipeline_mode<synchronous>, transform_indices = @transform_4, window_bounds = array<i64: 16, 32>}, {pipeline_mode = #tpu.pipeline_mode<synchronous>, transform_indices = @transform_5, window_bounds = array<i64: 1, 32>}, {pipeline_mode = #tpu.pipeline_mode<synchronous>, transform_indices = @transform_6, window_bounds = array<i64: 32, 16>}, {pipeline_mode = #tpu.pipeline_mode<synchronous>, transform_indices = @transform_7, window_bounds = array<i64: 1, 16>}, {pipeline_mode = #tpu.pipeline_mode<synchronous>, transform_indices = @transform_8, window_bounds = array<i64: 16, 8>}, {pipeline_mode = #tpu.pipeline_mode<synchronous>, transform_indices = @transform_9, window_bounds = array<i64: 1, 8>}, {pipeline_mode = #tpu.pipeline_mode<synchronous>, transform_indices = @transform_10, window_bounds = array<i64: 32, 8>}, {pipeline_mode = #tpu.pipeline_mode<synchronous>, transform_indices = @transform_11, window_bounds = array<i64: 1, 8>}, {pipeline_mode = #tpu.pipeline_mode<synchronous>, transform_indices = @transform_12, window_bounds = array<i64: 8, 32>}, {pipeline_mode = #tpu.pipeline_mode<synchronous>, transform_indices = @transform_13, window_bounds = array<i64: 1, 32>}, {pipeline_mode = #tpu.pipeline_mode<synchronous>, transform_indices = @transform_14, window_bounds = array<i64: 16, 4>}, {pipeline_mode = #tpu.pipeline_mode<synchronous>, transform_indices = @transform_15, window_bounds = array<i64: 1, 4>}, {pipeline_mode = #tpu.pipeline_mode<synchronous>, transform_indices = @transform_16, window_bounds = array<i64: 4, 16>}, {pipeline_mode = #tpu.pipeline_mode<synchronous>, transform_indices = @transform_17, window_bounds = array<i64: 1, 16>}, {pipeline_mode = #tpu.pipeline_mode<synchronous>, transform_indices = @transform_18, window_bounds = array<i64: 8, 2>}, {pipeline_mode = #tpu.pipeline_mode<synchronous>, transform_indices = @transform_19, window_bounds = array<i64: 1, 2>}, {pipeline_mode = #tpu.pipeline_mode<synchronous>, transform_indices = @transform_20, window_bounds = array<i64: 2, 8>}, {pipeline_mode = #tpu.pipeline_mode<synchronous>, transform_indices = @transform_21, window_bounds = array<i64: 1, 8>}, {pipeline_mode = #tpu.pipeline_mode<synchronous>, transform_indices = @transform_22, window_bounds = array<i64: 32, 512>}, {pipeline_mode = #tpu.pipeline_mode<synchronous>, transform_indices = @transform_23, window_bounds = array<i64: 64, 16>}, {pipeline_mode = #tpu.pipeline_mode<synchronous>, transform_indices = @transform_24, window_bounds = array<i64: 1, 16>}, {pipeline_mode = #tpu.pipeline_mode<synchronous>, transform_indices = @transform_25, window_bounds = array<i64: 16, 128>}, {pipeline_mode = #tpu.pipeline_mode<synchronous>, transform_indices = @transform_26, window_bounds = array<i64: 32, 8>}, {pipeline_mode = #tpu.pipeline_mode<synchronous>, transform_indices = @transform_27, window_bounds = array<i64: 1, 8>}, {pipeline_mode = #tpu.pipeline_mode<synchronous>, transform_indices = @transform_28, window_bounds = array<i64: 8, 32>}, {pipeline_mode = #tpu.pipeline_mode<synchronous>, transform_indices = @transform_29, window_bounds = array<i64: 16, 4>}, {pipeline_mode = #tpu.pipeline_mode<synchronous>, transform_indices = @transform_30, window_bounds = array<i64: 1, 4>}, {pipeline_mode = #tpu.pipeline_mode<synchronous>, transform_indices = @transform_31, window_bounds = array<i64: 28, 7>}, {pipeline_mode = #tpu.pipeline_mode<synchronous>, transform_indices = @transform_32, window_bounds = array<i64: 1, 7>}, {pipeline_mode = #tpu.pipeline_mode<synchronous>, transform_indices = @transform_33, window_bounds = array<i64: 7, 28>}, {pipeline_mode = #tpu.pipeline_mode<synchronous>, transform_indices = @transform_34, window_bounds = array<i64: 1, 28>}, {pipeline_mode = #tpu.pipeline_mode<synchronous>, transform_indices = @transform_35, window_bounds = array<i64: 28, 16>}, {pipeline_mode = #tpu.pipeline_mode<synchronous>, transform_indices = @transform_36, window_bounds = array<i64: 1, 16>}, {pipeline_mode = #tpu.pipeline_mode<synchronous>, transform_indices = @transform_37, window_bounds = array<i64: 8, 16>}]} {
    %c0 = arith.constant 0 : index
    %c0_0 = arith.constant 0 : index
    %c0_1 = arith.constant 0 : index
    %0 = vector.load %arg1[%c0, %c0_0, %c0_1] : memref<1x16x16xbf16, #tpu.memory_space<vmem>>, vector<1x16x16xbf16>
    %1 = vector.shape_cast %0 : vector<1x16x16xbf16> to vector<16x16xbf16>
    %c0_2 = arith.constant 0 : index
    %c0_3 = arith.constant 0 : index
    %c0_4 = arith.constant 0 : index
    %2 = vector.load %arg2[%c0_2, %c0_3, %c0_4] : memref<1x16x16xf32, #tpu.memory_space<vmem>>, vector<1x16x16xf32>
    %3 = vector.shape_cast %2 : vector<1x16x16xf32> to vector<16x16xf32>
    %c0_5 = arith.constant 0 : index
    %c0_6 = arith.constant 0 : index
    %c0_7 = arith.constant 0 : index
    %4 = vector.load %arg3[%c0_5, %c0_6, %c0_7] : memref<1x16x8xf32, #tpu.memory_space<vmem>>, vector<1x16x8xf32>
    %5 = vector.shape_cast %4 : vector<1x16x8xf32> to vector<16x8xf32>
    %c0_8 = arith.constant 0 : index
    %c0_9 = arith.constant 0 : index
    %c0_10 = arith.constant 0 : index
    %6 = vector.load %arg4[%c0_8, %c0_9, %c0_10] : memref<1x8x1xf32, #tpu.memory_space<vmem>>, vector<1x8x1xf32>
    %7 = vector.shape_cast %6 : vector<1x8x1xf32> to vector<8x1xf32>
    %c0_11 = arith.constant 0 : index
    %c0_12 = arith.constant 0 : index
    %8 = vector.load %arg5[%c0_11, %c0_12] : memref<16x32xf32, #tpu.memory_space<vmem>>, vector<16x32xf32>
    %c0_13 = arith.constant 0 : index
    %c0_14 = arith.constant 0 : index
    %9 = vector.load %arg6[%c0_13, %c0_14] : memref<1x32xf32, #tpu.memory_space<vmem>>, vector<1x32xf32>
    %10 = arith.truncf %3 : vector<16x16xf32> to vector<16x16xbf16>
    %cst = arith.constant dense<0.000000e+00> : vector<16x16xf32>
    %11 = tpu.matmul %1, %10, %cst {dimension_numbers = #tpu.dot_dimension_numbers<[1], [0], [0], [1], [0, 0, 1, 1], [], []>} : vector<16x16xbf16>, vector<16x16xbf16>, vector<16x16xf32> -> vector<16x16xf32>
    %cst_15 = arith.constant dense<0.000000e+00> : vector<16x32xf32>
    %12 = tpu.matmul %11, %8, %cst_15 {dimension_numbers = #tpu.dot_dimension_numbers<[1], [0], [0], [1], [0, 0, 1, 1], [], []>} : vector<16x16xf32>, vector<16x32xf32>, vector<16x32xf32> -> vector<16x32xf32>
    %13 = vector.broadcast %9 : vector<1x32xf32> to vector<16x32xf32>
    %14 = arith.addf %12, %13 : vector<16x32xf32>
    %cst_16 = arith.constant 0.000000e+00 : f32
    %15 = vector.broadcast %cst_16 : f32 to vector<16x32xf32>
    %16 = arith.maximumf %14, %15 : vector<16x32xf32>
    %c0_17 = arith.constant 0 : index
    %c0_18 = arith.constant 0 : index
    %17 = vector.load %arg11[%c0_17, %c0_18] : memref<32x8xf32, #tpu.memory_space<vmem>>, vector<32x8xf32>
    %c0_19 = arith.constant 0 : index
    %c0_20 = arith.constant 0 : index
    %18 = vector.load %arg12[%c0_19, %c0_20] : memref<1x8xf32, #tpu.memory_space<vmem>>, vector<1x8xf32>
    %c0_21 = arith.constant 0 : index
    %c0_22 = arith.constant 0 : index
    %19 = vector.load %arg13[%c0_21, %c0_22] : memref<8x32xf32, #tpu.memory_space<vmem>>, vector<8x32xf32>
    %c0_23 = arith.constant 0 : index
    %c0_24 = arith.constant 0 : index
    %20 = vector.load %arg14[%c0_23, %c0_24] : memref<1x32xf32, #tpu.memory_space<vmem>>, vector<1x32xf32>
    %cst_25 = arith.constant dense<0.000000e+00> : vector<16x8xf32>
    %21 = tpu.matmul %16, %17, %cst_25 {dimension_numbers = #tpu.dot_dimension_numbers<[1], [0], [0], [1], [0, 0, 1, 1], [], []>} : vector<16x32xf32>, vector<32x8xf32>, vector<16x8xf32> -> vector<16x8xf32>
    %22 = vector.broadcast %18 : vector<1x8xf32> to vector<16x8xf32>
    %23 = arith.addf %21, %22 : vector<16x8xf32>
    %cst_26 = arith.constant 0.000000e+00 : f32
    %24 = vector.broadcast %cst_26 : f32 to vector<16x8xf32>
    %25 = arith.maximumf %23, %24 : vector<16x8xf32>
    %cst_27 = arith.constant dense<0.000000e+00> : vector<16x32xf32>
    %26 = tpu.matmul %25, %19, %cst_27 {dimension_numbers = #tpu.dot_dimension_numbers<[1], [0], [0], [1], [0, 0, 1, 1], [], []>} : vector<16x8xf32>, vector<8x32xf32>, vector<16x32xf32> -> vector<16x32xf32>
    %27 = vector.broadcast %20 : vector<1x32xf32> to vector<16x32xf32>
    %28 = arith.addf %26, %27 : vector<16x32xf32>
    %29 = math.tanh %28 : vector<16x32xf32>
    %30 = arith.mulf %16, %29 : vector<16x32xf32>
    %cst_28 = arith.constant dense<0.000000e+00> : vector<8x32xf32>
    %31 = tpu.matmul %5, %30, %cst_28 {dimension_numbers = #tpu.dot_dimension_numbers<[0], [0], [1], [1], [0, 1, 1, 1], [], []>} : vector<16x8xf32>, vector<16x32xf32>, vector<8x32xf32> -> vector<8x32xf32>
    %32 = vector.broadcast %7 : vector<8x1xf32> to vector<8x32xf32>
    %33 = arith.mulf %31, %32 : vector<8x32xf32>
    %34 = math.tanh %33 : vector<8x32xf32>
    %cst_29 = arith.constant dense<0.000000e+00> : vector<16x32xf32>
    %35 = tpu.matmul %5, %34, %cst_29 {dimension_numbers = #tpu.dot_dimension_numbers<[1], [0], [0], [1], [0, 0, 1, 1], [], []>} : vector<16x8xf32>, vector<8x32xf32>, vector<16x32xf32> -> vector<16x32xf32>
    %36 = arith.mulf %16, %35 : vector<16x32xf32>
    %cst_30 = arith.constant dense<0.000000e+00> : vector<16xf32>
    %37 = vector.multi_reduction <add>, %36, %cst_30 [1] : vector<16x32xf32> to vector<16xf32>
    %38 = vector.shape_cast %37 : vector<16xf32> to vector<16x1xf32>
    %39 = arith.negf %38 : vector<16x1xf32>
    %40 = math.exp %39 : vector<16x1xf32>
    %cst_31 = arith.constant 1.000000e+00 : f32
    %41 = vector.broadcast %cst_31 : f32 to vector<16x1xf32>
    %42 = arith.addf %41, %40 : vector<16x1xf32>
    %43 = arith.divf %41, %42 : vector<16x1xf32>
    %44 = vector.broadcast %43 : vector<16x1xf32> to vector<16x32xf32>
    %45 = arith.mulf %44, %16 : vector<16x32xf32>
    %cst_32 = arith.constant dense<0.000000e+00> : vector<8x32xf32>
    %46 = tpu.matmul %5, %45, %cst_32 {dimension_numbers = #tpu.dot_dimension_numbers<[0], [0], [1], [1], [0, 1, 1, 1], [], []>} : vector<16x8xf32>, vector<16x32xf32>, vector<8x32xf32> -> vector<8x32xf32>
    %47 = arith.index_cast %arg0 : i32 to index
    %c0_33 = arith.constant 0 : index
    %c0_34 = arith.constant 0 : index
    %48 = vector.load %arg39[%47, %c0_33, %c0_34] : memref<2x8x32xf32, #tpu.memory_space<vmem>>, vector<1x8x32xf32>
    %49 = vector.shape_cast %48 : vector<1x8x32xf32> to vector<8x32xf32>
    %50 = vector.shape_cast %46 : vector<8x32xf32> to vector<1x8x32xf32>
    tpu.vector_store %arg39[%47, %c0_33, %c0_34], %50 {strides = array<i32>} : memref<2x8x32xf32, #tpu.memory_space<vmem>>, vector<1x8x32xf32>,
    %c0_35 = arith.constant 0 : index
    %c0_36 = arith.constant 0 : index
    %51 = vector.load %arg7[%c0_35, %c0_36] : memref<32x16xf32, #tpu.memory_space<vmem>>, vector<32x16xf32>
    %c0_37 = arith.constant 0 : index
    %c0_38 = arith.constant 0 : index
    %52 = vector.load %arg8[%c0_37, %c0_38] : memref<1x16xf32, #tpu.memory_space<vmem>>, vector<1x16xf32>
    %cst_39 = arith.constant dense<0.000000e+00> : vector<16x16xf32>
    %53 = tpu.matmul %16, %51, %cst_39 {dimension_numbers = #tpu.dot_dimension_numbers<[1], [0], [0], [1], [0, 0, 1, 1], [], []>} : vector<16x32xf32>, vector<32x16xf32>, vector<16x16xf32> -> vector<16x16xf32>
    %54 = arith.truncf %53 : vector<16x16xf32> to vector<16x16xbf16>
    %cst_40 = arith.constant dense<0.000000e+00> : vector<16x16xf32>
    %55 = tpu.matmul %1, %54, %cst_40 {dimension_numbers = #tpu.dot_dimension_numbers<[1], [0], [0], [1], [0, 0, 1, 1], [], []>} : vector<16x16xbf16>, vector<16x16xbf16>, vector<16x16xf32> -> vector<16x16xf32>
    %56 = vector.broadcast %52 : vector<1x16xf32> to vector<16x16xf32>
    %57 = arith.addf %55, %56 : vector<16x16xf32>
    %cst_41 = arith.constant 0.000000e+00 : f32
    %58 = vector.broadcast %cst_41 : f32 to vector<16x16xf32>
    %59 = arith.maximumf %57, %58 : vector<16x16xf32>
    %c0_42 = arith.constant 0 : index
    %c0_43 = arith.constant 0 : index
    %60 = vector.load %arg15[%c0_42, %c0_43] : memref<16x4xf32, #tpu.memory_space<vmem>>, vector<16x4xf32>
    %c0_44 = arith.constant 0 : index
    %c0_45 = arith.constant 0 : index
    %61 = vector.load %arg16[%c0_44, %c0_45] : memref<1x4xf32, #tpu.memory_space<vmem>>, vector<1x4xf32>
    %c0_46 = arith.constant 0 : index
    %c0_47 = arith.constant 0 : index
    %62 = vector.load %arg17[%c0_46, %c0_47] : memref<4x16xf32, #tpu.memory_space<vmem>>, vector<4x16xf32>
    %c0_48 = arith.constant 0 : index
    %c0_49 = arith.constant 0 : index
    %63 = vector.load %arg18[%c0_48, %c0_49] : memref<1x16xf32, #tpu.memory_space<vmem>>, vector<1x16xf32>
    %cst_50 = arith.constant dense<0.000000e+00> : vector<16x4xf32>
    %64 = tpu.matmul %59, %60, %cst_50 {dimension_numbers = #tpu.dot_dimension_numbers<[1], [0], [0], [1], [0, 0, 1, 1], [], []>} : vector<16x16xf32>, vector<16x4xf32>, vector<16x4xf32> -> vector<16x4xf32>
    %65 = vector.broadcast %61 : vector<1x4xf32> to vector<16x4xf32>
    %66 = arith.addf %64, %65 : vector<16x4xf32>
    %cst_51 = arith.constant 0.000000e+00 : f32
    %67 = vector.broadcast %cst_51 : f32 to vector<16x4xf32>
    %68 = arith.maximumf %66, %67 : vector<16x4xf32>
    %cst_52 = arith.constant dense<0.000000e+00> : vector<16x16xf32>
    %69 = tpu.matmul %68, %62, %cst_52 {dimension_numbers = #tpu.dot_dimension_numbers<[1], [0], [0], [1], [0, 0, 1, 1], [], []>} : vector<16x4xf32>, vector<4x16xf32>, vector<16x16xf32> -> vector<16x16xf32>
    %70 = vector.broadcast %63 : vector<1x16xf32> to vector<16x16xf32>
    %71 = arith.addf %69, %70 : vector<16x16xf32>
    %72 = math.tanh %71 : vector<16x16xf32>
    %73 = arith.mulf %59, %72 : vector<16x16xf32>
    %cst_53 = arith.constant dense<0.000000e+00> : vector<8x16xf32>
    %74 = tpu.matmul %5, %73, %cst_53 {dimension_numbers = #tpu.dot_dimension_numbers<[0], [0], [1], [1], [0, 1, 1, 1], [], []>} : vector<16x8xf32>, vector<16x16xf32>, vector<8x16xf32> -> vector<8x16xf32>
    %75 = vector.broadcast %7 : vector<8x1xf32> to vector<8x16xf32>
    %76 = arith.mulf %74, %75 : vector<8x16xf32>
    %77 = math.tanh %76 : vector<8x16xf32>
    %cst_54 = arith.constant dense<0.000000e+00> : vector<16x16xf32>
    %78 = tpu.matmul %5, %77, %cst_54 {dimension_numbers = #tpu.dot_dimension_numbers<[1], [0], [0], [1], [0, 0, 1, 1], [], []>} : vector<16x8xf32>, vector<8x16xf32>, vector<16x16xf32> -> vector<16x16xf32>
    %79 = arith.mulf %59, %78 : vector<16x16xf32>
    %cst_55 = arith.constant dense<0.000000e+00> : vector<16xf32>
    %80 = vector.multi_reduction <add>, %79, %cst_55 [1] : vector<16x16xf32> to vector<16xf32>
    %81 = vector.shape_cast %80 : vector<16xf32> to vector<16x1xf32>
    %82 = arith.negf %81 : vector<16x1xf32>
    %83 = math.exp %82 : vector<16x1xf32>
    %cst_56 = arith.constant 1.000000e+00 : f32
    %84 = vector.broadcast %cst_56 : f32 to vector<16x1xf32>
    %85 = arith.addf %84, %83 : vector<16x1xf32>
    %86 = arith.divf %84, %85 : vector<16x1xf32>
    %87 = vector.broadcast %86 : vector<16x1xf32> to vector<16x16xf32>
    %88 = arith.mulf %87, %59 : vector<16x16xf32>
    %cst_57 = arith.constant dense<0.000000e+00> : vector<8x16xf32>
    %89 = tpu.matmul %5, %88, %cst_57 {dimension_numbers = #tpu.dot_dimension_numbers<[0], [0], [1], [1], [0, 1, 1, 1], [], []>} : vector<16x8xf32>, vector<16x16xf32>, vector<8x16xf32> -> vector<8x16xf32>
    %90 = arith.index_cast %arg0 : i32 to index
    %c0_58 = arith.constant 0 : index
    %c0_59 = arith.constant 0 : index
    %91 = vector.load %arg40[%90, %c0_58, %c0_59] : memref<2x8x16xf32, #tpu.memory_space<vmem>>, vector<1x8x16xf32>
    %92 = vector.shape_cast %91 : vector<1x8x16xf32> to vector<8x16xf32>
    %93 = vector.shape_cast %89 : vector<8x16xf32> to vector<1x8x16xf32>
    tpu.vector_store %arg40[%90, %c0_58, %c0_59], %93 {strides = array<i32>} : memref<2x8x16xf32, #tpu.memory_space<vmem>>, vector<1x8x16xf32>,
    %c0_60 = arith.constant 0 : index
    %c0_61 = arith.constant 0 : index
    %94 = vector.load %arg9[%c0_60, %c0_61] : memref<16x8xf32, #tpu.memory_space<vmem>>, vector<16x8xf32>
    %c0_62 = arith.constant 0 : index
    %c0_63 = arith.constant 0 : index
    %95 = vector.load %arg10[%c0_62, %c0_63] : memref<1x8xf32, #tpu.memory_space<vmem>>, vector<1x8xf32>
    %cst_64 = arith.constant dense<0.000000e+00> : vector<16x8xf32>
    %96 = tpu.matmul %59, %94, %cst_64 {dimension_numbers = #tpu.dot_dimension_numbers<[1], [0], [0], [1], [0, 0, 1, 1], [], []>} : vector<16x16xf32>, vector<16x8xf32>, vector<16x8xf32> -> vector<16x8xf32>
    %97 = arith.truncf %96 : vector<16x8xf32> to vector<16x8xbf16>
    %cst_65 = arith.constant dense<0.000000e+00> : vector<16x8xf32>
    %98 = tpu.matmul %1, %97, %cst_65 {dimension_numbers = #tpu.dot_dimension_numbers<[1], [0], [0], [1], [0, 0, 1, 1], [], []>} : vector<16x16xbf16>, vector<16x8xbf16>, vector<16x8xf32> -> vector<16x8xf32>
    %99 = vector.broadcast %95 : vector<1x8xf32> to vector<16x8xf32>
    %100 = arith.addf %98, %99 : vector<16x8xf32>
    %cst_66 = arith.constant 0.000000e+00 : f32
    %101 = vector.broadcast %cst_66 : f32 to vector<16x8xf32>
    %102 = arith.maximumf %100, %101 : vector<16x8xf32>
    %c0_67 = arith.constant 0 : index
    %c0_68 = arith.constant 0 : index
    %103 = vector.load %arg19[%c0_67, %c0_68] : memref<8x2xf32, #tpu.memory_space<vmem>>, vector<8x2xf32>
    %c0_69 = arith.constant 0 : index
    %c0_70 = arith.constant 0 : index
    %104 = vector.load %arg20[%c0_69, %c0_70] : memref<1x2xf32, #tpu.memory_space<vmem>>, vector<1x2xf32>
    %c0_71 = arith.constant 0 : index
    %c0_72 = arith.constant 0 : index
    %105 = vector.load %arg21[%c0_71, %c0_72] : memref<2x8xf32, #tpu.memory_space<vmem>>, vector<2x8xf32>
    %c0_73 = arith.constant 0 : index
    %c0_74 = arith.constant 0 : index
    %106 = vector.load %arg22[%c0_73, %c0_74] : memref<1x8xf32, #tpu.memory_space<vmem>>, vector<1x8xf32>
    %cst_75 = arith.constant dense<0.000000e+00> : vector<16x2xf32>
    %107 = tpu.matmul %102, %103, %cst_75 {dimension_numbers = #tpu.dot_dimension_numbers<[1], [0], [0], [1], [0, 0, 1, 1], [], []>} : vector<16x8xf32>, vector<8x2xf32>, vector<16x2xf32> -> vector<16x2xf32>
    %108 = vector.broadcast %104 : vector<1x2xf32> to vector<16x2xf32>
    %109 = arith.addf %107, %108 : vector<16x2xf32>
    %cst_76 = arith.constant 0.000000e+00 : f32
    %110 = vector.broadcast %cst_76 : f32 to vector<16x2xf32>
    %111 = arith.maximumf %109, %110 : vector<16x2xf32>
    %cst_77 = arith.constant dense<0.000000e+00> : vector<16x8xf32>
    %112 = tpu.matmul %111, %105, %cst_77 {dimension_numbers = #tpu.dot_dimension_numbers<[1], [0], [0], [1], [0, 0, 1, 1], [], []>} : vector<16x2xf32>, vector<2x8xf32>, vector<16x8xf32> -> vector<16x8xf32>
    %113 = vector.broadcast %106 : vector<1x8xf32> to vector<16x8xf32>
    %114 = arith.addf %112, %113 : vector<16x8xf32>
    %115 = math.tanh %114 : vector<16x8xf32>
    %116 = arith.mulf %102, %115 : vector<16x8xf32>
    %cst_78 = arith.constant dense<0.000000e+00> : vector<8x8xf32>
    %117 = tpu.matmul %5, %116, %cst_78 {dimension_numbers = #tpu.dot_dimension_numbers<[0], [0], [1], [1], [0, 1, 1, 1], [], []>} : vector<16x8xf32>, vector<16x8xf32>, vector<8x8xf32> -> vector<8x8xf32>
    %118 = vector.broadcast %7 : vector<8x1xf32> to vector<8x8xf32>
    %119 = arith.mulf %117, %118 : vector<8x8xf32>
    %120 = math.tanh %119 : vector<8x8xf32>
    %cst_79 = arith.constant dense<0.000000e+00> : vector<16x8xf32>
    %121 = tpu.matmul %5, %120, %cst_79 {dimension_numbers = #tpu.dot_dimension_numbers<[1], [0], [0], [1], [0, 0, 1, 1], [], []>} : vector<16x8xf32>, vector<8x8xf32>, vector<16x8xf32> -> vector<16x8xf32>
    %122 = arith.mulf %102, %121 : vector<16x8xf32>
    %cst_80 = arith.constant dense<0.000000e+00> : vector<16xf32>
    %123 = vector.multi_reduction <add>, %122, %cst_80 [1] : vector<16x8xf32> to vector<16xf32>
    %124 = vector.shape_cast %123 : vector<16xf32> to vector<16x1xf32>
    %125 = arith.negf %124 : vector<16x1xf32>
    %126 = math.exp %125 : vector<16x1xf32>
    %cst_81 = arith.constant 1.000000e+00 : f32
    %127 = vector.broadcast %cst_81 : f32 to vector<16x1xf32>
    %128 = arith.addf %127, %126 : vector<16x1xf32>
    %129 = arith.divf %127, %128 : vector<16x1xf32>
    %130 = vector.broadcast %129 : vector<16x1xf32> to vector<16x8xf32>
    %131 = arith.mulf %130, %102 : vector<16x8xf32>
    %cst_82 = arith.constant dense<0.000000e+00> : vector<8x8xf32>
    %132 = tpu.matmul %5, %131, %cst_82 {dimension_numbers = #tpu.dot_dimension_numbers<[0], [0], [1], [1], [0, 1, 1, 1], [], []>} : vector<16x8xf32>, vector<16x8xf32>, vector<8x8xf32> -> vector<8x8xf32>
    %133 = arith.index_cast %arg0 : i32 to index
    %c0_83 = arith.constant 0 : index
    %c0_84 = arith.constant 0 : index
    %134 = vector.load %arg41[%133, %c0_83, %c0_84] : memref<2x8x8xf32, #tpu.memory_space<vmem>>, vector<1x8x8xf32>
    %135 = vector.shape_cast %134 : vector<1x8x8xf32> to vector<8x8xf32>
    %136 = vector.shape_cast %132 : vector<8x8xf32> to vector<1x8x8xf32>
    tpu.vector_store %arg41[%133, %c0_83, %c0_84], %136 {strides = array<i32>} : memref<2x8x8xf32, #tpu.memory_space<vmem>>, vector<1x8x8xf32>,
    %c1_i32 = arith.constant 1 : i32
    %137 = arith.cmpi eq, %arg0, %c1_i32 : i32
    %138 = arith.extui %137 : i1 to i32
    %c0_i32 = arith.constant 0 : i32
    %139 = arith.cmpi ne, %138, %c0_i32 : i32
    scf.if %139 {
      %c0_85 = arith.constant 0 : index
      %c0_86 = arith.constant 0 : index
      %c0_87 = arith.constant 0 : index
      %140 = vector.load %arg39[%c0_85, %c0_86, %c0_87] : memref<2x8x32xf32, #tpu.memory_space<vmem>>, vector<1x8x32xf32>
      %141 = vector.shape_cast %140 : vector<1x8x32xf32> to vector<8x32xf32>
      %c1 = arith.constant 1 : index
      %c0_88 = arith.constant 0 : index
      %c0_89 = arith.constant 0 : index
      %142 = vector.load %arg39[%c1, %c0_88, %c0_89] : memref<2x8x32xf32, #tpu.memory_space<vmem>>, vector<1x8x32xf32>
      %143 = vector.shape_cast %142 : vector<1x8x32xf32> to vector<8x32xf32>
      %c0_90 = arith.constant 0 : index
      %c0_91 = arith.constant 0 : index
      %144 = vector.load %arg23[%c0_90, %c0_91] : memref<32x512xf32, #tpu.memory_space<vmem>>, vector<32x512xf32>
      %c0_92 = arith.constant 0 : index
      %c0_93 = arith.constant 0 : index
      %145 = vector.load %arg24[%c0_92, %c0_93] : memref<64x16xf32, #tpu.memory_space<vmem>>, vector<64x16xf32>
      %c0_94 = arith.constant 0 : index
      %c0_95 = arith.constant 0 : index
      %146 = vector.load %arg25[%c0_94, %c0_95] : memref<1x16xf32, #tpu.memory_space<vmem>>, vector<1x16xf32>
      %cst_96 = arith.constant dense<0.000000e+00> : vector<8x512xf32>
      %147 = tpu.matmul %141, %144, %cst_96 {dimension_numbers = #tpu.dot_dimension_numbers<[1], [0], [0], [1], [0, 0, 1, 1], [], []>} : vector<8x32xf32>, vector<32x512xf32>, vector<8x512xf32> -> vector<8x512xf32>
      %148 = vector.shape_cast %147 : vector<8x512xf32> to vector<8x16x32xf32>
      %149 = vector.shape_cast %143 : vector<8x32xf32> to vector<8x1x32xf32>
      %150 = vector.broadcast %149 : vector<8x1x32xf32> to vector<8x16x32xf32>
      %151 = arith.mulf %148, %150 : vector<8x16x32xf32>
      %cst_97 = arith.constant dense<0.000000e+00> : vector<8x16xf32>
      %152 = vector.multi_reduction <add>, %151, %cst_97 [2] : vector<8x16x32xf32> to vector<8x16xf32>
      %153 = tpu.concatenate %141, %143 in 1 : vector<8x32xf32>, vector<8x32xf32> -> vector<8x64xf32>
      %cst_98 = arith.constant dense<0.000000e+00> : vector<8x16xf32>
      %154 = tpu.matmul %153, %145, %cst_98 {dimension_numbers = #tpu.dot_dimension_numbers<[1], [0], [0], [1], [0, 0, 1, 1], [], []>} : vector<8x64xf32>, vector<64x16xf32>, vector<8x16xf32> -> vector<8x16xf32>
      %155 = arith.addf %152, %154 : vector<8x16xf32>
      %156 = vector.broadcast %146 : vector<1x16xf32> to vector<8x16xf32>
      %157 = arith.addf %155, %156 : vector<8x16xf32>
      %cst_99 = arith.constant 0.000000e+00 : f32
      %158 = vector.broadcast %cst_99 : f32 to vector<8x16xf32>
      %159 = arith.maximumf %157, %158 : vector<8x16xf32>
      %c0_100 = arith.constant 0 : index
      %c0_101 = arith.constant 0 : index
      %c0_102 = arith.constant 0 : index
      %160 = vector.load %arg40[%c0_100, %c0_101, %c0_102] : memref<2x8x16xf32, #tpu.memory_space<vmem>>, vector<1x8x16xf32>
      %161 = vector.shape_cast %160 : vector<1x8x16xf32> to vector<8x16xf32>
      %c1_103 = arith.constant 1 : index
      %c0_104 = arith.constant 0 : index
      %c0_105 = arith.constant 0 : index
      %162 = vector.load %arg40[%c1_103, %c0_104, %c0_105] : memref<2x8x16xf32, #tpu.memory_space<vmem>>, vector<1x8x16xf32>
      %163 = vector.shape_cast %162 : vector<1x8x16xf32> to vector<8x16xf32>
      %c0_106 = arith.constant 0 : index
      %c0_107 = arith.constant 0 : index
      %164 = vector.load %arg26[%c0_106, %c0_107] : memref<16x128xf32, #tpu.memory_space<vmem>>, vector<16x128xf32>
      %c0_108 = arith.constant 0 : index
      %c0_109 = arith.constant 0 : index
      %165 = vector.load %arg27[%c0_108, %c0_109] : memref<32x8xf32, #tpu.memory_space<vmem>>, vector<32x8xf32>
      %c0_110 = arith.constant 0 : index
      %c0_111 = arith.constant 0 : index
      %166 = vector.load %arg28[%c0_110, %c0_111] : memref<1x8xf32, #tpu.memory_space<vmem>>, vector<1x8xf32>
      %cst_112 = arith.constant dense<0.000000e+00> : vector<8x128xf32>
      %167 = tpu.matmul %161, %164, %cst_112 {dimension_numbers = #tpu.dot_dimension_numbers<[1], [0], [0], [1], [0, 0, 1, 1], [], []>} : vector<8x16xf32>, vector<16x128xf32>, vector<8x128xf32> -> vector<8x128xf32>
      %168 = vector.shape_cast %167 : vector<8x128xf32> to vector<8x8x16xf32>
      %169 = vector.shape_cast %163 : vector<8x16xf32> to vector<8x1x16xf32>
      %170 = vector.broadcast %169 : vector<8x1x16xf32> to vector<8x8x16xf32>
      %171 = arith.mulf %168, %170 : vector<8x8x16xf32>
      %cst_113 = arith.constant dense<0.000000e+00> : vector<8x8xf32>
      %172 = vector.multi_reduction <add>, %171, %cst_113 [2] : vector<8x8x16xf32> to vector<8x8xf32>
      %173 = tpu.concatenate %161, %163 in 1 : vector<8x16xf32>, vector<8x16xf32> -> vector<8x32xf32>
      %cst_114 = arith.constant dense<0.000000e+00> : vector<8x8xf32>
      %174 = tpu.matmul %173, %165, %cst_114 {dimension_numbers = #tpu.dot_dimension_numbers<[1], [0], [0], [1], [0, 0, 1, 1], [], []>} : vector<8x32xf32>, vector<32x8xf32>, vector<8x8xf32> -> vector<8x8xf32>
      %175 = arith.addf %172, %174 : vector<8x8xf32>
      %176 = vector.broadcast %166 : vector<1x8xf32> to vector<8x8xf32>
      %177 = arith.addf %175, %176 : vector<8x8xf32>
      %cst_115 = arith.constant 0.000000e+00 : f32
      %178 = vector.broadcast %cst_115 : f32 to vector<8x8xf32>
      %179 = arith.maximumf %177, %178 : vector<8x8xf32>
      %c0_116 = arith.constant 0 : index
      %c0_117 = arith.constant 0 : index
      %c0_118 = arith.constant 0 : index
      %180 = vector.load %arg41[%c0_116, %c0_117, %c0_118] : memref<2x8x8xf32, #tpu.memory_space<vmem>>, vector<1x8x8xf32>
      %181 = vector.shape_cast %180 : vector<1x8x8xf32> to vector<8x8xf32>
      %c1_119 = arith.constant 1 : index
      %c0_120 = arith.constant 0 : index
      %c0_121 = arith.constant 0 : index
      %182 = vector.load %arg41[%c1_119, %c0_120, %c0_121] : memref<2x8x8xf32, #tpu.memory_space<vmem>>, vector<1x8x8xf32>
      %183 = vector.shape_cast %182 : vector<1x8x8xf32> to vector<8x8xf32>
      %c0_122 = arith.constant 0 : index
      %c0_123 = arith.constant 0 : index
      %184 = vector.load %arg29[%c0_122, %c0_123] : memref<8x32xf32, #tpu.memory_space<vmem>>, vector<8x32xf32>
      %c0_124 = arith.constant 0 : index
      %c0_125 = arith.constant 0 : index
      %185 = vector.load %arg30[%c0_124, %c0_125] : memref<16x4xf32, #tpu.memory_space<vmem>>, vector<16x4xf32>
      %c0_126 = arith.constant 0 : index
      %c0_127 = arith.constant 0 : index
      %186 = vector.load %arg31[%c0_126, %c0_127] : memref<1x4xf32, #tpu.memory_space<vmem>>, vector<1x4xf32>
      %cst_128 = arith.constant dense<0.000000e+00> : vector<8x32xf32>
      %187 = tpu.matmul %181, %184, %cst_128 {dimension_numbers = #tpu.dot_dimension_numbers<[1], [0], [0], [1], [0, 0, 1, 1], [], []>} : vector<8x8xf32>, vector<8x32xf32>, vector<8x32xf32> -> vector<8x32xf32>
      %188 = vector.shape_cast %187 : vector<8x32xf32> to vector<8x4x8xf32>
      %189 = vector.shape_cast %183 : vector<8x8xf32> to vector<8x1x8xf32>
      %190 = vector.broadcast %189 : vector<8x1x8xf32> to vector<8x4x8xf32>
      %191 = arith.mulf %188, %190 : vector<8x4x8xf32>
      %cst_129 = arith.constant dense<0.000000e+00> : vector<8x4xf32>
      %192 = vector.multi_reduction <add>, %191, %cst_129 [2] : vector<8x4x8xf32> to vector<8x4xf32>
      %193 = tpu.concatenate %181, %183 in 1 : vector<8x8xf32>, vector<8x8xf32> -> vector<8x16xf32>
      %cst_130 = arith.constant dense<0.000000e+00> : vector<8x4xf32>
      %194 = tpu.matmul %193, %185, %cst_130 {dimension_numbers = #tpu.dot_dimension_numbers<[1], [0], [0], [1], [0, 0, 1, 1], [], []>} : vector<8x16xf32>, vector<16x4xf32>, vector<8x4xf32> -> vector<8x4xf32>
      %195 = arith.addf %192, %194 : vector<8x4xf32>
      %196 = vector.broadcast %186 : vector<1x4xf32> to vector<8x4xf32>
      %197 = arith.addf %195, %196 : vector<8x4xf32>
      %cst_131 = arith.constant 0.000000e+00 : f32
      %198 = vector.broadcast %cst_131 : f32 to vector<8x4xf32>
      %199 = arith.maximumf %197, %198 : vector<8x4xf32>
      %200 = tpu.concatenate %199, %179, %159 in 1 : vector<8x4xf32>, vector<8x8xf32>, vector<8x16xf32> -> vector<8x28xf32>
      %c0_132 = arith.constant 0 : index
      %c0_133 = arith.constant 0 : index
      %201 = vector.load %arg32[%c0_132, %c0_133] : memref<28x7xf32, #tpu.memory_space<vmem>>, vector<28x7xf32>
      %cst_134 = arith.constant dense<0.000000e+00> : vector<8x7xf32>
      %202 = tpu.matmul %200, %201, %cst_134 {dimension_numbers = #tpu.dot_dimension_numbers<[1], [0], [0], [1], [0, 0, 1, 1], [], []>} : vector<8x28xf32>, vector<28x7xf32>, vector<8x7xf32> -> vector<8x7xf32>
      %c0_135 = arith.constant 0 : index
      %c0_136 = arith.constant 0 : index
      %203 = vector.load %arg33[%c0_135, %c0_136] : memref<1x7xf32, #tpu.memory_space<vmem>>, vector<1x7xf32>
      %204 = vector.broadcast %203 : vector<1x7xf32> to vector<8x7xf32>
      %205 = arith.addf %202, %204 : vector<8x7xf32>
      %cst_137 = arith.constant 0.000000e+00 : f32
      %206 = vector.broadcast %cst_137 : f32 to vector<8x7xf32>
      %207 = arith.maximumf %205, %206 : vector<8x7xf32>
      %c0_138 = arith.constant 0 : index
      %c0_139 = arith.constant 0 : index
      %208 = vector.load %arg34[%c0_138, %c0_139] : memref<7x28xf32, #tpu.memory_space<vmem>>, vector<7x28xf32>
      %cst_140 = arith.constant dense<0.000000e+00> : vector<8x28xf32>
      %209 = tpu.matmul %207, %208, %cst_140 {dimension_numbers = #tpu.dot_dimension_numbers<[1], [0], [0], [1], [0, 0, 1, 1], [], []>} : vector<8x7xf32>, vector<7x28xf32>, vector<8x28xf32> -> vector<8x28xf32>
      %c0_141 = arith.constant 0 : index
      %c0_142 = arith.constant 0 : index
      %210 = vector.load %arg35[%c0_141, %c0_142] : memref<1x28xf32, #tpu.memory_space<vmem>>, vector<1x28xf32>
      %211 = vector.broadcast %210 : vector<1x28xf32> to vector<8x28xf32>
      %212 = arith.addf %209, %211 : vector<8x28xf32>
      %213 = arith.negf %212 : vector<8x28xf32>
      %214 = math.exp %213 : vector<8x28xf32>
      %cst_143 = arith.constant 1.000000e+00 : f32
      %215 = vector.broadcast %cst_143 : f32 to vector<8x28xf32>
      %216 = arith.addf %215, %214 : vector<8x28xf32>
      %217 = arith.divf %215, %216 : vector<8x28xf32>
      %218 = arith.mulf %217, %200 : vector<8x28xf32>
      %219 = arith.addf %218, %200 : vector<8x28xf32>
      %c0_144 = arith.constant 0 : index
      %c0_145 = arith.constant 0 : index
      %220 = vector.load %arg36[%c0_144, %c0_145] : memref<28x16xf32, #tpu.memory_space<vmem>>, vector<28x16xf32>
      %cst_146 = arith.constant dense<0.000000e+00> : vector<8x16xf32>
      %221 = tpu.matmul %219, %220, %cst_146 {dimension_numbers = #tpu.dot_dimension_numbers<[1], [0], [0], [1], [0, 0, 1, 1], [], []>} : vector<8x28xf32>, vector<28x16xf32>, vector<8x16xf32> -> vector<8x16xf32>
      %c0_147 = arith.constant 0 : index
      %c0_148 = arith.constant 0 : index
      %222 = vector.load %arg37[%c0_147, %c0_148] : memref<1x16xf32, #tpu.memory_space<vmem>>, vector<1x16xf32>
      %223 = vector.broadcast %222 : vector<1x16xf32> to vector<8x16xf32>
      %224 = arith.addf %221, %223 : vector<8x16xf32>
      %cst_149 = arith.constant 0.000000e+00 : f32
      %225 = vector.broadcast %cst_149 : f32 to vector<8x16xf32>
      %226 = arith.maximumf %224, %225 : vector<8x16xf32>
      %c0_150 = arith.constant 0 : index
      %c0_151 = arith.constant 0 : index
      %227 = vector.load %arg38[%c0_150, %c0_151] : memref<8x16xf32, #tpu.memory_space<vmem>>, vector<8x16xf32>
      tpu.vector_store %arg38[%c0_150, %c0_151], %226 {strides = array<i32>} : memref<8x16xf32, #tpu.memory_space<vmem>>, vector<8x16xf32>,
    } else {
    }
    return
  }
  func.func @transform_0(%arg0: i32) -> (i32, i32, i32) {
    %c0_i32 = arith.constant 0 : i32
    %c0_i32_0 = arith.constant 0 : i32
    %c0_i32_1 = arith.constant 0 : i32
    return %arg0, %c0_i32, %c0_i32_0 : i32, i32, i32
  }
  func.func @transform_1(%arg0: i32) -> (i32, i32, i32) {
    %c0_i32 = arith.constant 0 : i32
    %c0_i32_0 = arith.constant 0 : i32
    %c0_i32_1 = arith.constant 0 : i32
    return %arg0, %c0_i32, %c0_i32_0 : i32, i32, i32
  }
  func.func @transform_2(%arg0: i32) -> (i32, i32, i32) {
    %c0_i32 = arith.constant 0 : i32
    %c0_i32_0 = arith.constant 0 : i32
    %c0_i32_1 = arith.constant 0 : i32
    return %arg0, %c0_i32, %c0_i32_0 : i32, i32, i32
  }
  func.func @transform_3(%arg0: i32) -> (i32, i32, i32) {
    %c0_i32 = arith.constant 0 : i32
    %c0_i32_0 = arith.constant 0 : i32
    %c0_i32_1 = arith.constant 0 : i32
    return %arg0, %c0_i32, %c0_i32_0 : i32, i32, i32
  }
  func.func @transform_4(%arg0: i32) -> (i32, i32) {
    %c0_i32 = arith.constant 0 : i32
    %c0_i32_0 = arith.constant 0 : i32
    %c0_i32_1 = arith.constant 0 : i32
    return %c0_i32, %c0_i32_0 : i32, i32
  }
  func.func @transform_5(%arg0: i32) -> (i32, i32) {
    %c0_i32 = arith.constant 0 : i32
    %c0_i32_0 = arith.constant 0 : i32
    %c0_i32_1 = arith.constant 0 : i32
    return %c0_i32, %c0_i32_0 : i32, i32
  }
  func.func @transform_6(%arg0: i32) -> (i32, i32) {
    %c0_i32 = arith.constant 0 : i32
    %c0_i32_0 = arith.constant 0 : i32
    %c0_i32_1 = arith.constant 0 : i32
    return %c0_i32, %c0_i32_0 : i32, i32
  }
  func.func @transform_7(%arg0: i32) -> (i32, i32) {
    %c0_i32 = arith.constant 0 : i32
    %c0_i32_0 = arith.constant 0 : i32
    %c0_i32_1 = arith.constant 0 : i32
    return %c0_i32, %c0_i32_0 : i32, i32
  }
  func.func @transform_8(%arg0: i32) -> (i32, i32) {
    %c0_i32 = arith.constant 0 : i32
    %c0_i32_0 = arith.constant 0 : i32
    %c0_i32_1 = arith.constant 0 : i32
    return %c0_i32, %c0_i32_0 : i32, i32
  }
  func.func @transform_9(%arg0: i32) -> (i32, i32) {
    %c0_i32 = arith.constant 0 : i32
    %c0_i32_0 = arith.constant 0 : i32
    %c0_i32_1 = arith.constant 0 : i32
    return %c0_i32, %c0_i32_0 : i32, i32
  }
  func.func @transform_10(%arg0: i32) -> (i32, i32) {
    %c0_i32 = arith.constant 0 : i32
    %c0_i32_0 = arith.constant 0 : i32
    %c0_i32_1 = arith.constant 0 : i32
    return %c0_i32, %c0_i32_0 : i32, i32
  }
  func.func @transform_11(%arg0: i32) -> (i32, i32) {
    %c0_i32 = arith.constant 0 : i32
    %c0_i32_0 = arith.constant 0 : i32
    %c0_i32_1 = arith.constant 0 : i32
    return %c0_i32, %c0_i32_0 : i32, i32
  }
  func.func @transform_12(%arg0: i32) -> (i32, i32) {
    %c0_i32 = arith.constant 0 : i32
    %c0_i32_0 = arith.constant 0 : i32
    %c0_i32_1 = arith.constant 0 : i32
    return %c0_i32, %c0_i32_0 : i32, i32
  }
  func.func @transform_13(%arg0: i32) -> (i32, i32) {
    %c0_i32 = arith.constant 0 : i32
    %c0_i32_0 = arith.constant 0 : i32
    %c0_i32_1 = arith.constant 0 : i32
    return %c0_i32, %c0_i32_0 : i32, i32
  }
  func.func @transform_14(%arg0: i32) -> (i32, i32) {
    %c0_i32 = arith.constant 0 : i32
    %c0_i32_0 = arith.constant 0 : i32
    %c0_i32_1 = arith.constant 0 : i32
    return %c0_i32, %c0_i32_0 : i32, i32
  }
  func.func @transform_15(%arg0: i32) -> (i32, i32) {
    %c0_i32 = arith.constant 0 : i32
    %c0_i32_0 = arith.constant 0 : i32
    %c0_i32_1 = arith.constant 0 : i32
    return %c0_i32, %c0_i32_0 : i32, i32
  }
  func.func @transform_16(%arg0: i32) -> (i32, i32) {
    %c0_i32 = arith.constant 0 : i32
    %c0_i32_0 = arith.constant 0 : i32
    %c0_i32_1 = arith.constant 0 : i32
    return %c0_i32, %c0_i32_0 : i32, i32
  }
  func.func @transform_17(%arg0: i32) -> (i32, i32) {
    %c0_i32 = arith.constant 0 : i32
    %c0_i32_0 = arith.constant 0 : i32
    %c0_i32_1 = arith.constant 0 : i32
    return %c0_i32, %c0_i32_0 : i32, i32
  }
  func.func @transform_18(%arg0: i32) -> (i32, i32) {
    %c0_i32 = arith.constant 0 : i32
    %c0_i32_0 = arith.constant 0 : i32
    %c0_i32_1 = arith.constant 0 : i32
    return %c0_i32, %c0_i32_0 : i32, i32
  }
  func.func @transform_19(%arg0: i32) -> (i32, i32) {
    %c0_i32 = arith.constant 0 : i32
    %c0_i32_0 = arith.constant 0 : i32
    %c0_i32_1 = arith.constant 0 : i32
    return %c0_i32, %c0_i32_0 : i32, i32
  }
  func.func @transform_20(%arg0: i32) -> (i32, i32) {
    %c0_i32 = arith.constant 0 : i32
    %c0_i32_0 = arith.constant 0 : i32
    %c0_i32_1 = arith.constant 0 : i32
    return %c0_i32, %c0_i32_0 : i32, i32
  }
  func.func @transform_21(%arg0: i32) -> (i32, i32) {
    %c0_i32 = arith.constant 0 : i32
    %c0_i32_0 = arith.constant 0 : i32
    %c0_i32_1 = arith.constant 0 : i32
    return %c0_i32, %c0_i32_0 : i32, i32
  }
  func.func @transform_22(%arg0: i32) -> (i32, i32) {
    %c0_i32 = arith.constant 0 : i32
    %c0_i32_0 = arith.constant 0 : i32
    %c0_i32_1 = arith.constant 0 : i32
    return %c0_i32, %c0_i32_0 : i32, i32
  }
  func.func @transform_23(%arg0: i32) -> (i32, i32) {
    %c0_i32 = arith.constant 0 : i32
    %c0_i32_0 = arith.constant 0 : i32
    %c0_i32_1 = arith.constant 0 : i32
    return %c0_i32, %c0_i32_0 : i32, i32
  }
  func.func @transform_24(%arg0: i32) -> (i32, i32) {
    %c0_i32 = arith.constant 0 : i32
    %c0_i32_0 = arith.constant 0 : i32
    %c0_i32_1 = arith.constant 0 : i32
    return %c0_i32, %c0_i32_0 : i32, i32
  }
  func.func @transform_25(%arg0: i32) -> (i32, i32) {
    %c0_i32 = arith.constant 0 : i32
    %c0_i32_0 = arith.constant 0 : i32
    %c0_i32_1 = arith.constant 0 : i32
    return %c0_i32, %c0_i32_0 : i32, i32
  }
  func.func @transform_26(%arg0: i32) -> (i32, i32) {
    %c0_i32 = arith.constant 0 : i32
    %c0_i32_0 = arith.constant 0 : i32
    %c0_i32_1 = arith.constant 0 : i32
    return %c0_i32, %c0_i32_0 : i32, i32
  }
  func.func @transform_27(%arg0: i32) -> (i32, i32) {
    %c0_i32 = arith.constant 0 : i32
    %c0_i32_0 = arith.constant 0 : i32
    %c0_i32_1 = arith.constant 0 : i32
    return %c0_i32, %c0_i32_0 : i32, i32
  }
  func.func @transform_28(%arg0: i32) -> (i32, i32) {
    %c0_i32 = arith.constant 0 : i32
    %c0_i32_0 = arith.constant 0 : i32
    %c0_i32_1 = arith.constant 0 : i32
    return %c0_i32, %c0_i32_0 : i32, i32
  }
  func.func @transform_29(%arg0: i32) -> (i32, i32) {
    %c0_i32 = arith.constant 0 : i32
    %c0_i32_0 = arith.constant 0 : i32
    %c0_i32_1 = arith.constant 0 : i32
    return %c0_i32, %c0_i32_0 : i32, i32
  }
  func.func @transform_30(%arg0: i32) -> (i32, i32) {
    %c0_i32 = arith.constant 0 : i32
    %c0_i32_0 = arith.constant 0 : i32
    %c0_i32_1 = arith.constant 0 : i32
    return %c0_i32, %c0_i32_0 : i32, i32
  }
  func.func @transform_31(%arg0: i32) -> (i32, i32) {
    %c0_i32 = arith.constant 0 : i32
    %c0_i32_0 = arith.constant 0 : i32
    %c0_i32_1 = arith.constant 0 : i32
    return %c0_i32, %c0_i32_0 : i32, i32
  }
  func.func @transform_32(%arg0: i32) -> (i32, i32) {
    %c0_i32 = arith.constant 0 : i32
    %c0_i32_0 = arith.constant 0 : i32
    %c0_i32_1 = arith.constant 0 : i32
    return %c0_i32, %c0_i32_0 : i32, i32
  }
  func.func @transform_33(%arg0: i32) -> (i32, i32) {
    %c0_i32 = arith.constant 0 : i32
    %c0_i32_0 = arith.constant 0 : i32
    %c0_i32_1 = arith.constant 0 : i32
    return %c0_i32, %c0_i32_0 : i32, i32
  }
  func.func @transform_34(%arg0: i32) -> (i32, i32) {
    %c0_i32 = arith.constant 0 : i32
    %c0_i32_0 = arith.constant 0 : i32
    %c0_i32_1 = arith.constant 0 : i32
    return %c0_i32, %c0_i32_0 : i32, i32
  }
  func.func @transform_35(%arg0: i32) -> (i32, i32) {
    %c0_i32 = arith.constant 0 : i32
    %c0_i32_0 = arith.constant 0 : i32
    %c0_i32_1 = arith.constant 0 : i32
    return %c0_i32, %c0_i32_0 : i32, i32
  }
  func.func @transform_36(%arg0: i32) -> (i32, i32) {
    %c0_i32 = arith.constant 0 : i32
    %c0_i32_0 = arith.constant 0 : i32
    %c0_i32_1 = arith.constant 0 : i32
    return %c0_i32, %c0_i32_0 : i32, i32
  }
  func.func @transform_37(%arg0: i32) -> (i32, i32) {
    %c0_i32 = arith.constant 0 : i32
    %c0_i32_0 = arith.constant 0 : i32
    %c0_i32_1 = arith.constant 0 : i32
    return %c0_i32, %c0_i32_0 : i32, i32
  }
}

</mosaic_0001>

<llo_original>
// kernel: tpu_custom_call.1
$region0: #{tpu_custom_call.1}
  #allocation0 [shape = 'u32[]', space=smem, size = 0x4, offset = 0x4, fixed_abs, tag = 'smem constant byte address 0x4 - core index']
  #allocation1 [shape = 'u32[144,128]{1,0:T(1,128)}', space=vmem, size = 0x12000, scoped, tag = 'internal scratch']
  #allocation2 [shape = 'f32[2,8,32]{2,1,0:T(8,128)}', space=vmem, size = 0x2000, scoped, tag = 'scratch operand']
  #allocation3 [shape = 'f32[2,8,16]{2,1,0:T(8,128)}', space=vmem, size = 0x2000, scoped, tag = 'scratch operand']
  #allocation4 [shape = 'f32[2,8,8]{2,1,0:T(8,128)}', space=vmem, size = 0x2000, scoped, tag = 'scratch operand']
  %s0 = inlined_call_operand.smem [shape: u32[38], index: -1, kind: input, shape index: {}]
  %s1 = sld [smem:[%s0]]
  %s2 = scalar_lea.smem %s0, 1
  %s3 = sld [smem:[%s2]]
  %s4 = scalar_lea.smem %s0, 2
  %s5 = sld [smem:[%s4]]
  %s6 = scalar_lea.smem %s0, 3
  %s7 = sld [smem:[%s6]]
  %s8 = scalar_lea.smem %s0, 4
  %s9 = sld [smem:[%s8]]
  %s10 = scalar_lea.smem %s0, 5
  %s11 = sld [smem:[%s10]]
  %s12 = scalar_lea.smem %s0, 6
  %s13 = sld [smem:[%s12]]
  %s14 = scalar_lea.smem %s0, 7
  %s15 = sld [smem:[%s14]]
  %s16 = scalar_lea.smem %s0, 8
  %s17 = sld [smem:[%s16]]
  %s18 = scalar_lea.smem %s0, 9
  %s19 = sld [smem:[%s18]]
  %s20 = scalar_lea.smem %s0, 10
  %s21 = sld [smem:[%s20]]
  %s22 = scalar_lea.smem %s0, 11
  %s23 = sld [smem:[%s22]]
  %s24 = scalar_lea.smem %s0, 12
  %s25 = sld [smem:[%s24]]
  %s26 = scalar_lea.smem %s0, 13
  %s27 = sld [smem:[%s26]]
  %s28 = scalar_lea.smem %s0, 14
  %s29 = sld [smem:[%s28]]
  %s30 = scalar_lea.smem %s0, 15
  %s31 = sld [smem:[%s30]]
  %s32 = scalar_lea.smem %s0, 16
  %s33 = sld [smem:[%s32]]
  %s34 = scalar_lea.smem %s0, 17
  %s35 = sld [smem:[%s34]]
  %s36 = scalar_lea.smem %s0, 18
  %s37 = sld [smem:[%s36]]
  %s38 = scalar_lea.smem %s0, 19
  %s39 = sld [smem:[%s38]]
  %s40 = scalar_lea.smem %s0, 20
  %s41 = sld [smem:[%s40]]
  %s42 = scalar_lea.smem %s0, 21
  %s43 = sld [smem:[%s42]]
  %s44 = scalar_lea.smem %s0, 22
  %s45 = sld [smem:[%s44]]
  %s46 = scalar_lea.smem %s0, 23
  %s47 = sld [smem:[%s46]]
  %s48 = scalar_lea.smem %s0, 24
  %s49 = sld [smem:[%s48]]
  %s50 = scalar_lea.smem %s0, 25
  %s51 = sld [smem:[%s50]]
  %s52 = scalar_lea.smem %s0, 26
  %s53 = sld [smem:[%s52]]
  %s54 = scalar_lea.smem %s0, 27
  %s55 = sld [smem:[%s54]]
  %s56 = scalar_lea.smem %s0, 28
  %s57 = sld [smem:[%s56]]
  %s58 = scalar_lea.smem %s0, 29
  %s59 = sld [smem:[%s58]]
  %s60 = scalar_lea.smem %s0, 30
  %s61 = sld [smem:[%s60]]
  %s62 = scalar_lea.smem %s0, 31
  %s63 = sld [smem:[%s62]]
  %s64 = scalar_lea.smem %s0, 32
  %s65 = sld [smem:[%s64]]
  %s66 = scalar_lea.smem %s0, 33
  %s67 = sld [smem:[%s66]]
  %s68 = scalar_lea.smem %s0, 34
  %s69 = sld [smem:[%s68]]
  %s70 = scalar_lea.smem %s0, 35
  %s71 = sld [smem:[%s70]]
  %s72 = scalar_lea.smem %s0, 36
  %s73 = sld [smem:[%s72]]
  %s74 = scalar_lea.smem %s0, 37
  %s75 = sld [smem:[%s74]]
  %s76 = sld [smem:[#allocation0]]
  $region185: #{tpu_custom_call.1} parent=0
    _
  %s78 = ssub.s32 1, %s76
  %s79 = scalar_select 0, %s78, %s76
  $region1: #{tpu_custom_call.1} parent=0
    #allocation5 [shape = 'u8[4096]{0}', space=vmem, size = 0x1000, scoped, tag = 'output window, operand 0, single buffered']
    #allocation6 [shape = 's32[2]{0}', space=sflag, size = 0x8, scoped, tag = 'scoped memory for tpu_custom_call.1']
    %80 = vsyncpa [#allocation6], 0
    loop: start=0, step=1, limit=4
    $region2: #{tpu_custom_call.1} parent=1 // loop_pre_header
      _
    $region3: #{tpu_custom_call.1} parent=1 // loop_header
      %s82 = sphi 0, %s86
      %p83 = scmp.ge.s32.totalorder %s82, 4
      %s92 = sphi 0, %s94
      %s95 = sphi 0, %s92
      %s96 = sphi 0, %s95
      %s112 = sphi 0, %s96
      %s118 = sphi 0, %s120
      %s121 = sphi 0, %s118
      %s122 = sphi 0, %s121
      %s138 = sphi 0, %s122
      %s144 = sphi 0, %s146
      %s147 = sphi 0, %s144
      %s148 = sphi 0, %s147
      %s164 = sphi 0, %s148
      %s170 = sphi 0, %s172
      %s173 = sphi 0, %s170
      %s174 = sphi 0, %s173
      %s190 = sphi 0, %s174
      %s194 = sphi 0, %s194
      %s196 = sphi 0, %s194
      %s197 = sphi 0, %s196
      %s211 = sphi 0, %s197
      %s215 = sphi 0, %s215
      %s217 = sphi 0, %s215
      %s218 = sphi 0, %s217
      %s232 = sphi 0, %s218
      %s236 = sphi 0, %s236
      %s238 = sphi 0, %s236
      %s239 = sphi 0, %s238
      %s253 = sphi 0, %s239
      %s257 = sphi 0, %s257
      %s259 = sphi 0, %s257
      %s260 = sphi 0, %s259
      %s274 = sphi 0, %s260
      %s278 = sphi 0, %s278
      %s280 = sphi 0, %s278
      %s281 = sphi 0, %s280
      %s295 = sphi 0, %s281
      %s299 = sphi 0, %s299
      %s301 = sphi 0, %s299
      %s302 = sphi 0, %s301
      %s316 = sphi 0, %s302
      %s320 = sphi 0, %s320
      %s322 = sphi 0, %s320
      %s323 = sphi 0, %s322
      %s337 = sphi 0, %s323
      %s341 = sphi 0, %s341
      %s343 = sphi 0, %s341
      %s344 = sphi 0, %s343
      %s358 = sphi 0, %s344
      %s362 = sphi 0, %s362
      %s364 = sphi 0, %s362
      %s365 = sphi 0, %s364
      %s379 = sphi 0, %s365
      %s383 = sphi 0, %s383
      %s385 = sphi 0, %s383
      %s386 = sphi 0, %s385
      %s400 = sphi 0, %s386
      %s404 = sphi 0, %s404
      %s406 = sphi 0, %s404
      %s407 = sphi 0, %s406
      %s421 = sphi 0, %s407
      %s425 = sphi 0, %s425
      %s427 = sphi 0, %s425
      %s428 = sphi 0, %s427
      %s442 = sphi 0, %s428
      %s446 = sphi 0, %s446
      %s448 = sphi 0, %s446
      %s449 = sphi 0, %s448
      %s463 = sphi 0, %s449
      %s467 = sphi 0, %s467
      %s469 = sphi 0, %s467
      %s470 = sphi 0, %s469
      %s484 = sphi 0, %s470
      %s488 = sphi 0, %s488
      %s490 = sphi 0, %s488
      %s491 = sphi 0, %s490
      %s505 = sphi 0, %s491
      %s509 = sphi 0, %s509
      %s511 = sphi 0, %s509
      %s512 = sphi 0, %s511
      %s526 = sphi 0, %s512
      %s530 = sphi 0, %s530
      %s532 = sphi 0, %s530
      %s533 = sphi 0, %s532
      %s547 = sphi 0, %s533
      %s551 = sphi 0, %s551
      %s553 = sphi 0, %s551
      %s554 = sphi 0, %s553
      %s568 = sphi 0, %s554
      %s572 = sphi 0, %s572
      %s574 = sphi 0, %s572
      %s575 = sphi 0, %s574
      %s589 = sphi 0, %s575
      %s593 = sphi 0, %s593
      %s595 = sphi 0, %s593
      %s596 = sphi 0, %s595
      %s610 = sphi 0, %s596
      %s614 = sphi 0, %s614
      %s616 = sphi 0, %s614
      %s617 = sphi 0, %s616
      %s631 = sphi 0, %s617
      %s635 = sphi 0, %s635
      %s637 = sphi 0, %s635
      %s638 = sphi 0, %s637
      %s652 = sphi 0, %s638
      %s656 = sphi 0, %s656
      %s658 = sphi 0, %s656
      %s659 = sphi 0, %s658
      %s673 = sphi 0, %s659
      %s677 = sphi 0, %s677
      %s679 = sphi 0, %s677
      %s680 = sphi 0, %s679
      %s694 = sphi 0, %s680
      %s698 = sphi 0, %s698
      %s700 = sphi 0, %s698
      %s701 = sphi 0, %s700
      %s715 = sphi 0, %s701
      %s719 = sphi 0, %s719
      %s721 = sphi 0, %s719
      %s722 = sphi 0, %s721
      %s736 = sphi 0, %s722
      %s740 = sphi 0, %s740
      %s742 = sphi 0, %s740
      %s743 = sphi 0, %s742
      %s757 = sphi 0, %s743
      %s761 = sphi 0, %s761
      %s763 = sphi 0, %s761
      %s764 = sphi 0, %s763
      %s778 = sphi 0, %s764
      %s782 = sphi 0, %s782
      %s784 = sphi 0, %s782
      %s785 = sphi 0, %s784
      %s799 = sphi 0, %s785
      %s803 = sphi 0, %s803
      %s805 = sphi 0, %s803
      %s806 = sphi 0, %s805
      %s820 = sphi 0, %s806
      %s824 = sphi 0, %s824
      %s826 = sphi 0, %s824
      %s827 = sphi 0, %s826
      %s841 = sphi 0, %s827
      %s845 = sphi 0, %s845
      %s847 = sphi 0, %s845
      %s848 = sphi 0, %s847
      %s862 = sphi 0, %s848
      %s866 = sphi 0, %s866
      %s868 = sphi 0, %s866
      %s869 = sphi 0, %s868
      %s883 = sphi 0, %s869
      %s887 = sphi 0, %s887
      %s889 = sphi 0, %s887
      %s890 = sphi 0, %s889
      %s904 = sphi 0, %s890
    $region4: #{tpu_custom_call.1} parent=1 // loop_header_branch
      %85 = sbr.rel (%p83) target = $region8
    $region5: #{tpu_custom_call.1} parent=1 // loop_body
      %s87 = ssub.s32 %s82, 1
      %s88 = ssub.s32 %s82, 2
      %s89 = sadd.s32 %s82, 1
      %s90 = ssub.s32 %s82, %s89
      %p91 = scmp.eq.s32.totalorder %s90, 0
      %s93 = sadd.s32 %s92, 1
      %s94 = scalar_select %p91, %s92, %s93
      %p97 = pneg %p91
      %p98 = scmp.eq.s32.totalorder %s82, 1
      %p99 = por %p97, %p98
      %p100 = scmp.ne.s32.totalorder %s92, %s95
      %p101 = scmp.eq.s32.totalorder %s82, 0
      %p102 = por %p100, %p101
      %p103 = scmp.ne.s32.totalorder %s92, %s95
      %p104 = scmp.eq.s32.totalorder %s87, 1
      %p105 = por %p103, %p104
      %p106 = scmp.ne.s32.totalorder %s95, %s96
      %p107 = scmp.eq.s32.totalorder %s87, 0
      %p108 = por %p106, %p107
      %p109 = scmp.ne.s32.totalorder %s95, %s96
      %p110 = scmp.eq.s32.totalorder %s88, 1
      %p111 = por %p109, %p110
      %p113 = scmp.ne.s32.totalorder %s96, %s112
      %p114 = scmp.eq.s32.totalorder %s88, 0
      %p115 = por %p113, %p114
      %s116 = ssub.s32 %s82, %s89
      %p117 = scmp.eq.s32.totalorder %s116, 0
      %s119 = sadd.s32 %s118, 1
      %s120 = scalar_select %p117, %s118, %s119
      %p123 = pneg %p117
      %p124 = scmp.eq.s32.totalorder %s82, 1
      %p125 = por %p123, %p124
      %p126 = scmp.ne.s32.totalorder %s118, %s121
      %p127 = scmp.eq.s32.totalorder %s82, 0
      %p128 = por %p126, %p127
      %p129 = scmp.ne.s32.totalorder %s118, %s121
      %p130 = scmp.eq.s32.totalorder %s87, 1
      %p131 = por %p129, %p130
      %p132 = scmp.ne.s32.totalorder %s121, %s122
      %p133 = scmp.eq.s32.totalorder %s87, 0
      %p134 = por %p132, %p133
      %p135 = scmp.ne.s32.totalorder %s121, %s122
      %p136 = scmp.eq.s32.totalorder %s88, 1
      %p137 = por %p135, %p136
      %p139 = scmp.ne.s32.totalorder %s122, %s138
      %p140 = scmp.eq.s32.totalorder %s88, 0
      %p141 = por %p139, %p140
      %s142 = ssub.s32 %s82, %s89
      %p143 = scmp.eq.s32.totalorder %s142, 0
      %s145 = sadd.s32 %s144, 1
      %s146 = scalar_select %p143, %s144, %s145
      %p149 = pneg %p143
      %p150 = scmp.eq.s32.totalorder %s82, 1
      %p151 = por %p149, %p150
      %p152 = scmp.ne.s32.totalorder %s144, %s147
      %p153 = scmp.eq.s32.totalorder %s82, 0
      %p154 = por %p152, %p153
      %p155 = scmp.ne.s32.totalorder %s144, %s147
      %p156 = scmp.eq.s32.totalorder %s87, 1
      %p157 = por %p155, %p156
      %p158 = scmp.ne.s32.totalorder %s147, %s148
      %p159 = scmp.eq.s32.totalorder %s87, 0
      %p160 = por %p158, %p159
      %p161 = scmp.ne.s32.totalorder %s147, %s148
      %p162 = scmp.eq.s32.totalorder %s88, 1
      %p163 = por %p161, %p162
      %p165 = scmp.ne.s32.totalorder %s148, %s164
      %p166 = scmp.eq.s32.totalorder %s88, 0
      %p167 = por %p165, %p166
      %s168 = ssub.s32 %s82, %s89
      %p169 = scmp.eq.s32.totalorder %s168, 0
      %s171 = sadd.s32 %s170, 1
      %s172 = scalar_select %p169, %s170, %s171
      %p175 = pneg %p169
      %p176 = scmp.eq.s32.totalorder %s82, 1
      %p177 = por %p175, %p176
      %p178 = scmp.ne.s32.totalorder %s170, %s173
      %p179 = scmp.eq.s32.totalorder %s82, 0
      %p180 = por %p178, %p179
      %p181 = scmp.ne.s32.totalorder %s170, %s173
      %p182 = scmp.eq.s32.totalorder %s87, 1
      %p183 = por %p181, %p182
      %p184 = scmp.ne.s32.totalorder %s173, %s174
      %p185 = scmp.eq.s32.totalorder %s87, 0
      %p186 = por %p184, %p185
      %p187 = scmp.ne.s32.totalorder %s173, %s174
      %p188 = scmp.eq.s32.totalorder %s88, 1
      %p189 = por %p187, %p188
      %p191 = scmp.ne.s32.totalorder %s174, %s190
      %p192 = scmp.eq.s32.totalorder %s88, 0
      %p193 = por %p191, %p192
      %s195 = sadd.s32 %s194, 1
      %p198 = scmp.eq.s32.totalorder %s82, 1
      %p199 = scmp.ne.s32.totalorder %s194, %s196
      %p200 = scmp.eq.s32.totalorder %s82, 0
      %p201 = por %p199, %p200
      %p202 = scmp.ne.s32.totalorder %s194, %s196
      %p203 = scmp.eq.s32.totalorder %s87, 1
      %p204 = por %p202, %p203
      %p205 = scmp.ne.s32.totalorder %s196, %s197
      %p206 = scmp.eq.s32.totalorder %s87, 0
      %p207 = por %p205, %p206
      %p208 = scmp.ne.s32.totalorder %s196, %s197
      %p209 = scmp.eq.s32.totalorder %s88, 1
      %p210 = por %p208, %p209
      %p212 = scmp.ne.s32.totalorder %s197, %s211
      %p213 = scmp.eq.s32.totalorder %s88, 0
      %p214 = por %p212, %p213
      %s216 = sadd.s32 %s215, 1
      %p219 = scmp.eq.s32.totalorder %s82, 1
      %p220 = scmp.ne.s32.totalorder %s215, %s217
      %p221 = scmp.eq.s32.totalorder %s82, 0
      %p222 = por %p220, %p221
      %p223 = scmp.ne.s32.totalorder %s215, %s217
      %p224 = scmp.eq.s32.totalorder %s87, 1
      %p225 = por %p223, %p224
      %p226 = scmp.ne.s32.totalorder %s217, %s218
      %p227 = scmp.eq.s32.totalorder %s87, 0
      %p228 = por %p226, %p227
      %p229 = scmp.ne.s32.totalorder %s217, %s218
      %p230 = scmp.eq.s32.totalorder %s88, 1
      %p231 = por %p229, %p230
      %p233 = scmp.ne.s32.totalorder %s218, %s232
      %p234 = scmp.eq.s32.totalorder %s88, 0
      %p235 = por %p233, %p234
      %s237 = sadd.s32 %s236, 1
      %p240 = scmp.eq.s32.totalorder %s82, 1
      %p241 = scmp.ne.s32.totalorder %s236, %s238
      %p242 = scmp.eq.s32.totalorder %s82, 0
      %p243 = por %p241, %p242
      %p244 = scmp.ne.s32.totalorder %s236, %s238
      %p245 = scmp.eq.s32.totalorder %s87, 1
      %p246 = por %p244, %p245
      %p247 = scmp.ne.s32.totalorder %s238, %s239
      %p248 = scmp.eq.s32.totalorder %s87, 0
      %p249 = por %p247, %p248
      %p250 = scmp.ne.s32.totalorder %s238, %s239
      %p251 = scmp.eq.s32.totalorder %s88, 1
      %p252 = por %p250, %p251
      %p254 = scmp.ne.s32.totalorder %s239, %s253
      %p255 = scmp.eq.s32.totalorder %s88, 0
      %p256 = por %p254, %p255
      %s258 = sadd.s32 %s257, 1
      %p261 = scmp.eq.s32.totalorder %s82, 1
      %p262 = scmp.ne.s32.totalorder %s257, %s259
      %p263 = scmp.eq.s32.totalorder %s82, 0
      %p264 = por %p262, %p263
      %p265 = scmp.ne.s32.totalorder %s257, %s259
      %p266 = scmp.eq.s32.totalorder %s87, 1
      %p267 = por %p265, %p266
      %p268 = scmp.ne.s32.totalorder %s259, %s260
      %p269 = scmp.eq.s32.totalorder %s87, 0
      %p270 = por %p268, %p269
      %p271 = scmp.ne.s32.totalorder %s259, %s260
      %p272 = scmp.eq.s32.totalorder %s88, 1
      %p273 = por %p271, %p272
      %p275 = scmp.ne.s32.totalorder %s260, %s274
      %p276 = scmp.eq.s32.totalorder %s88, 0
      %p277 = por %p275, %p276
      %s279 = sadd.s32 %s278, 1
      %p282 = scmp.eq.s32.totalorder %s82, 1
      %p283 = scmp.ne.s32.totalorder %s278, %s280
      %p284 = scmp.eq.s32.totalorder %s82, 0
      %p285 = por %p283, %p284
      %p286 = scmp.ne.s32.totalorder %s278, %s280
      %p287 = scmp.eq.s32.totalorder %s87, 1
      %p288 = por %p286, %p287
      %p289 = scmp.ne.s32.totalorder %s280, %s281
      %p290 = scmp.eq.s32.totalorder %s87, 0
      %p291 = por %p289, %p290
      %p292 = scmp.ne.s32.totalorder %s280, %s281
      %p293 = scmp.eq.s32.totalorder %s88, 1
      %p294 = por %p292, %p293
      %p296 = scmp.ne.s32.totalorder %s281, %s295
      %p297 = scmp.eq.s32.totalorder %s88, 0
      %p298 = por %p296, %p297
      %s300 = sadd.s32 %s299, 1
      %p303 = scmp.eq.s32.totalorder %s82, 1
      %p304 = scmp.ne.s32.totalorder %s299, %s301
      %p305 = scmp.eq.s32.totalorder %s82, 0
      %p306 = por %p304, %p305
      %p307 = scmp.ne.s32.totalorder %s299, %s301
      %p308 = scmp.eq.s32.totalorder %s87, 1
      %p309 = por %p307, %p308
      %p310 = scmp.ne.s32.totalorder %s301, %s302
      %p311 = scmp.eq.s32.totalorder %s87, 0
      %p312 = por %p310, %p311
      %p313 = scmp.ne.s32.totalorder %s301, %s302
      %p314 = scmp.eq.s32.totalorder %s88, 1
      %p315 = por %p313, %p314
      %p317 = scmp.ne.s32.totalorder %s302, %s316
      %p318 = scmp.eq.s32.totalorder %s88, 0
      %p319 = por %p317, %p318
      %s321 = sadd.s32 %s320, 1
      %p324 = scmp.eq.s32.totalorder %s82, 1
      %p325 = scmp.ne.s32.totalorder %s320, %s322
      %p326 = scmp.eq.s32.totalorder %s82, 0
      %p327 = por %p325, %p326
      %p328 = scmp.ne.s32.totalorder %s320, %s322
      %p329 = scmp.eq.s32.totalorder %s87, 1
      %p330 = por %p328, %p329
      %p331 = scmp.ne.s32.totalorder %s322, %s323
      %p332 = scmp.eq.s32.totalorder %s87, 0
      %p333 = por %p331, %p332
      %p334 = scmp.ne.s32.totalorder %s322, %s323
      %p335 = scmp.eq.s32.totalorder %s88, 1
      %p336 = por %p334, %p335
      %p338 = scmp.ne.s32.totalorder %s323, %s337
      %p339 = scmp.eq.s32.totalorder %s88, 0
      %p340 = por %p338, %p339
      %s342 = sadd.s32 %s341, 1
      %p345 = scmp.eq.s32.totalorder %s82, 1
      %p346 = scmp.ne.s32.totalorder %s341, %s343
      %p347 = scmp.eq.s32.totalorder %s82, 0
      %p348 = por %p346, %p347
      %p349 = scmp.ne.s32.totalorder %s341, %s343
      %p350 = scmp.eq.s32.totalorder %s87, 1
      %p351 = por %p349, %p350
      %p352 = scmp.ne.s32.totalorder %s343, %s344
      %p353 = scmp.eq.s32.totalorder %s87, 0
      %p354 = por %p352, %p353
      %p355 = scmp.ne.s32.totalorder %s343, %s344
      %p356 = scmp.eq.s32.totalorder %s88, 1
      %p357 = por %p355, %p356
      %p359 = scmp.ne.s32.totalorder %s344, %s358
      %p360 = scmp.eq.s32.totalorder %s88, 0
      %p361 = por %p359, %p360
      %s363 = sadd.s32 %s362, 1
      %p366 = scmp.eq.s32.totalorder %s82, 1
      %p367 = scmp.ne.s32.totalorder %s362, %s364
      %p368 = scmp.eq.s32.totalorder %s82, 0
      %p369 = por %p367, %p368
      %p370 = scmp.ne.s32.totalorder %s362, %s364
      %p371 = scmp.eq.s32.totalorder %s87, 1
      %p372 = por %p370, %p371
      %p373 = scmp.ne.s32.totalorder %s364, %s365
      %p374 = scmp.eq.s32.totalorder %s87, 0
      %p375 = por %p373, %p374
      %p376 = scmp.ne.s32.totalorder %s364, %s365
      %p377 = scmp.eq.s32.totalorder %s88, 1
      %p378 = por %p376, %p377
      %p380 = scmp.ne.s32.totalorder %s365, %s379
      %p381 = scmp.eq.s32.totalorder %s88, 0
      %p382 = por %p380, %p381
      %s384 = sadd.s32 %s383, 1
      %p387 = scmp.eq.s32.totalorder %s82, 1
      %p388 = scmp.ne.s32.totalorder %s383, %s385
      %p389 = scmp.eq.s32.totalorder %s82, 0
      %p390 = por %p388, %p389
      %p391 = scmp.ne.s32.totalorder %s383, %s385
      %p392 = scmp.eq.s32.totalorder %s87, 1
      %p393 = por %p391, %p392
      %p394 = scmp.ne.s32.totalorder %s385, %s386
      %p395 = scmp.eq.s32.totalorder %s87, 0
      %p396 = por %p394, %p395
      %p397 = scmp.ne.s32.totalorder %s385, %s386
      %p398 = scmp.eq.s32.totalorder %s88, 1
      %p399 = por %p397, %p398
      %p401 = scmp.ne.s32.totalorder %s386, %s400
      %p402 = scmp.eq.s32.totalorder %s88, 0
      %p403 = por %p401, %p402
      %s405 = sadd.s32 %s404, 1
      %p408 = scmp.eq.s32.totalorder %s82, 1
      %p409 = scmp.ne.s32.totalorder %s404, %s406
      %p410 = scmp.eq.s32.totalorder %s82, 0
      %p411 = por %p409, %p410
      %p412 = scmp.ne.s32.totalorder %s404, %s406
      %p413 = scmp.eq.s32.totalorder %s87, 1
      %p414 = por %p412, %p413
      %p415 = scmp.ne.s32.totalorder %s406, %s407
      %p416 = scmp.eq.s32.totalorder %s87, 0
      %p417 = por %p415, %p416
      %p418 = scmp.ne.s32.totalorder %s406, %s407
      %p419 = scmp.eq.s32.totalorder %s88, 1
      %p420 = por %p418, %p419
      %p422 = scmp.ne.s32.totalorder %s407, %s421
      %p423 = scmp.eq.s32.totalorder %s88, 0
      %p424 = por %p422, %p423
      %s426 = sadd.s32 %s425, 1
      %p429 = scmp.eq.s32.totalorder %s82, 1
      %p430 = scmp.ne.s32.totalorder %s425, %s427
      %p431 = scmp.eq.s32.totalorder %s82, 0
      %p432 = por %p430, %p431
      %p433 = scmp.ne.s32.totalorder %s425, %s427
      %p434 = scmp.eq.s32.totalorder %s87, 1
      %p435 = por %p433, %p434
      %p436 = scmp.ne.s32.totalorder %s427, %s428
      %p437 = scmp.eq.s32.totalorder %s87, 0
      %p438 = por %p436, %p437
      %p439 = scmp.ne.s32.totalorder %s427, %s428
      %p440 = scmp.eq.s32.totalorder %s88, 1
      %p441 = por %p439, %p440
      %p443 = scmp.ne.s32.totalorder %s428, %s442
      %p444 = scmp.eq.s32.totalorder %s88, 0
      %p445 = por %p443, %p444
      %s447 = sadd.s32 %s446, 1
      %p450 = scmp.eq.s32.totalorder %s82, 1
      %p451 = scmp.ne.s32.totalorder %s446, %s448
      %p452 = scmp.eq.s32.totalorder %s82, 0
      %p453 = por %p451, %p452
      %p454 = scmp.ne.s32.totalorder %s446, %s448
      %p455 = scmp.eq.s32.totalorder %s87, 1
      %p456 = por %p454, %p455
      %p457 = scmp.ne.s32.totalorder %s448, %s449
      %p458 = scmp.eq.s32.totalorder %s87, 0
      %p459 = por %p457, %p458
      %p460 = scmp.ne.s32.totalorder %s448, %s449
      %p461 = scmp.eq.s32.totalorder %s88, 1
      %p462 = por %p460, %p461
      %p464 = scmp.ne.s32.totalorder %s449, %s463
      %p465 = scmp.eq.s32.totalorder %s88, 0
      %p466 = por %p464, %p465
      %s468 = sadd.s32 %s467, 1
      %p471 = scmp.eq.s32.totalorder %s82, 1
      %p472 = scmp.ne.s32.totalorder %s467, %s469
      %p473 = scmp.eq.s32.totalorder %s82, 0
      %p474 = por %p472, %p473
      %p475 = scmp.ne.s32.totalorder %s467, %s469
      %p476 = scmp.eq.s32.totalorder %s87, 1
      %p477 = por %p475, %p476
      %p478 = scmp.ne.s32.totalorder %s469, %s470
      %p479 = scmp.eq.s32.totalorder %s87, 0
      %p480 = por %p478, %p479
      %p481 = scmp.ne.s32.totalorder %s469, %s470
      %p482 = scmp.eq.s32.totalorder %s88, 1
      %p483 = por %p481, %p482
      %p485 = scmp.ne.s32.totalorder %s470, %s484
      %p486 = scmp.eq.s32.totalorder %s88, 0
      %p487 = por %p485, %p486
      %s489 = sadd.s32 %s488, 1
      %p492 = scmp.eq.s32.totalorder %s82, 1
      %p493 = scmp.ne.s32.totalorder %s488, %s490
      %p494 = scmp.eq.s32.totalorder %s82, 0
      %p495 = por %p493, %p494
      %p496 = scmp.ne.s32.totalorder %s488, %s490
      %p497 = scmp.eq.s32.totalorder %s87, 1
      %p498 = por %p496, %p497
      %p499 = scmp.ne.s32.totalorder %s490, %s491
      %p500 = scmp.eq.s32.totalorder %s87, 0
      %p501 = por %p499, %p500
      %p502 = scmp.ne.s32.totalorder %s490, %s491
      %p503 = scmp.eq.s32.totalorder %s88, 1
      %p504 = por %p502, %p503
      %p506 = scmp.ne.s32.totalorder %s491, %s505
      %p507 = scmp.eq.s32.totalorder %s88, 0
      %p508 = por %p506, %p507
      %s510 = sadd.s32 %s509, 1
      %p513 = scmp.eq.s32.totalorder %s82, 1
      %p514 = scmp.ne.s32.totalorder %s509, %s511
      %p515 = scmp.eq.s32.totalorder %s82, 0
      %p516 = por %p514, %p515
      %p517 = scmp.ne.s32.totalorder %s509, %s511
      %p518 = scmp.eq.s32.totalorder %s87, 1
      %p519 = por %p517, %p518
      %p520 = scmp.ne.s32.totalorder %s511, %s512
      %p521 = scmp.eq.s32.totalorder %s87, 0
      %p522 = por %p520, %p521
      %p523 = scmp.ne.s32.totalorder %s511, %s512
      %p524 = scmp.eq.s32.totalorder %s88, 1
      %p525 = por %p523, %p524
      %p527 = scmp.ne.s32.totalorder %s512, %s526
      %p528 = scmp.eq.s32.totalorder %s88, 0
      %p529 = por %p527, %p528
      %s531 = sadd.s32 %s530, 1
      %p534 = scmp.eq.s32.totalorder %s82, 1
      %p535 = scmp.ne.s32.totalorder %s530, %s532
      %p536 = scmp.eq.s32.totalorder %s82, 0
      %p537 = por %p535, %p536
      %p538 = scmp.ne.s32.totalorder %s530, %s532
      %p539 = scmp.eq.s32.totalorder %s87, 1
      %p540 = por %p538, %p539
      %p541 = scmp.ne.s32.totalorder %s532, %s533
      %p542 = scmp.eq.s32.totalorder %s87, 0
      %p543 = por %p541, %p542
      %p544 = scmp.ne.s32.totalorder %s532, %s533
      %p545 = scmp.eq.s32.totalorder %s88, 1
      %p546 = por %p544, %p545
      %p548 = scmp.ne.s32.totalorder %s533, %s547
      %p549 = scmp.eq.s32.totalorder %s88, 0
      %p550 = por %p548, %p549
      %s552 = sadd.s32 %s551, 1
      %p555 = scmp.eq.s32.totalorder %s82, 1
      %p556 = scmp.ne.s32.totalorder %s551, %s553
      %p557 = scmp.eq.s32.totalorder %s82, 0
      %p558 = por %p556, %p557
      %p559 = scmp.ne.s32.totalorder %s551, %s553
      %p560 = scmp.eq.s32.totalorder %s87, 1
      %p561 = por %p559, %p560
      %p562 = scmp.ne.s32.totalorder %s553, %s554
      %p563 = scmp.eq.s32.totalorder %s87, 0
      %p564 = por %p562, %p563
      %p565 = scmp.ne.s32.totalorder %s553, %s554
      %p566 = scmp.eq.s32.totalorder %s88, 1
      %p567 = por %p565, %p566
      %p569 = scmp.ne.s32.totalorder %s554, %s568
      %p570 = scmp.eq.s32.totalorder %s88, 0
      %p571 = por %p569, %p570
      %s573 = sadd.s32 %s572, 1
      %p576 = scmp.eq.s32.totalorder %s82, 1
      %p577 = scmp.ne.s32.totalorder %s572, %s574
      %p578 = scmp.eq.s32.totalorder %s82, 0
      %p579 = por %p577, %p578
      %p580 = scmp.ne.s32.totalorder %s572, %s574
      %p581 = scmp.eq.s32.totalorder %s87, 1
      %p582 = por %p580, %p581
      %p583 = scmp.ne.s32.totalorder %s574, %s575
      %p584 = scmp.eq.s32.totalorder %s87, 0
      %p585 = por %p583, %p584
      %p586 = scmp.ne.s32.totalorder %s574, %s575
      %p587 = scmp.eq.s32.totalorder %s88, 1
      %p588 = por %p586, %p587
      %p590 = scmp.ne.s32.totalorder %s575, %s589
      %p591 = scmp.eq.s32.totalorder %s88, 0
      %p592 = por %p590, %p591
      %s594 = sadd.s32 %s593, 1
      %p597 = scmp.eq.s32.totalorder %s82, 1
      %p598 = scmp.ne.s32.totalorder %s593, %s595
      %p599 = scmp.eq.s32.totalorder %s82, 0
      %p600 = por %p598, %p599
      %p601 = scmp.ne.s32.totalorder %s593, %s595
      %p602 = scmp.eq.s32.totalorder %s87, 1
      %p603 = por %p601, %p602
      %p604 = scmp.ne.s32.totalorder %s595, %s596
      %p605 = scmp.eq.s32.totalorder %s87, 0
      %p606 = por %p604, %p605
      %p607 = scmp.ne.s32.totalorder %s595, %s596
      %p608 = scmp.eq.s32.totalorder %s88, 1
      %p609 = por %p607, %p608
      %p611 = scmp.ne.s32.totalorder %s596, %s610
      %p612 = scmp.eq.s32.totalorder %s88, 0
      %p613 = por %p611, %p612
      %s615 = sadd.s32 %s614, 1
      %p618 = scmp.eq.s32.totalorder %s82, 1
      %p619 = scmp.ne.s32.totalorder %s614, %s616
      %p620 = scmp.eq.s32.totalorder %s82, 0
      %p621 = por %p619, %p620
      %p622 = scmp.ne.s32.totalorder %s614, %s616
      %p623 = scmp.eq.s32.totalorder %s87, 1
      %p624 = por %p622, %p623
      %p625 = scmp.ne.s32.totalorder %s616, %s617
      %p626 = scmp.eq.s32.totalorder %s87, 0
      %p627 = por %p625, %p626
      %p628 = scmp.ne.s32.totalorder %s616, %s617
      %p629 = scmp.eq.s32.totalorder %s88, 1
      %p630 = por %p628, %p629
      %p632 = scmp.ne.s32.totalorder %s617, %s631
      %p633 = scmp.eq.s32.totalorder %s88, 0
      %p634 = por %p632, %p633
      %s636 = sadd.s32 %s635, 1
      %p639 = scmp.eq.s32.totalorder %s82, 1
      %p640 = scmp.ne.s32.totalorder %s635, %s637
      %p641 = scmp.eq.s32.totalorder %s82, 0
      %p642 = por %p640, %p641
      %p643 = scmp.ne.s32.totalorder %s635, %s637
      %p644 = scmp.eq.s32.totalorder %s87, 1
      %p645 = por %p643, %p644
      %p646 = scmp.ne.s32.totalorder %s637, %s638
      %p647 = scmp.eq.s32.totalorder %s87, 0
      %p648 = por %p646, %p647
      %p649 = scmp.ne.s32.totalorder %s637, %s638
      %p650 = scmp.eq.s32.totalorder %s88, 1
      %p651 = por %p649, %p650
      %p653 = scmp.ne.s32.totalorder %s638, %s652
      %p654 = scmp.eq.s32.totalorder %s88, 0
      %p655 = por %p653, %p654
      %s657 = sadd.s32 %s656, 1
      %p660 = scmp.eq.s32.totalorder %s82, 1
      %p661 = scmp.ne.s32.totalorder %s656, %s658
      %p662 = scmp.eq.s32.totalorder %s82, 0
      %p663 = por %p661, %p662
      %p664 = scmp.ne.s32.totalorder %s656, %s658
      %p665 = scmp.eq.s32.totalorder %s87, 1
      %p666 = por %p664, %p665
      %p667 = scmp.ne.s32.totalorder %s658, %s659
      %p668 = scmp.eq.s32.totalorder %s87, 0
      %p669 = por %p667, %p668
      %p670 = scmp.ne.s32.totalorder %s658, %s659
      %p671 = scmp.eq.s32.totalorder %s88, 1
      %p672 = por %p670, %p671
      %p674 = scmp.ne.s32.totalorder %s659, %s673
      %p675 = scmp.eq.s32.totalorder %s88, 0
      %p676 = por %p674, %p675
      %s678 = sadd.s32 %s677, 1
      %p681 = scmp.eq.s32.totalorder %s82, 1
      %p682 = scmp.ne.s32.totalorder %s677, %s679
      %p683 = scmp.eq.s32.totalorder %s82, 0
      %p684 = por %p682, %p683
      %p685 = scmp.ne.s32.totalorder %s677, %s679
      %p686 = scmp.eq.s32.totalorder %s87, 1
      %p687 = por %p685, %p686
      %p688 = scmp.ne.s32.totalorder %s679, %s680
      %p689 = scmp.eq.s32.totalorder %s87, 0
      %p690 = por %p688, %p689
      %p691 = scmp.ne.s32.totalorder %s679, %s680
      %p692 = scmp.eq.s32.totalorder %s88, 1
      %p693 = por %p691, %p692
      %p695 = scmp.ne.s32.totalorder %s680, %s694
      %p696 = scmp.eq.s32.totalorder %s88, 0
      %p697 = por %p695, %p696
      %s699 = sadd.s32 %s698, 1
      %p702 = scmp.eq.s32.totalorder %s82, 1
      %p703 = scmp.ne.s32.totalorder %s698, %s700
      %p704 = scmp.eq.s32.totalorder %s82, 0
      %p705 = por %p703, %p704
      %p706 = scmp.ne.s32.totalorder %s698, %s700
      %p707 = scmp.eq.s32.totalorder %s87, 1
      %p708 = por %p706, %p707
      %p709 = scmp.ne.s32.totalorder %s700, %s701
      %p710 = scmp.eq.s32.totalorder %s87, 0
      %p711 = por %p709, %p710
      %p712 = scmp.ne.s32.totalorder %s700, %s701
      %p713 = scmp.eq.s32.totalorder %s88, 1
      %p714 = por %p712, %p713
      %p716 = scmp.ne.s32.totalorder %s701, %s715
      %p717 = scmp.eq.s32.totalorder %s88, 0
      %p718 = por %p716, %p717
      %s720 = sadd.s32 %s719, 1
      %p723 = scmp.eq.s32.totalorder %s82, 1
      %p724 = scmp.ne.s32.totalorder %s719, %s721
      %p725 = scmp.eq.s32.totalorder %s82, 0
      %p726 = por %p724, %p725
      %p727 = scmp.ne.s32.totalorder %s719, %s721
      %p728 = scmp.eq.s32.totalorder %s87, 1
      %p729 = por %p727, %p728
      %p730 = scmp.ne.s32.totalorder %s721, %s722
      %p731 = scmp.eq.s32.totalorder %s87, 0
      %p732 = por %p730, %p731
      %p733 = scmp.ne.s32.totalorder %s721, %s722
      %p734 = scmp.eq.s32.totalorder %s88, 1
      %p735 = por %p733, %p734
      %p737 = scmp.ne.s32.totalorder %s722, %s736
      %p738 = scmp.eq.s32.totalorder %s88, 0
      %p739 = por %p737, %p738
      %s741 = sadd.s32 %s740, 1
      %p744 = scmp.eq.s32.totalorder %s82, 1
      %p745 = scmp.ne.s32.totalorder %s740, %s742
      %p746 = scmp.eq.s32.totalorder %s82, 0
      %p747 = por %p745, %p746
      %p748 = scmp.ne.s32.totalorder %s740, %s742
      %p749 = scmp.eq.s32.totalorder %s87, 1
      %p750 = por %p748, %p749
      %p751 = scmp.ne.s32.totalorder %s742, %s743
      %p752 = scmp.eq.s32.totalorder %s87, 0
      %p753 = por %p751, %p752
      %p754 = scmp.ne.s32.totalorder %s742, %s743
      %p755 = scmp.eq.s32.totalorder %s88, 1
      %p756 = por %p754, %p755
      %p758 = scmp.ne.s32.totalorder %s743, %s757
      %p759 = scmp.eq.s32.totalorder %s88, 0
      %p760 = por %p758, %p759
      %s762 = sadd.s32 %s761, 1
      %p765 = scmp.eq.s32.totalorder %s82, 1
      %p766 = scmp.ne.s32.totalorder %s761, %s763
      %p767 = scmp.eq.s32.totalorder %s82, 0
      %p768 = por %p766, %p767
      %p769 = scmp.ne.s32.totalorder %s761, %s763
      %p770 = scmp.eq.s32.totalorder %s87, 1
      %p771 = por %p769, %p770
      %p772 = scmp.ne.s32.totalorder %s763, %s764
      %p773 = scmp.eq.s32.totalorder %s87, 0
      %p774 = por %p772, %p773
      %p775 = scmp.ne.s32.totalorder %s763, %s764
      %p776 = scmp.eq.s32.totalorder %s88, 1
      %p777 = por %p775, %p776
      %p779 = scmp.ne.s32.totalorder %s764, %s778
      %p780 = scmp.eq.s32.totalorder %s88, 0
      %p781 = por %p779, %p780
      %s783 = sadd.s32 %s782, 1
      %p786 = scmp.eq.s32.totalorder %s82, 1
      %p787 = scmp.ne.s32.totalorder %s782, %s784
      %p788 = scmp.eq.s32.totalorder %s82, 0
      %p789 = por %p787, %p788
      %p790 = scmp.ne.s32.totalorder %s782, %s784
      %p791 = scmp.eq.s32.totalorder %s87, 1
      %p792 = por %p790, %p791
      %p793 = scmp.ne.s32.totalorder %s784, %s785
      %p794 = scmp.eq.s32.totalorder %s87, 0
      %p795 = por %p793, %p794
      %p796 = scmp.ne.s32.totalorder %s784, %s785
      %p797 = scmp.eq.s32.totalorder %s88, 1
      %p798 = por %p796, %p797
      %p800 = scmp.ne.s32.totalorder %s785, %s799
      %p801 = scmp.eq.s32.totalorder %s88, 0
      %p802 = por %p800, %p801
      %s804 = sadd.s32 %s803, 1
      %p807 = scmp.eq.s32.totalorder %s82, 1
      %p808 = scmp.ne.s32.totalorder %s803, %s805
      %p809 = scmp.eq.s32.totalorder %s82, 0
      %p810 = por %p808, %p809
      %p811 = scmp.ne.s32.totalorder %s803, %s805
      %p812 = scmp.eq.s32.totalorder %s87, 1
      %p813 = por %p811, %p812
      %p814 = scmp.ne.s32.totalorder %s805, %s806
      %p815 = scmp.eq.s32.totalorder %s87, 0
      %p816 = por %p814, %p815
      %p817 = scmp.ne.s32.totalorder %s805, %s806
      %p818 = scmp.eq.s32.totalorder %s88, 1
      %p819 = por %p817, %p818
      %p821 = scmp.ne.s32.totalorder %s806, %s820
      %p822 = scmp.eq.s32.totalorder %s88, 0
      %p823 = por %p821, %p822
      %s825 = sadd.s32 %s824, 1
      %p828 = scmp.eq.s32.totalorder %s82, 1
      %p829 = scmp.ne.s32.totalorder %s824, %s826
      %p830 = scmp.eq.s32.totalorder %s82, 0
      %p831 = por %p829, %p830
      %p832 = scmp.ne.s32.totalorder %s824, %s826
      %p833 = scmp.eq.s32.totalorder %s87, 1
      %p834 = por %p832, %p833
      %p835 = scmp.ne.s32.totalorder %s826, %s827
      %p836 = scmp.eq.s32.totalorder %s87, 0
      %p837 = por %p835, %p836
      %p838 = scmp.ne.s32.totalorder %s826, %s827
      %p839 = scmp.eq.s32.totalorder %s88, 1
      %p840 = por %p838, %p839
      %p842 = scmp.ne.s32.totalorder %s827, %s841
      %p843 = scmp.eq.s32.totalorder %s88, 0
      %p844 = por %p842, %p843
      %s846 = sadd.s32 %s845, 1
      %p849 = scmp.eq.s32.totalorder %s82, 1
      %p850 = scmp.ne.s32.totalorder %s845, %s847
      %p851 = scmp.eq.s32.totalorder %s82, 0
      %p852 = por %p850, %p851
      %p853 = scmp.ne.s32.totalorder %s845, %s847
      %p854 = scmp.eq.s32.totalorder %s87, 1
      %p855 = por %p853, %p854
      %p856 = scmp.ne.s32.totalorder %s847, %s848
      %p857 = scmp.eq.s32.totalorder %s87, 0
      %p858 = por %p856, %p857
      %p859 = scmp.ne.s32.totalorder %s847, %s848
      %p860 = scmp.eq.s32.totalorder %s88, 1
      %p861 = por %p859, %p860
      %p863 = scmp.ne.s32.totalorder %s848, %s862
      %p864 = scmp.eq.s32.totalorder %s88, 0
      %p865 = por %p863, %p864
      %s867 = sadd.s32 %s866, 1
      %p870 = scmp.eq.s32.totalorder %s82, 1
      %p871 = scmp.ne.s32.totalorder %s866, %s868
      %p872 = scmp.eq.s32.totalorder %s82, 0
      %p873 = por %p871, %p872
      %p874 = scmp.ne.s32.totalorder %s866, %s868
      %p875 = scmp.eq.s32.totalorder %s87, 1
      %p876 = por %p874, %p875
      %p877 = scmp.ne.s32.totalorder %s868, %s869
      %p878 = scmp.eq.s32.totalorder %s87, 0
      %p879 = por %p877, %p878
      %p880 = scmp.ne.s32.totalorder %s868, %s869
      %p881 = scmp.eq.s32.totalorder %s88, 1
      %p882 = por %p880, %p881
      %p884 = scmp.ne.s32.totalorder %s869, %s883
      %p885 = scmp.eq.s32.totalorder %s88, 0
      %p886 = por %p884, %p885
      %s888 = sadd.s32 %s887, 1
      %p891 = scmp.eq.s32.totalorder %s82, 1
      %p892 = scmp.ne.s32.totalorder %s887, %s889
      %p893 = scmp.eq.s32.totalorder %s82, 0
      %p894 = por %p892, %p893
      %p895 = scmp.ne.s32.totalorder %s887, %s889
      %p896 = scmp.eq.s32.totalorder %s87, 1
      %p897 = por %p895, %p896
      %p898 = scmp.ne.s32.totalorder %s889, %s890
      %p899 = scmp.eq.s32.totalorder %s87, 0
      %p900 = por %p898, %p899
      %p901 = scmp.ne.s32.totalorder %s889, %s890
      %p902 = scmp.eq.s32.totalorder %s88, 1
      %p903 = por %p901, %p902
      %p905 = scmp.ne.s32.totalorder %s890, %s904
      %p906 = scmp.eq.s32.totalorder %s88, 0
      %p907 = por %p905, %p906
      %p908 = scmp.le.s32.totalorder 1, %s82
      %p909 = scmp.lt.s32.totalorder %s82, 3
      %p910 = pnand %p908, %p909
      %p911 = pneg %p910
      // Predicated region
      $region9: #{tpu_custom_call.1} parent=5 // pred_check
        _
      $region10: #{tpu_custom_call.1} parent=5 // pred_check_branch
        %913 = sbr.rel (%p910) target = $region12
      $region11: #{tpu_custom_call.1} parent=5 // pred_region
        %s914 = ssub.s32 %s82, 1
        // Predicated region
        $region13: #{tpu_custom_call.1} parent=11 // pred_check
          %p915 = pneg %p207
        $region14: #{tpu_custom_call.1} parent=11 // pred_check_branch
          %917 = sbr.rel (%p915) target = $region16
        $region15: #{tpu_custom_call.1} parent=11 // pred_region
          _
        $region16: #{tpu_custom_call.1} parent=11 // pred_fallthru
          _
        // Predicated region
        $region17: #{tpu_custom_call.1} parent=11 // pred_check
          %p918 = pneg %p228
        $region18: #{tpu_custom_call.1} parent=11 // pred_check_branch
          %920 = sbr.rel (%p918) target = $region20
        $region19: #{tpu_custom_call.1} parent=11 // pred_region
          _
        $region20: #{tpu_custom_call.1} parent=11 // pred_fallthru
          _
        // Predicated region
        $region21: #{tpu_custom_call.1} parent=11 // pred_check
          %p921 = pneg %p249
        $region22: #{tpu_custom_call.1} parent=11 // pred_check_branch
          %923 = sbr.rel (%p921) target = $region24
        $region23: #{tpu_custom_call.1} parent=11 // pred_region
          _
        $region24: #{tpu_custom_call.1} parent=11 // pred_fallthru
          _
        // Predicated region
        $region25: #{tpu_custom_call.1} parent=11 // pred_check
          %p924 = pneg %p270
        $region26: #{tpu_custom_call.1} parent=11 // pred_check_branch
          %926 = sbr.rel (%p924) target = $region28
        $region27: #{tpu_custom_call.1} parent=11 // pred_region
          _
        $region28: #{tpu_custom_call.1} parent=11 // pred_fallthru
          _
        // Predicated region
        $region29: #{tpu_custom_call.1} parent=11 // pred_check
          %p927 = pneg %p291
        $region30: #{tpu_custom_call.1} parent=11 // pred_check_branch
          %929 = sbr.rel (%p927) target = $region32
        $region31: #{tpu_custom_call.1} parent=11 // pred_region
          _
        $region32: #{tpu_custom_call.1} parent=11 // pred_fallthru
          _
        // Predicated region
        $region33: #{tpu_custom_call.1} parent=11 // pred_check
          %p930 = pneg %p312
        $region34: #{tpu_custom_call.1} parent=11 // pred_check_branch
          %932 = sbr.rel (%p930) target = $region36
        $region35: #{tpu_custom_call.1} parent=11 // pred_region
          _
        $region36: #{tpu_custom_call.1} parent=11 // pred_fallthru
          _
        // Predicated region
        $region37: #{tpu_custom_call.1} parent=11 // pred_check
          %p933 = pneg %p333
        $region38: #{tpu_custom_call.1} parent=11 // pred_check_branch
          %935 = sbr.rel (%p933) target = $region40
        $region39: #{tpu_custom_call.1} parent=11 // pred_region
          _
        $region40: #{tpu_custom_call.1} parent=11 // pred_fallthru
          _
        // Predicated region
        $region41: #{tpu_custom_call.1} parent=11 // pred_check
          %p936 = pneg %p354
        $region42: #{tpu_custom_call.1} parent=11 // pred_check_branch
          %938 = sbr.rel (%p936) target = $region44
        $region43: #{tpu_custom_call.1} parent=11 // pred_region
          _
        $region44: #{tpu_custom_call.1} parent=11 // pred_fallthru
          _
        // Predicated region
        $region45: #{tpu_custom_call.1} parent=11 // pred_check
          %p939 = pneg %p375
        $region46: #{tpu_custom_call.1} parent=11 // pred_check_branch
          %941 = sbr.rel (%p939) target = $region48
        $region47: #{tpu_custom_call.1} parent=11 // pred_region
          _
        $region48: #{tpu_custom_call.1} parent=11 // pred_fallthru
          _
        // Predicated region
        $region49: #{tpu_custom_call.1} parent=11 // pred_check
          %p942 = pneg %p396
        $region50: #{tpu_custom_call.1} parent=11 // pred_check_branch
          %944 = sbr.rel (%p942) target = $region52
        $region51: #{tpu_custom_call.1} parent=11 // pred_region
          _
        $region52: #{tpu_custom_call.1} parent=11 // pred_fallthru
          _
        // Predicated region
        $region53: #{tpu_custom_call.1} parent=11 // pred_check
          %p945 = pneg %p417
        $region54: #{tpu_custom_call.1} parent=11 // pred_check_branch
          %947 = sbr.rel (%p945) target = $region56
        $region55: #{tpu_custom_call.1} parent=11 // pred_region
          _
        $region56: #{tpu_custom_call.1} parent=11 // pred_fallthru
          _
        // Predicated region
        $region57: #{tpu_custom_call.1} parent=11 // pred_check
          %p948 = pneg %p438
        $region58: #{tpu_custom_call.1} parent=11 // pred_check_branch
          %950 = sbr.rel (%p948) target = $region60
        $region59: #{tpu_custom_call.1} parent=11 // pred_region
          _
        $region60: #{tpu_custom_call.1} parent=11 // pred_fallthru
          _
        // Predicated region
        $region61: #{tpu_custom_call.1} parent=11 // pred_check
          %p951 = pneg %p459
        $region62: #{tpu_custom_call.1} parent=11 // pred_check_branch
          %953 = sbr.rel (%p951) target = $region64
        $region63: #{tpu_custom_call.1} parent=11 // pred_region
          _
        $region64: #{tpu_custom_call.1} parent=11 // pred_fallthru
          _
        // Predicated region
        $region65: #{tpu_custom_call.1} parent=11 // pred_check
          %p954 = pneg %p480
        $region66: #{tpu_custom_call.1} parent=11 // pred_check_branch
          %956 = sbr.rel (%p954) target = $region68
        $region67: #{tpu_custom_call.1} parent=11 // pred_region
          _
        $region68: #{tpu_custom_call.1} parent=11 // pred_fallthru
          _
        // Predicated region
        $region69: #{tpu_custom_call.1} parent=11 // pred_check
          %p957 = pneg %p501
        $region70: #{tpu_custom_call.1} parent=11 // pred_check_branch
          %959 = sbr.rel (%p957) target = $region72
        $region71: #{tpu_custom_call.1} parent=11 // pred_region
          _
        $region72: #{tpu_custom_call.1} parent=11 // pred_fallthru
          _
        // Predicated region
        $region73: #{tpu_custom_call.1} parent=11 // pred_check
          %p960 = pneg %p522
        $region74: #{tpu_custom_call.1} parent=11 // pred_check_branch
          %962 = sbr.rel (%p960) target = $region76
        $region75: #{tpu_custom_call.1} parent=11 // pred_region
          _
        $region76: #{tpu_custom_call.1} parent=11 // pred_fallthru
          _
        // Predicated region
        $region77: #{tpu_custom_call.1} parent=11 // pred_check
          %p963 = pneg %p543
        $region78: #{tpu_custom_call.1} parent=11 // pred_check_branch
          %965 = sbr.rel (%p963) target = $region80
        $region79: #{tpu_custom_call.1} parent=11 // pred_region
          _
        $region80: #{tpu_custom_call.1} parent=11 // pred_fallthru
          _
        // Predicated region
        $region81: #{tpu_custom_call.1} parent=11 // pred_check
          %p966 = pneg %p564
        $region82: #{tpu_custom_call.1} parent=11 // pred_check_branch
          %968 = sbr.rel (%p966) target = $region84
        $region83: #{tpu_custom_call.1} parent=11 // pred_region
          _
        $region84: #{tpu_custom_call.1} parent=11 // pred_fallthru
          _
        // Predicated region
        $region85: #{tpu_custom_call.1} parent=11 // pred_check
          %p969 = pneg %p585
        $region86: #{tpu_custom_call.1} parent=11 // pred_check_branch
          %971 = sbr.rel (%p969) target = $region88
        $region87: #{tpu_custom_call.1} parent=11 // pred_region
          _
        $region88: #{tpu_custom_call.1} parent=11 // pred_fallthru
          _
        // Predicated region
        $region89: #{tpu_custom_call.1} parent=11 // pred_check
          %p972 = pneg %p606
        $region90: #{tpu_custom_call.1} parent=11 // pred_check_branch
          %974 = sbr.rel (%p972) target = $region92
        $region91: #{tpu_custom_call.1} parent=11 // pred_region
          _
        $region92: #{tpu_custom_call.1} parent=11 // pred_fallthru
          _
        // Predicated region
        $region93: #{tpu_custom_call.1} parent=11 // pred_check
          %p975 = pneg %p627
        $region94: #{tpu_custom_call.1} parent=11 // pred_check_branch
          %977 = sbr.rel (%p975) target = $region96
        $region95: #{tpu_custom_call.1} parent=11 // pred_region
          _
        $region96: #{tpu_custom_call.1} parent=11 // pred_fallthru
          _
        // Predicated region
        $region97: #{tpu_custom_call.1} parent=11 // pred_check
          %p978 = pneg %p648
        $region98: #{tpu_custom_call.1} parent=11 // pred_check_branch
          %980 = sbr.rel (%p978) target = $region100
        $region99: #{tpu_custom_call.1} parent=11 // pred_region
          _
        $region100: #{tpu_custom_call.1} parent=11 // pred_fallthru
          _
        // Predicated region
        $region101: #{tpu_custom_call.1} parent=11 // pred_check
          %p981 = pneg %p669
        $region102: #{tpu_custom_call.1} parent=11 // pred_check_branch
          %983 = sbr.rel (%p981) target = $region104
        $region103: #{tpu_custom_call.1} parent=11 // pred_region
          _
        $region104: #{tpu_custom_call.1} parent=11 // pred_fallthru
          _
        // Predicated region
        $region105: #{tpu_custom_call.1} parent=11 // pred_check
          %p984 = pneg %p690
        $region106: #{tpu_custom_call.1} parent=11 // pred_check_branch
          %986 = sbr.rel (%p984) target = $region108
        $region107: #{tpu_custom_call.1} parent=11 // pred_region
          _
        $region108: #{tpu_custom_call.1} parent=11 // pred_fallthru
          _
        // Predicated region
        $region109: #{tpu_custom_call.1} parent=11 // pred_check
          %p987 = pneg %p711
        $region110: #{tpu_custom_call.1} parent=11 // pred_check_branch
          %989 = sbr.rel (%p987) target = $region112
        $region111: #{tpu_custom_call.1} parent=11 // pred_region
          _
        $region112: #{tpu_custom_call.1} parent=11 // pred_fallthru
          _
        // Predicated region
        $region113: #{tpu_custom_call.1} parent=11 // pred_check
          %p990 = pneg %p732
        $region114: #{tpu_custom_call.1} parent=11 // pred_check_branch
          %992 = sbr.rel (%p990) target = $region116
        $region115: #{tpu_custom_call.1} parent=11 // pred_region
          _
        $region116: #{tpu_custom_call.1} parent=11 // pred_fallthru
          _
        // Predicated region
        $region117: #{tpu_custom_call.1} parent=11 // pred_check
          %p993 = pneg %p753
        $region118: #{tpu_custom_call.1} parent=11 // pred_check_branch
          %995 = sbr.rel (%p993) target = $region120
        $region119: #{tpu_custom_call.1} parent=11 // pred_region
          _
        $region120: #{tpu_custom_call.1} parent=11 // pred_fallthru
          _
        // Predicated region
        $region121: #{tpu_custom_call.1} parent=11 // pred_check
          %p996 = pneg %p774
        $region122: #{tpu_custom_call.1} parent=11 // pred_check_branch
          %998 = sbr.rel (%p996) target = $region124
        $region123: #{tpu_custom_call.1} parent=11 // pred_region
          _
        $region124: #{tpu_custom_call.1} parent=11 // pred_fallthru
          _
        // Predicated region
        $region125: #{tpu_custom_call.1} parent=11 // pred_check
          %p999 = pneg %p795
        $region126: #{tpu_custom_call.1} parent=11 // pred_check_branch
          %1001 = sbr.rel (%p999) target = $region128
        $region127: #{tpu_custom_call.1} parent=11 // pred_region
          _
        $region128: #{tpu_custom_call.1} parent=11 // pred_fallthru
          _
        // Predicated region
        $region129: #{tpu_custom_call.1} parent=11 // pred_check
          %p1002 = pneg %p816
        $region130: #{tpu_custom_call.1} parent=11 // pred_check_branch
          %1004 = sbr.rel (%p1002) target = $region132
        $region131: #{tpu_custom_call.1} parent=11 // pred_region
          _
        $region132: #{tpu_custom_call.1} parent=11 // pred_fallthru
          _
        // Predicated region
        $region133: #{tpu_custom_call.1} parent=11 // pred_check
          %p1005 = pneg %p837
        $region134: #{tpu_custom_call.1} parent=11 // pred_check_branch
          %1007 = sbr.rel (%p1005) target = $region136
        $region135: #{tpu_custom_call.1} parent=11 // pred_region
          _
        $region136: #{tpu_custom_call.1} parent=11 // pred_fallthru
          _
        // Predicated region
        $region137: #{tpu_custom_call.1} parent=11 // pred_check
          %p1008 = pneg %p858
        $region138: #{tpu_custom_call.1} parent=11 // pred_check_branch
          %1010 = sbr.rel (%p1008) target = $region140
        $region139: #{tpu_custom_call.1} parent=11 // pred_region
          _
        $region140: #{tpu_custom_call.1} parent=11 // pred_fallthru
          _
        // Predicated region
        $region141: #{tpu_custom_call.1} parent=11 // pred_check
          %p1011 = pneg %p879
        $region142: #{tpu_custom_call.1} parent=11 // pred_check_branch
          %1013 = sbr.rel (%p1011) target = $region144
        $region143: #{tpu_custom_call.1} parent=11 // pred_region
          _
        $region144: #{tpu_custom_call.1} parent=11 // pred_fallthru
          _
      $region12: #{tpu_custom_call.1} parent=5 // pred_fallthru
        _
      %p1014 = scmp.lt.s32.totalorder %s82, 2
      // Predicated region
      $region145: #{tpu_custom_call.1} parent=5 // pred_check
        %p1015 = pneg %p1014
      $region146: #{tpu_custom_call.1} parent=5 // pred_check_branch
        %1017 = sbr.rel (%p1015) target = $region148
      $region147: #{tpu_custom_call.1} parent=5 // pred_region
        // Predicated region
        $region149: #{tpu_custom_call.1} parent=147 // pred_check
          %p1018 = pneg %p102
        $region150: #{tpu_custom_call.1} parent=147 // pred_check_branch
          %1020 = sbr.rel (%p1018) target = $region152
        $region151: #{tpu_custom_call.1} parent=147 // pred_region
          %p1021 = scmp.lt.s32.totalorder %s82, 1
          %s1022 = scalar_select %p1021, %s82, 1
          %s1023 = smul.addr %s1022, 2
          %s1024 = smul.addr %s1023, 4
          %s1025 = scalar_lea.vmem %s1, %s1024
        $region152: #{tpu_custom_call.1} parent=147 // pred_fallthru
          _
        // Predicated region
        $region153: #{tpu_custom_call.1} parent=147 // pred_check
          %p1026 = pneg %p128
        $region154: #{tpu_custom_call.1} parent=147 // pred_check_branch
          %1028 = sbr.rel (%p1026) target = $region156
        $region155: #{tpu_custom_call.1} parent=147 // pred_region
          %p1029 = scmp.lt.s32.totalorder %s82, 1
          %s1030 = scalar_select %p1029, %s82, 1
          %s1031 = smul.addr %s1030, 2
          %s1032 = smul.addr %s1031, 8
          %s1033 = scalar_lea.vmem %s3, %s1032
        $region156: #{tpu_custom_call.1} parent=147 // pred_fallthru
          _
        // Predicated region
        $region157: #{tpu_custom_call.1} parent=147 // pred_check
          %p1034 = pneg %p154
        $region158: #{tpu_custom_call.1} parent=147 // pred_check_branch
          %1036 = sbr.rel (%p1034) target = $region160
        $region159: #{tpu_custom_call.1} parent=147 // pred_region
          %p1037 = scmp.lt.s32.totalorder %s82, 1
          %s1038 = scalar_select %p1037, %s82, 1
          %s1039 = smul.addr %s1038, 2
          %s1040 = smul.addr %s1039, 8
          %s1041 = scalar_lea.vmem %s5, %s1040
        $region160: #{tpu_custom_call.1} parent=147 // pred_fallthru
          _
        // Predicated region
        $region161: #{tpu_custom_call.1} parent=147 // pred_check
          %p1042 = pneg %p180
        $region162: #{tpu_custom_call.1} parent=147 // pred_check_branch
          %1044 = sbr.rel (%p1042) target = $region164
        $region163: #{tpu_custom_call.1} parent=147 // pred_region
          %p1045 = scmp.lt.s32.totalorder %s82, 1
          %s1046 = scalar_select %p1045, %s82, 1
          %s1047 = smul.addr %s1046, 8
          %s1048 = scalar_lea.vmem %s7, %s1047
        $region164: #{tpu_custom_call.1} parent=147 // pred_fallthru
          _
      $region148: #{tpu_custom_call.1} parent=5 // pred_fallthru
        _
      %p1049 = scmp.le.s32.totalorder 1, %s82
      %p1050 = scmp.lt.s32.totalorder %s82, 3
      %p1051 = pnand %p1049, %p1050
      %p1052 = pneg %p1051
      // Predicated region
      $region165: #{tpu_custom_call.1} parent=5 // pred_check
        _
      $region166: #{tpu_custom_call.1} parent=5 // pred_check_branch
        %1054 = sbr.rel (%p1051) target = $region168
      $region167: #{tpu_custom_call.1} parent=5 // pred_region
        %s1055 = ssub.s32 %s82, 1
        %p1056 = scmp.lt.s32.totalorder %s87, 1
        %s1057 = scalar_select %p1056, %s87, 1
        %s1058 = smul.addr %s1057, 2
        %s1059 = smul.addr %s1058, 4
        %s1060 = scalar_lea.vmem %s1, %s1059
        %p1061 = pneg %p108
        %p1062 = pneg %p105
        %p1063 = scmp.lt.s32.totalorder %s87, 1
        %s1064 = scalar_select %p1063, %s87, 1
        %s1065 = smul.addr %s1064, 2
        %s1066 = smul.addr %s1065, 8
        %s1067 = scalar_lea.vmem %s3, %s1066
        %p1068 = pneg %p134
        %p1069 = pneg %p131
        %p1070 = scmp.lt.s32.totalorder %s87, 1
        %s1071 = scalar_select %p1070, %s87, 1
        %s1072 = smul.addr %s1071, 2
        %s1073 = smul.addr %s1072, 8
        %s1074 = scalar_lea.vmem %s5, %s1073
        %p1075 = pneg %p160
        %p1076 = pneg %p157
        %p1077 = scmp.lt.s32.totalorder %s87, 1
        %s1078 = scalar_select %p1077, %s87, 1
        %s1079 = smul.addr %s1078, 8
        %s1080 = scalar_lea.vmem %s7, %s1079
        %p1081 = pneg %p186
        %p1082 = pneg %p183
        %p1083 = pneg %p207
        %p1084 = pneg %p204
        %p1085 = pneg %p228
        %p1086 = pneg %p225
        %p1087 = pneg %p249
        %p1088 = pneg %p246
        %p1089 = pneg %p270
        %p1090 = pneg %p267
        %p1091 = pneg %p291
        %p1092 = pneg %p288
        %p1093 = pneg %p312
        %p1094 = pneg %p309
        %p1095 = pneg %p333
        %p1096 = pneg %p330
        %p1097 = pneg %p354
        %p1098 = pneg %p351
        %p1099 = pneg %p375
        %p1100 = pneg %p372
        %p1101 = pneg %p396
        %p1102 = pneg %p393
        %p1103 = pneg %p417
        %p1104 = pneg %p414
        %p1105 = pneg %p438
        %p1106 = pneg %p435
        %p1107 = pneg %p459
        %p1108 = pneg %p456
        %p1109 = pneg %p480
        %p1110 = pneg %p477
        %p1111 = pneg %p501
        %p1112 = pneg %p498
        %p1113 = pneg %p522
        %p1114 = pneg %p519
        %p1115 = pneg %p543
        %p1116 = pneg %p540
        %p1117 = pneg %p564
        %p1118 = pneg %p561
        %p1119 = pneg %p585
        %p1120 = pneg %p582
        %p1121 = pneg %p606
        %p1122 = pneg %p603
        %p1123 = pneg %p627
        %p1124 = pneg %p624
        %p1125 = pneg %p648
        %p1126 = pneg %p645
        %p1127 = pneg %p669
        %p1128 = pneg %p666
        %p1129 = pneg %p690
        %p1130 = pneg %p687
        %p1131 = pneg %p711
        %p1132 = pneg %p708
        %p1133 = pneg %p732
        %p1134 = pneg %p729
        %p1135 = pneg %p753
        %p1136 = pneg %p750
        %p1137 = pneg %p774
        %p1138 = pneg %p771
        %p1139 = pneg %p795
        %p1140 = pneg %p792
        %p1141 = pneg %p816
        %p1142 = pneg %p813
        %p1143 = pneg %p837
        %p1144 = pneg %p834
        %p1145 = pneg %p858
        %p1146 = pneg %p855
        %p1147 = pneg %p879
        %p1148 = pneg %p876
        %p1149 = pneg %p900
        %p1150 = pneg %p897
        %p1151 = scmp.lt.s32.totalorder %s87, 1
        %s1152 = scalar_select %p1151, %s87, 1
        %s1153 = smul.addr %s1152, 2
        %s1154 = smul.addr %s1153, 4
        %s1155 = scalar_lea.vmem %s1, %s1154
        %p1156 = scmp.lt.s32.totalorder %s87, 1
        %s1157 = scalar_select %p1156, %s87, 1
        %s1158 = smul.addr %s1157, 2
        %s1159 = smul.addr %s1158, 8
        %s1160 = scalar_lea.vmem %s3, %s1159
        %p1161 = scmp.lt.s32.totalorder %s87, 1
        %s1162 = scalar_select %p1161, %s87, 1
        %s1163 = smul.addr %s1162, 2
        %s1164 = smul.addr %s1163, 8
        %s1165 = scalar_lea.vmem %s5, %s1164
        %p1166 = scmp.lt.s32.totalorder %s87, 1
        %s1167 = scalar_select %p1166, %s87, 1
        %s1168 = smul.addr %s1167, 8
        %s1169 = scalar_lea.vmem %s7, %s1168
        %v1171 = vld [vmem:[%s1155] sm:$0xf]
        %v1172 = vld [vmem:[%s1155 + $0x4] sm:$0xf]
        %v1173 = vld [vmem:[%s1160] sm:$0xff]
        %v1174 = vld [vmem:[%s1160 + $0x8] sm:$0xff]
        %v1175 = vld [vmem:[%s1165] sm:$0xff]
        %v1176 = vld [vmem:[%s1165 + $0x8] sm:$0xff]
        %v1177 = vld [vmem:[%s1169] sm:$0xff]
        %v1178 = vld [vmem:[%s9] sm:$0xff]
        %v1179 = vld [vmem:[%s9 + $0x8] sm:$0xff]
        %v1180 = vld [vmem:[%s11] sm:$0x1]
        %v1181 = vpack.c.bf16 %v1174, %v1173
        %v1184 = vunpack.c.l.b16 %v1171
        %v1185 = vunpack.c.l.b16 %v1172
        %v1186 = vpack.c.b16 %v1185, %v1184
        %vm1187 = vcmask 130048
        %v1189 = vsel %vm1187, %v1186, 0
        %1191 = vmatprep.subr.bf16.mxu0 0
        %1192 = vmatpush1.bf16.msra.mxu0 %v1181
        %1193 = vmatprep.subr.bf16.mxu0 0
        %1194 = vmatpush1.bf16.msra.mxu0 0
        %1195 = vmatprep.subr.bf16.mxu0 0
        %1196 = vmatpush1.bf16.msra.mxu0 0
        %1197 = vmatprep.subr.bf16.mxu0 0
        %1198 = vmatpush1.bf16.msra.mxu0 0
        %1199 = vmatprep.subr.bf16.mxu0 0
        %1200 = vmatpush1.bf16.msra.mxu0 0
        %1201 = vmatprep.subr.bf16.mxu0 0
        %1202 = vmatpush1.bf16.msra.mxu0 0
        %1203 = vmatprep.subr.bf16.mxu0 0
        %1204 = vmatpush1.bf16.msra.mxu0 0
        %1205 = vmatprep.subr.bf16.mxu0 0
        %1206 = vmatpush1.bf16.msra.mxu0 0
        %1207 = vmatprep.subr.bf16.mxu0 0
        %1208 = vmatpush1.bf16.msra.mxu0 0
        %1209 = vmatprep.subr.bf16.mxu0 0
        %1210 = vmatpush1.bf16.msra.mxu0 0
        %1211 = vmatprep.subr.bf16.mxu0 0
        %1212 = vmatpush1.bf16.msra.mxu0 0
        %1213 = vmatprep.subr.bf16.mxu0 0
        %1214 = vmatpush1.bf16.msra.mxu0 0
        %1215 = vmatprep.subr.bf16.mxu0 0
        %1216 = vmatpush1.bf16.msra.mxu0 0
        %1217 = vmatprep.subr.bf16.mxu0 0
        %1218 = vmatpush1.bf16.msra.mxu0 0
        %1219 = vmatprep.subr.bf16.mxu0 0
        %1220 = vmatpush1.bf16.msra.mxu0 0
        %1221 = vmatprep.subr.bf16.mxu0 0
        %1222 = vmatpush1.bf16.msra.mxu0 0
        %1223 = vmatprep.mubr.bf16.mxu0 0
        %1224 = vmatmul.mubr.bf16.gmra.mrb[0].mxu0 %v1189
        %v1225 = vpop.f32.mrb[0].mxu0
        %v1226 = vadd.f32 0.0, %v1225
        %v1227 = vpop.f32.mrb[0].mxu0
        %v1228 = vpop.f32.mrb[0].mxu0
        %v1229 = vadd.f32 0.0, %v1228
        %v1230 = vpop.f32.mrb[0].mxu0
        %1231 = vdwg.mxu0
        %v1233 = vlaneseq
        %v1234 = vshrl.u32 %v1233, 7
        %v1235 = vsub.s32 0, %v1234
        %v1236 = vrot.slane %v1180, %v1235
        %v1239 = vsel %vm1187, %v1226, 0
        %v1242 = vsel %vm1187, %v1229, 0
        %1244 = vmatprep.subr.mxu0 0.0
        %1245 = vmatpush1.msra.mxu0 %v1178
        %1246 = vmatprep.subr.mxu0 0.0
        %1247 = vmatpush1.msra.mxu0 %v1179
        %1248 = vmatprep.subr.mxu0 0.0
        %1249 = vmatpush1.msra.mxu0 0.0
        %1250 = vmatprep.subr.mxu0 0.0
        %1251 = vmatpush1.msra.mxu0 0.0
        %1252 = vmatprep.subr.mxu0 0.0
        %1253 = vmatpush1.msra.mxu0 0.0
        %1254 = vmatprep.subr.mxu0 0.0
        %1255 = vmatpush1.msra.mxu0 0.0
        %1256 = vmatprep.subr.mxu0 0.0
        %1257 = vmatpush1.msra.mxu0 0.0
        %1258 = vmatprep.subr.mxu0 0.0
        %1259 = vmatpush1.msra.mxu0 0.0
        %1260 = vmatprep.subr.mxu0 0.0
        %1261 = vmatpush1.msra.mxu0 0.0
        %1262 = vmatprep.subr.mxu0 0.0
        %1263 = vmatpush1.msra.mxu0 0.0
        %1264 = vmatprep.subr.mxu0 0.0
        %1265 = vmatpush1.msra.mxu0 0.0
        %1266 = vmatprep.subr.mxu0 0.0
        %1267 = vmatpush1.msra.mxu0 0.0
        %1268 = vmatprep.subr.mxu0 0.0
        %1269 = vmatpush1.msra.mxu0 0.0
        %1270 = vmatprep.subr.mxu0 0.0
        %1271 = vmatpush1.msra.mxu0 0.0
        %1272 = vmatprep.subr.mxu0 0.0
        %1273 = vmatpush1.msra.mxu0 0.0
        %1274 = vmatprep.subr.mxu0 0.0
        %1275 = vmatpush1.msra.mxu0 0.0
        %1276 = vmatprep.subr.mxu0 0.0
        %1277 = vmatpush1.msra.mxu0 0.0
        %1278 = vmatprep.subr.mxu0 0.0
        %1279 = vmatpush1.msra.mxu0 0.0
        %1280 = vmatprep.subr.mxu0 0.0
        %1281 = vmatpush1.msra.mxu0 0.0
        %1282 = vmatprep.subr.mxu0 0.0
        %1283 = vmatpush1.msra.mxu0 0.0
        %1284 = vmatprep.subr.mxu0 0.0
        %1285 = vmatpush1.msra.mxu0 0.0
        %1286 = vmatprep.subr.mxu0 0.0
        %1287 = vmatpush1.msra.mxu0 0.0
        %1288 = vmatprep.subr.mxu0 0.0
        %1289 = vmatpush1.msra.mxu0 0.0
        %1290 = vmatprep.subr.mxu0 0.0
        %1291 = vmatpush1.msra.mxu0 0.0
        %1292 = vmatprep.subr.mxu0 0.0
        %1293 = vmatpush1.msra.mxu0 0.0
        %1294 = vmatprep.subr.mxu0 0.0
        %1295 = vmatpush1.msra.mxu0 0.0
        %1296 = vmatprep.subr.mxu0 0.0
        %1297 = vmatpush1.msra.mxu0 0.0
        %1298 = vmatprep.subr.mxu0 0.0
        %1299 = vmatpush1.msra.mxu0 0.0
        %1300 = vmatprep.subr.mxu0 0.0
        %1301 = vmatpush1.msra.mxu0 0.0
        %1302 = vmatprep.subr.mxu0 0.0
        %1303 = vmatpush1.msra.mxu0 0.0
        %1304 = vmatprep.subr.mxu0 0.0
        %1305 = vmatpush1.msra.mxu0 0.0
        %1306 = vmatprep.subr.mxu0 0.0
        %1307 = vmatpush1.msra.mxu0 0.0
        %1308 = vmatprep.mubr.f32.mxu0 0.0
        %1309 = vmatmul.mubr.f32.gmra.mrb[0].mxu0 %v1239
        %v1310 = vpop.f32.mrb[0].mxu0
        %v1311 = vadd.f32 %v1236, %v1310
        %v1312 = vpop.f32.mrb[0].mxu0
        %1313 = vmatprep.mubr.f32.mxu0 0.0
        %1314 = vmatmul.mubr.f32.gmra.mrb[0].mxu0 %v1242
        %v1315 = vpop.f32.mrb[0].mxu0
        %v1316 = vadd.f32 %v1236, %v1315
        %v1317 = vpop.f32.mrb[0].mxu0
        %1318 = vdwg.mxu0
        %v1319 = vmax.f32 %v1311, 0.0
        %v1320 = vmax.f32 %v1316, 0.0
        %v1321 = vld [vmem:[%s21] sm:$0xff]
        %v1322 = vld [vmem:[%s21 + $0x8] sm:$0xff]
        %v1323 = vld [vmem:[%s21 + $0x10] sm:$0xff]
        %v1324 = vld [vmem:[%s21 + $0x18] sm:$0xff]
        %v1325 = vld [vmem:[%s23] sm:$0x1]
        %v1326 = vld [vmem:[%s25] sm:$0xff]
        %v1327 = vld [vmem:[%s27] sm:$0x1]
        %v1329 = vlaneseq
        %v1330 = vshrl.u32 %v1329, 7
        %v1331 = vsub.s32 0, %v1330
        %v1332 = vrot.slane %v1325, %v1331
        %vm1334 = vcmask 261120
        %v1336 = vsel %vm1334, %v1319, 0
        %v1339 = vsel %vm1334, %v1320, 0
        %1341 = vmatprep.subr.mxu0 0.0
        %1342 = vmatpush1.msra.mxu0 %v1321
        %1343 = vmatprep.subr.mxu0 0.0
        %1344 = vmatpush1.msra.mxu0 %v1322
        %1345 = vmatprep.subr.mxu0 0.0
        %1346 = vmatpush1.msra.mxu0 %v1323
        %1347 = vmatprep.subr.mxu0 0.0
        %1348 = vmatpush1.msra.mxu0 %v1324
        %1349 = vmatprep.subr.mxu0 0.0
        %1350 = vmatpush1.msra.mxu0 0.0
        %1351 = vmatprep.subr.mxu0 0.0
        %1352 = vmatpush1.msra.mxu0 0.0
        %1353 = vmatprep.subr.mxu0 0.0
        %1354 = vmatpush1.msra.mxu0 0.0
        %1355 = vmatprep.subr.mxu0 0.0
        %1356 = vmatpush1.msra.mxu0 0.0
        %1357 = vmatprep.subr.mxu0 0.0
        %1358 = vmatpush1.msra.mxu0 0.0
        %1359 = vmatprep.subr.mxu0 0.0
        %1360 = vmatpush1.msra.mxu0 0.0
        %1361 = vmatprep.subr.mxu0 0.0
        %1362 = vmatpush1.msra.mxu0 0.0
        %1363 = vmatprep.subr.mxu0 0.0
        %1364 = vmatpush1.msra.mxu0 0.0
        %1365 = vmatprep.subr.mxu0 0.0
        %1366 = vmatpush1.msra.mxu0 0.0
        %1367 = vmatprep.subr.mxu0 0.0
        %1368 = vmatpush1.msra.mxu0 0.0
        %1369 = vmatprep.subr.mxu0 0.0
        %1370 = vmatpush1.msra.mxu0 0.0
        %1371 = vmatprep.subr.mxu0 0.0
        %1372 = vmatpush1.msra.mxu0 0.0
        %1373 = vmatprep.subr.mxu0 0.0
        %1374 = vmatpush1.msra.mxu0 0.0
        %1375 = vmatprep.subr.mxu0 0.0
        %1376 = vmatpush1.msra.mxu0 0.0
        %1377 = vmatprep.subr.mxu0 0.0
        %1378 = vmatpush1.msra.mxu0 0.0
        %1379 = vmatprep.subr.mxu0 0.0
        %1380 = vmatpush1.msra.mxu0 0.0
        %1381 = vmatprep.subr.mxu0 0.0
        %1382 = vmatpush1.msra.mxu0 0.0
        %1383 = vmatprep.subr.mxu0 0.0
        %1384 = vmatpush1.msra.mxu0 0.0
        %1385 = vmatprep.subr.mxu0 0.0
        %1386 = vmatpush1.msra.mxu0 0.0
        %1387 = vmatprep.subr.mxu0 0.0
        %1388 = vmatpush1.msra.mxu0 0.0
        %1389 = vmatprep.subr.mxu0 0.0
        %1390 = vmatpush1.msra.mxu0 0.0
        %1391 = vmatprep.subr.mxu0 0.0
        %1392 = vmatpush1.msra.mxu0 0.0
        %1393 = vmatprep.subr.mxu0 0.0
        %1394 = vmatpush1.msra.mxu0 0.0
        %1395 = vmatprep.subr.mxu0 0.0
        %1396 = vmatpush1.msra.mxu0 0.0
        %1397 = vmatprep.subr.mxu0 0.0
        %1398 = vmatpush1.msra.mxu0 0.0
        %1399 = vmatprep.subr.mxu0 0.0
        %1400 = vmatpush1.msra.mxu0 0.0
        %1401 = vmatprep.subr.mxu0 0.0
        %1402 = vmatpush1.msra.mxu0 0.0
        %1403 = vmatprep.subr.mxu0 0.0
        %1404 = vmatpush1.msra.mxu0 0.0
        %1405 = vmatprep.mubr.f32.mxu0 0.0
        %1406 = vmatmul.mubr.f32.gmra.mrb[0].mxu0 %v1336
        %v1407 = vpop.f32.mrb[0].mxu0
        %v1408 = vadd.f32 %v1332, %v1407
        %v1409 = vpop.f32.mrb[0].mxu0
        %1410 = vmatprep.mubr.f32.mxu0 0.0
        %1411 = vmatmul.mubr.f32.gmra.mrb[0].mxu0 %v1339
        %v1412 = vpop.f32.mrb[0].mxu0
        %v1413 = vadd.f32 %v1332, %v1412
        %v1414 = vpop.f32.mrb[0].mxu0
        %1415 = vdwg.mxu0
        %v1416 = vmax.f32 %v1408, 0.0
        %v1417 = vmax.f32 %v1413, 0.0
        %v1419 = vlaneseq
        %v1420 = vshrl.u32 %v1419, 7
        %v1421 = vsub.s32 0, %v1420
        %v1422 = vrot.slane %v1327, %v1421
        %vm1424 = vcmask 64512
        %v1426 = vsel %vm1424, %v1416, 0
        %v1429 = vsel %vm1424, %v1417, 0
        %1431 = vmatprep.subr.mxu0 0.0
        %1432 = vmatpush1.msra.mxu0 %v1326
        %1433 = vmatprep.subr.mxu0 0.0
        %1434 = vmatpush1.msra.mxu0 0.0
        %1435 = vmatprep.subr.mxu0 0.0
        %1436 = vmatpush1.msra.mxu0 0.0
        %1437 = vmatprep.subr.mxu0 0.0
        %1438 = vmatpush1.msra.mxu0 0.0
        %1439 = vmatprep.subr.mxu0 0.0
        %1440 = vmatpush1.msra.mxu0 0.0
        %1441 = vmatprep.subr.mxu0 0.0
        %1442 = vmatpush1.msra.mxu0 0.0
        %1443 = vmatprep.subr.mxu0 0.0
        %1444 = vmatpush1.msra.mxu0 0.0
        %1445 = vmatprep.subr.mxu0 0.0
        %1446 = vmatpush1.msra.mxu0 0.0
        %1447 = vmatprep.subr.mxu0 0.0
        %1448 = vmatpush1.msra.mxu0 0.0
        %1449 = vmatprep.subr.mxu0 0.0
        %1450 = vmatpush1.msra.mxu0 0.0
        %1451 = vmatprep.subr.mxu0 0.0
        %1452 = vmatpush1.msra.mxu0 0.0
        %1453 = vmatprep.subr.mxu0 0.0
        %1454 = vmatpush1.msra.mxu0 0.0
        %1455 = vmatprep.subr.mxu0 0.0
        %1456 = vmatpush1.msra.mxu0 0.0
        %1457 = vmatprep.subr.mxu0 0.0
        %1458 = vmatpush1.msra.mxu0 0.0
        %1459 = vmatprep.subr.mxu0 0.0
        %1460 = vmatpush1.msra.mxu0 0.0
        %1461 = vmatprep.subr.mxu0 0.0
        %1462 = vmatpush1.msra.mxu0 0.0
        %1463 = vmatprep.subr.mxu0 0.0
        %1464 = vmatpush1.msra.mxu0 0.0
        %1465 = vmatprep.subr.mxu0 0.0
        %1466 = vmatpush1.msra.mxu0 0.0
        %1467 = vmatprep.subr.mxu0 0.0
        %1468 = vmatpush1.msra.mxu0 0.0
        %1469 = vmatprep.subr.mxu0 0.0
        %1470 = vmatpush1.msra.mxu0 0.0
        %1471 = vmatprep.subr.mxu0 0.0
        %1472 = vmatpush1.msra.mxu0 0.0
        %1473 = vmatprep.subr.mxu0 0.0
        %1474 = vmatpush1.msra.mxu0 0.0
        %1475 = vmatprep.subr.mxu0 0.0
        %1476 = vmatpush1.msra.mxu0 0.0
        %1477 = vmatprep.subr.mxu0 0.0
        %1478 = vmatpush1.msra.mxu0 0.0
        %1479 = vmatprep.subr.mxu0 0.0
        %1480 = vmatpush1.msra.mxu0 0.0
        %1481 = vmatprep.subr.mxu0 0.0
        %1482 = vmatpush1.msra.mxu0 0.0
        %1483 = vmatprep.subr.mxu0 0.0
        %1484 = vmatpush1.msra.mxu0 0.0
        %1485 = vmatprep.subr.mxu0 0.0
        %1486 = vmatpush1.msra.mxu0 0.0
        %1487 = vmatprep.subr.mxu0 0.0
        %1488 = vmatpush1.msra.mxu0 0.0
        %1489 = vmatprep.subr.mxu0 0.0
        %1490 = vmatpush1.msra.mxu0 0.0
        %1491 = vmatprep.subr.mxu0 0.0
        %1492 = vmatpush1.msra.mxu0 0.0
        %1493 = vmatprep.subr.mxu0 0.0
        %1494 = vmatpush1.msra.mxu0 0.0
        %1495 = vmatprep.mubr.f32.mxu0 0.0
        %1496 = vmatmul.mubr.f32.gmra.mrb[0].mxu0 %v1426
        %v1497 = vpop.f32.mrb[0].mxu0
        %v1498 = vadd.f32 %v1422, %v1497
        %v1499 = vpop.f32.mrb[0].mxu0
        %1500 = vmatprep.mubr.f32.mxu0 0.0
        %1501 = vmatmul.mubr.f32.gmra.mrb[0].mxu0 %v1429
        %v1502 = vpop.f32.mrb[0].mxu0
        %v1503 = vadd.f32 %v1422, %v1502
        %v1504 = vpop.f32.mrb[0].mxu0
        %1505 = vdwg.mxu0
        %v1506 = vtanh.pop %v1498
        %v1507 = vtanh.pop %v1503
        %v1508 = vmul.f32 %v1319, %v1506
        %v1509 = vmul.f32 %v1320, %v1507
        %1510 = vxpose.xlu0.b32.start [1/16] %v1175, 128
        %1511 = vxpose.xlu0.b32.cont [2/16] %v1176, 128
        %1512 = vxpose.xlu0.b32.cont [3/16] 0.0, 128
        %1513 = vxpose.xlu0.b32.cont [4/16] 0.0, 128
        %1514 = vxpose.xlu0.b32.cont [5/16] 0.0, 128
        %1515 = vxpose.xlu0.b32.cont [6/16] 0.0, 128
        %1516 = vxpose.xlu0.b32.cont [7/16] 0.0, 128
        %1517 = vxpose.xlu0.b32.cont [8/16] 0.0, 128
        %1518 = vxpose.xlu0.b32.cont [9/16] 0.0, 128
        %1519 = vxpose.xlu0.b32.cont [10/16] 0.0, 128
        %1520 = vxpose.xlu0.b32.cont [11/16] 0.0, 128
        %1521 = vxpose.xlu0.b32.cont [12/16] 0.0, 128
        %1522 = vxpose.xlu0.b32.cont [13/16] 0.0, 128
        %1523 = vxpose.xlu0.b32.cont [14/16] 0.0, 128
        %1524 = vxpose.xlu0.b32.cont [15/16] 0.0, 128
        %1525 = vxpose.xlu0.b32.end [16/16] 0.0, 128
        %v1526 = vpop.trf.xlu0
        %v1527 = vpop.trf.xlu0
        %v1528 = vpop.trf.xlu0
        %v1529 = vpop.trf.xlu0
        %v1530 = vpop.trf.xlu0
        %v1531 = vpop.trf.xlu0
        %v1532 = vpop.trf.xlu0
        %v1533 = vpop.trf.xlu0
        %v1534 = vpop.trf.xlu0
        %v1535 = vpop.trf.xlu0
        %v1536 = vpop.trf.xlu0
        %v1537 = vpop.trf.xlu0
        %v1538 = vpop.trf.xlu0
        %v1539 = vpop.trf.xlu0
        %v1540 = vpop.trf.xlu0
        %v1541 = vpop.trf.xlu0
        %v1543 = vsel %vm1187, %v1526, 0
        %1545 = vmatprep.subr.mxu0 0.0
        %1546 = vmatpush1.msra.mxu0 %v1508
        %1547 = vmatprep.subr.mxu0 0.0
        %1548 = vmatpush1.msra.mxu0 %v1509
        %1549 = vmatprep.subr.mxu0 0.0
        %1550 = vmatpush1.msra.mxu0 0.0
        %1551 = vmatprep.subr.mxu0 0.0
        %1552 = vmatpush1.msra.mxu0 0.0
        %1553 = vmatprep.subr.mxu0 0.0
        %1554 = vmatpush1.msra.mxu0 0.0
        %1555 = vmatprep.subr.mxu0 0.0
        %1556 = vmatpush1.msra.mxu0 0.0
        %1557 = vmatprep.subr.mxu0 0.0
        %1558 = vmatpush1.msra.mxu0 0.0
        %1559 = vmatprep.subr.mxu0 0.0
        %1560 = vmatpush1.msra.mxu0 0.0
        %1561 = vmatprep.subr.mxu0 0.0
        %1562 = vmatpush1.msra.mxu0 0.0
        %1563 = vmatprep.subr.mxu0 0.0
        %1564 = vmatpush1.msra.mxu0 0.0
        %1565 = vmatprep.subr.mxu0 0.0
        %1566 = vmatpush1.msra.mxu0 0.0
        %1567 = vmatprep.subr.mxu0 0.0
        %1568 = vmatpush1.msra.mxu0 0.0
        %1569 = vmatprep.subr.mxu0 0.0
        %1570 = vmatpush1.msra.mxu0 0.0
        %1571 = vmatprep.subr.mxu0 0.0
        %1572 = vmatpush1.msra.mxu0 0.0
        %1573 = vmatprep.subr.mxu0 0.0
        %1574 = vmatpush1.msra.mxu0 0.0
        %1575 = vmatprep.subr.mxu0 0.0
        %1576 = vmatpush1.msra.mxu0 0.0
        %1577 = vmatprep.subr.mxu0 0.0
        %1578 = vmatpush1.msra.mxu0 0.0
        %1579 = vmatprep.subr.mxu0 0.0
        %1580 = vmatpush1.msra.mxu0 0.0
        %1581 = vmatprep.subr.mxu0 0.0
        %1582 = vmatpush1.msra.mxu0 0.0
        %1583 = vmatprep.subr.mxu0 0.0
        %1584 = vmatpush1.msra.mxu0 0.0
        %1585 = vmatprep.subr.mxu0 0.0
        %1586 = vmatpush1.msra.mxu0 0.0
        %1587 = vmatprep.subr.mxu0 0.0
        %1588 = vmatpush1.msra.mxu0 0.0
        %1589 = vmatprep.subr.mxu0 0.0
        %1590 = vmatpush1.msra.mxu0 0.0
        %1591 = vmatprep.subr.mxu0 0.0
        %1592 = vmatpush1.msra.mxu0 0.0
        %1593 = vmatprep.subr.mxu0 0.0
        %1594 = vmatpush1.msra.mxu0 0.0
        %1595 = vmatprep.subr.mxu0 0.0
        %1596 = vmatpush1.msra.mxu0 0.0
        %1597 = vmatprep.subr.mxu0 0.0
        %1598 = vmatpush1.msra.mxu0 0.0
        %1599 = vmatprep.subr.mxu0 0.0
        %1600 = vmatpush1.msra.mxu0 0.0
        %1601 = vmatprep.subr.mxu0 0.0
        %1602 = vmatpush1.msra.mxu0 0.0
        %1603 = vmatprep.subr.mxu0 0.0
        %1604 = vmatpush1.msra.mxu0 0.0
        %1605 = vmatprep.subr.mxu0 0.0
        %1606 = vmatpush1.msra.mxu0 0.0
        %1607 = vmatprep.subr.mxu0 0.0
        %1608 = vmatpush1.msra.mxu0 0.0
        %1609 = vmatprep.mubr.f32.mxu0 0.0
        %1610 = vmatmul.mubr.f32.gmra.mrb[0].mxu0 %v1543
        %v1611 = vpop.f32.mrb[0].mxu0
        %v1612 = vadd.f32 0.0, %v1611
        %v1613 = vpop.f32.mrb[0].mxu0
        %1614 = vdwg.mxu0
        %1616 = vset.pattern.permute.xlu0 0
        %1617 = vperm.xlu0 %1616, %v1177
        %v1618 = vpop.permute.xlu0 %1617
        %v1620 = vmul.f32 %v1612, %v1618
        %v1621 = vtanh.pop %v1620
        %v1623 = vsel %vm1424, %v1175, 0
        %v1626 = vsel %vm1424, %v1176, 0
        %1628 = vmatprep.subr.mxu0 0.0
        %1629 = vmatpush1.msra.mxu0 %v1621
        %1630 = vmatprep.subr.mxu0 0.0
        %1631 = vmatpush1.msra.mxu0 0.0
        %1632 = vmatprep.subr.mxu0 0.0
        %1633 = vmatpush1.msra.mxu0 0.0
        %1634 = vmatprep.subr.mxu0 0.0
        %1635 = vmatpush1.msra.mxu0 0.0
        %1636 = vmatprep.subr.mxu0 0.0
        %1637 = vmatpush1.msra.mxu0 0.0
        %1638 = vmatprep.subr.mxu0 0.0
        %1639 = vmatpush1.msra.mxu0 0.0
        %1640 = vmatprep.subr.mxu0 0.0
        %1641 = vmatpush1.msra.mxu0 0.0
        %1642 = vmatprep.subr.mxu0 0.0
        %1643 = vmatpush1.msra.mxu0 0.0
        %1644 = vmatprep.subr.mxu0 0.0
        %1645 = vmatpush1.msra.mxu0 0.0
        %1646 = vmatprep.subr.mxu0 0.0
        %1647 = vmatpush1.msra.mxu0 0.0
        %1648 = vmatprep.subr.mxu0 0.0
        %1649 = vmatpush1.msra.mxu0 0.0
        %1650 = vmatprep.subr.mxu0 0.0
        %1651 = vmatpush1.msra.mxu0 0.0
        %1652 = vmatprep.subr.mxu0 0.0
        %1653 = vmatpush1.msra.mxu0 0.0
        %1654 = vmatprep.subr.mxu0 0.0
        %1655 = vmatpush1.msra.mxu0 0.0
        %1656 = vmatprep.subr.mxu0 0.0
        %1657 = vmatpush1.msra.mxu0 0.0
        %1658 = vmatprep.subr.mxu0 0.0
        %1659 = vmatpush1.msra.mxu0 0.0
        %1660 = vmatprep.subr.mxu0 0.0
        %1661 = vmatpush1.msra.mxu0 0.0
        %1662 = vmatprep.subr.mxu0 0.0
        %1663 = vmatpush1.msra.mxu0 0.0
        %1664 = vmatprep.subr.mxu0 0.0
        %1665 = vmatpush1.msra.mxu0 0.0
        %1666 = vmatprep.subr.mxu0 0.0
        %1667 = vmatpush1.msra.mxu0 0.0
        %1668 = vmatprep.subr.mxu0 0.0
        %1669 = vmatpush1.msra.mxu0 0.0
        %1670 = vmatprep.subr.mxu0 0.0
        %1671 = vmatpush1.msra.mxu0 0.0
        %1672 = vmatprep.subr.mxu0 0.0
        %1673 = vmatpush1.msra.mxu0 0.0
        %1674 = vmatprep.subr.mxu0 0.0
        %1675 = vmatpush1.msra.mxu0 0.0
        %1676 = vmatprep.subr.mxu0 0.0
        %1677 = vmatpush1.msra.mxu0 0.0
        %1678 = vmatprep.subr.mxu0 0.0
        %1679 = vmatpush1.msra.mxu0 0.0
        %1680 = vmatprep.subr.mxu0 0.0
        %1681 = vmatpush1.msra.mxu0 0.0
        %1682 = vmatprep.subr.mxu0 0.0
        %1683 = vmatpush1.msra.mxu0 0.0
        %1684 = vmatprep.subr.mxu0 0.0
        %1685 = vmatpush1.msra.mxu0 0.0
        %1686 = vmatprep.subr.mxu0 0.0
        %1687 = vmatpush1.msra.mxu0 0.0
        %1688 = vmatprep.subr.mxu0 0.0
        %1689 = vmatpush1.msra.mxu0 0.0
        %1690 = vmatprep.subr.mxu0 0.0
        %1691 = vmatpush1.msra.mxu0 0.0
        %1692 = vmatprep.mubr.f32.mxu0 0.0
        %1693 = vmatmul.mubr.f32.gmra.mrb[0].mxu0 %v1623
        %v1694 = vpop.f32.mrb[0].mxu0
        %v1695 = vadd.f32 0.0, %v1694
        %v1696 = vpop.f32.mrb[0].mxu0
        %1697 = vmatprep.mubr.f32.mxu0 0.0
        %1698 = vmatmul.mubr.f32.gmra.mrb[0].mxu0 %v1626
        %v1699 = vpop.f32.mrb[0].mxu0
        %v1700 = vadd.f32 0.0, %v1699
        %v1701 = vpop.f32.mrb[0].mxu0
        %1702 = vdwg.mxu0
        %v1703 = vmul.f32 %v1319, %v1695
        %v1704 = vmul.f32 %v1320, %v1700
        %v1705 = vsel %vm1334, %v1703, 0.0
        %1706 = vadd.xlane.f32.xlu0 %v1705
        %v1707 = vpop.xlane.xlu0 %1706
        %v1708 = vsel %vm1334, %v1704, 0.0
        %1709 = vadd.xlane.f32.xlu0 %v1708
        %v1710 = vpop.xlane.xlu0 %1709
        %v1711 = vxor.u32 %v1707, 2147483648
        %v1712 = vxor.u32 %v1710, 2147483648
        %v1713 = vmul.f32 %v1711, 1.442695
        %v1714 = vpow.pop %v1713
        %v1715 = vmul.f32 %v1712, 1.442695
        %v1716 = vpow.pop %v1715
        %v1717 = vadd.f32 %v1714, 1.0
        %v1718 = vadd.f32 %v1716, 1.0
        %v1719 = vrcp.pop %v1717
        %v1720 = vmul.f32 1.0, %v1719
        %v1721 = vrcp.pop %v1718
        %v1722 = vmul.f32 1.0, %v1721
        %v1723 = vmul.f32 %v1720, %v1319
        %v1724 = vmul.f32 %v1722, %v1320
        %1725 = vmatprep.subr.mxu0 0.0
        %1726 = vmatpush1.msra.mxu0 %v1723
        %1727 = vmatprep.subr.mxu0 0.0
        %1728 = vmatpush1.msra.mxu0 %v1724
        %1729 = vmatprep.subr.mxu0 0.0
        %1730 = vmatpush1.msra.mxu0 0.0
        %1731 = vmatprep.subr.mxu0 0.0
        %1732 = vmatpush1.msra.mxu0 0.0
        %1733 = vmatprep.subr.mxu0 0.0
        %1734 = vmatpush1.msra.mxu0 0.0
        %1735 = vmatprep.subr.mxu0 0.0
        %1736 = vmatpush1.msra.mxu0 0.0
        %1737 = vmatprep.subr.mxu0 0.0
        %1738 = vmatpush1.msra.mxu0 0.0
        %1739 = vmatprep.subr.mxu0 0.0
        %1740 = vmatpush1.msra.mxu0 0.0
        %1741 = vmatprep.subr.mxu0 0.0
        %1742 = vmatpush1.msra.mxu0 0.0
        %1743 = vmatprep.subr.mxu0 0.0
        %1744 = vmatpush1.msra.mxu0 0.0
        %1745 = vmatprep.subr.mxu0 0.0
        %1746 = vmatpush1.msra.mxu0 0.0
        %1747 = vmatprep.subr.mxu0 0.0
        %1748 = vmatpush1.msra.mxu0 0.0
        %1749 = vmatprep.subr.mxu0 0.0
        %1750 = vmatpush1.msra.mxu0 0.0
        %1751 = vmatprep.subr.mxu0 0.0
        %1752 = vmatpush1.msra.mxu0 0.0
        %1753 = vmatprep.subr.mxu0 0.0
        %1754 = vmatpush1.msra.mxu0 0.0
        %1755 = vmatprep.subr.mxu0 0.0
        %1756 = vmatpush1.msra.mxu0 0.0
        %1757 = vmatprep.subr.mxu0 0.0
        %1758 = vmatpush1.msra.mxu0 0.0
        %1759 = vmatprep.subr.mxu0 0.0
        %1760 = vmatpush1.msra.mxu0 0.0
        %1761 = vmatprep.subr.mxu0 0.0
        %1762 = vmatpush1.msra.mxu0 0.0
        %1763 = vmatprep.subr.mxu0 0.0
        %1764 = vmatpush1.msra.mxu0 0.0
        %1765 = vmatprep.subr.mxu0 0.0
        %1766 = vmatpush1.msra.mxu0 0.0
        %1767 = vmatprep.subr.mxu0 0.0
        %1768 = vmatpush1.msra.mxu0 0.0
        %1769 = vmatprep.subr.mxu0 0.0
        %1770 = vmatpush1.msra.mxu0 0.0
        %1771 = vmatprep.subr.mxu0 0.0
        %1772 = vmatpush1.msra.mxu0 0.0
        %1773 = vmatprep.subr.mxu0 0.0
        %1774 = vmatpush1.msra.mxu0 0.0
        %1775 = vmatprep.subr.mxu0 0.0
        %1776 = vmatpush1.msra.mxu0 0.0
        %1777 = vmatprep.subr.mxu0 0.0
        %1778 = vmatpush1.msra.mxu0 0.0
        %1779 = vmatprep.subr.mxu0 0.0
        %1780 = vmatpush1.msra.mxu0 0.0
        %1781 = vmatprep.subr.mxu0 0.0
        %1782 = vmatpush1.msra.mxu0 0.0
        %1783 = vmatprep.subr.mxu0 0.0
        %1784 = vmatpush1.msra.mxu0 0.0
        %1785 = vmatprep.subr.mxu0 0.0
        %1786 = vmatpush1.msra.mxu0 0.0
        %1787 = vmatprep.subr.mxu0 0.0
        %1788 = vmatpush1.msra.mxu0 0.0
        %1789 = vmatprep.mubr.f32.mxu0 0.0
        %1790 = vmatmul.mubr.f32.gmra.mrb[0].mxu0 %v1543
        %v1791 = vpop.f32.mrb[0].mxu0
        %v1792 = vadd.f32 0.0, %v1791
        %v1793 = vpop.f32.mrb[0].mxu0
        %1794 = vdwg.mxu0
        %s1795 = smul.u32 %s87, 8
        %s1796 = scalar_lea.vmem [#allocation2], %s1795
        %1797 = vst.msk [vmem:[%s1796] sm:$0xff] %vm1334, %v1792
        %v1798 = vld [vmem:[%s13] sm:$0xff]
        %v1799 = vld [vmem:[%s13 + $0x8] sm:$0xff]
        %v1800 = vld [vmem:[%s13 + $0x10] sm:$0xff]
        %v1801 = vld [vmem:[%s13 + $0x18] sm:$0xff]
        %v1802 = vld [vmem:[%s15] sm:$0x1]
        %1803 = vmatprep.subr.mxu0 0.0
        %1804 = vmatpush1.msra.mxu0 %v1798
        %1805 = vmatprep.subr.mxu0 0.0
        %1806 = vmatpush1.msra.mxu0 %v1799
        %1807 = vmatprep.subr.mxu0 0.0
        %1808 = vmatpush1.msra.mxu0 %v1800
        %1809 = vmatprep.subr.mxu0 0.0
        %1810 = vmatpush1.msra.mxu0 %v1801
        %1811 = vmatprep.subr.mxu0 0.0
        %1812 = vmatpush1.msra.mxu0 0.0
        %1813 = vmatprep.subr.mxu0 0.0
        %1814 = vmatpush1.msra.mxu0 0.0
        %1815 = vmatprep.subr.mxu0 0.0
        %1816 = vmatpush1.msra.mxu0 0.0
        %1817 = vmatprep.subr.mxu0 0.0
        %1818 = vmatpush1.msra.mxu0 0.0
        %1819 = vmatprep.subr.mxu0 0.0
        %1820 = vmatpush1.msra.mxu0 0.0
        %1821 = vmatprep.subr.mxu0 0.0
        %1822 = vmatpush1.msra.mxu0 0.0
        %1823 = vmatprep.subr.mxu0 0.0
        %1824 = vmatpush1.msra.mxu0 0.0
        %1825 = vmatprep.subr.mxu0 0.0
        %1826 = vmatpush1.msra.mxu0 0.0
        %1827 = vmatprep.subr.mxu0 0.0
        %1828 = vmatpush1.msra.mxu0 0.0
        %1829 = vmatprep.subr.mxu0 0.0
        %1830 = vmatpush1.msra.mxu0 0.0
        %1831 = vmatprep.subr.mxu0 0.0
        %1832 = vmatpush1.msra.mxu0 0.0
        %1833 = vmatprep.subr.mxu0 0.0
        %1834 = vmatpush1.msra.mxu0 0.0
        %1835 = vmatprep.subr.mxu0 0.0
        %1836 = vmatpush1.msra.mxu0 0.0
        %1837 = vmatprep.subr.mxu0 0.0
        %1838 = vmatpush1.msra.mxu0 0.0
        %1839 = vmatprep.subr.mxu0 0.0
        %1840 = vmatpush1.msra.mxu0 0.0
        %1841 = vmatprep.subr.mxu0 0.0
        %1842 = vmatpush1.msra.mxu0 0.0
        %1843 = vmatprep.subr.mxu0 0.0
        %1844 = vmatpush1.msra.mxu0 0.0
        %1845 = vmatprep.subr.mxu0 0.0
        %1846 = vmatpush1.msra.mxu0 0.0
        %1847 = vmatprep.subr.mxu0 0.0
        %1848 = vmatpush1.msra.mxu0 0.0
        %1849 = vmatprep.subr.mxu0 0.0
        %1850 = vmatpush1.msra.mxu0 0.0
        %1851 = vmatprep.subr.mxu0 0.0
        %1852 = vmatpush1.msra.mxu0 0.0
        %1853 = vmatprep.subr.mxu0 0.0
        %1854 = vmatpush1.msra.mxu0 0.0
        %1855 = vmatprep.subr.mxu0 0.0
        %1856 = vmatpush1.msra.mxu0 0.0
        %1857 = vmatprep.subr.mxu0 0.0
        %1858 = vmatpush1.msra.mxu0 0.0
        %1859 = vmatprep.subr.mxu0 0.0
        %1860 = vmatpush1.msra.mxu0 0.0
        %1861 = vmatprep.subr.mxu0 0.0
        %1862 = vmatpush1.msra.mxu0 0.0
        %1863 = vmatprep.subr.mxu0 0.0
        %1864 = vmatpush1.msra.mxu0 0.0
        %1865 = vmatprep.subr.mxu0 0.0
        %1866 = vmatpush1.msra.mxu0 0.0
        %1867 = vmatprep.mubr.f32.mxu0 0.0
        %1868 = vmatmul.mubr.f32.gmra.mrb[0].mxu0 %v1336
        %v1869 = vpop.f32.mrb[0].mxu0
        %v1870 = vadd.f32 0.0, %v1869
        %v1871 = vpop.f32.mrb[0].mxu0
        %1872 = vmatprep.mubr.f32.mxu0 0.0
        %1873 = vmatmul.mubr.f32.gmra.mrb[0].mxu0 %v1339
        %v1874 = vpop.f32.mrb[0].mxu0
        %v1875 = vadd.f32 0.0, %v1874
        %v1876 = vpop.f32.mrb[0].mxu0
        %1877 = vdwg.mxu0
        %v1878 = vpack.c.bf16 %v1875, %v1870
        %v1880 = vlaneseq
        %v1881 = vshrl.u32 %v1880, 7
        %v1882 = vsub.s32 0, %v1881
        %v1883 = vrot.slane %v1802, %v1882
        %1885 = vmatprep.subr.bf16.mxu0 0
        %1886 = vmatpush1.bf16.msra.mxu0 %v1878
        %1887 = vmatprep.subr.bf16.mxu0 0
        %1888 = vmatpush1.bf16.msra.mxu0 0
        %1889 = vmatprep.subr.bf16.mxu0 0
        %1890 = vmatpush1.bf16.msra.mxu0 0
        %1891 = vmatprep.subr.bf16.mxu0 0
        %1892 = vmatpush1.bf16.msra.mxu0 0
        %1893 = vmatprep.subr.bf16.mxu0 0
        %1894 = vmatpush1.bf16.msra.mxu0 0
        %1895 = vmatprep.subr.bf16.mxu0 0
        %1896 = vmatpush1.bf16.msra.mxu0 0
        %1897 = vmatprep.subr.bf16.mxu0 0
        %1898 = vmatpush1.bf16.msra.mxu0 0
        %1899 = vmatprep.subr.bf16.mxu0 0
        %1900 = vmatpush1.bf16.msra.mxu0 0
        %1901 = vmatprep.subr.bf16.mxu0 0
        %1902 = vmatpush1.bf16.msra.mxu0 0
        %1903 = vmatprep.subr.bf16.mxu0 0
        %1904 = vmatpush1.bf16.msra.mxu0 0
        %1905 = vmatprep.subr.bf16.mxu0 0
        %1906 = vmatpush1.bf16.msra.mxu0 0
        %1907 = vmatprep.subr.bf16.mxu0 0
        %1908 = vmatpush1.bf16.msra.mxu0 0
        %1909 = vmatprep.subr.bf16.mxu0 0
        %1910 = vmatpush1.bf16.msra.mxu0 0
        %1911 = vmatprep.subr.bf16.mxu0 0
        %1912 = vmatpush1.bf16.msra.mxu0 0
        %1913 = vmatprep.subr.bf16.mxu0 0
        %1914 = vmatpush1.bf16.msra.mxu0 0
        %1915 = vmatprep.subr.bf16.mxu0 0
        %1916 = vmatpush1.bf16.msra.mxu0 0
        %1917 = vmatprep.mubr.bf16.mxu0 0
        %1918 = vmatmul.mubr.bf16.gmra.mrb[0].mxu0 %v1189
        %v1919 = vpop.f32.mrb[0].mxu0
        %v1920 = vadd.f32 %v1883, %v1919
        %v1921 = vpop.f32.mrb[0].mxu0
        %v1922 = vpop.f32.mrb[0].mxu0
        %v1923 = vadd.f32 %v1883, %v1922
        %v1924 = vpop.f32.mrb[0].mxu0
        %1925 = vdwg.mxu0
        %v1926 = vmax.f32 %v1920, 0.0
        %v1927 = vmax.f32 %v1923, 0.0
        %v1928 = vld [vmem:[%s29] sm:$0xff]
        %v1929 = vld [vmem:[%s29 + $0x8] sm:$0xff]
        %v1930 = vld [vmem:[%s31] sm:$0x1]
        %v1931 = vld [vmem:[%s33] sm:$0xf]
        %v1932 = vld [vmem:[%s35] sm:$0x1]
        %v1934 = vlaneseq
        %v1935 = vshrl.u32 %v1934, 7
        %v1936 = vsub.s32 0, %v1935
        %v1937 = vrot.slane %v1930, %v1936
        %v1940 = vsel %vm1187, %v1926, 0
        %v1943 = vsel %vm1187, %v1927, 0
        %1945 = vmatprep.subr.mxu0 0.0
        %1946 = vmatpush1.msra.mxu0 %v1928
        %1947 = vmatprep.subr.mxu0 0.0
        %1948 = vmatpush1.msra.mxu0 %v1929
        %1949 = vmatprep.subr.mxu0 0.0
        %1950 = vmatpush1.msra.mxu0 0.0
        %1951 = vmatprep.subr.mxu0 0.0
        %1952 = vmatpush1.msra.mxu0 0.0
        %1953 = vmatprep.subr.mxu0 0.0
        %1954 = vmatpush1.msra.mxu0 0.0
        %1955 = vmatprep.subr.mxu0 0.0
        %1956 = vmatpush1.msra.mxu0 0.0
        %1957 = vmatprep.subr.mxu0 0.0
        %1958 = vmatpush1.msra.mxu0 0.0
        %1959 = vmatprep.subr.mxu0 0.0
        %1960 = vmatpush1.msra.mxu0 0.0
        %1961 = vmatprep.subr.mxu0 0.0
        %1962 = vmatpush1.msra.mxu0 0.0
        %1963 = vmatprep.subr.mxu0 0.0
        %1964 = vmatpush1.msra.mxu0 0.0
        %1965 = vmatprep.subr.mxu0 0.0
        %1966 = vmatpush1.msra.mxu0 0.0
        %1967 = vmatprep.subr.mxu0 0.0
        %1968 = vmatpush1.msra.mxu0 0.0
        %1969 = vmatprep.subr.mxu0 0.0
        %1970 = vmatpush1.msra.mxu0 0.0
        %1971 = vmatprep.subr.mxu0 0.0
        %1972 = vmatpush1.msra.mxu0 0.0
        %1973 = vmatprep.subr.mxu0 0.0
        %1974 = vmatpush1.msra.mxu0 0.0
        %1975 = vmatprep.subr.mxu0 0.0
        %1976 = vmatpush1.msra.mxu0 0.0
        %1977 = vmatprep.subr.mxu0 0.0
        %1978 = vmatpush1.msra.mxu0 0.0
        %1979 = vmatprep.subr.mxu0 0.0
        %1980 = vmatpush1.msra.mxu0 0.0
        %1981 = vmatprep.subr.mxu0 0.0
        %1982 = vmatpush1.msra.mxu0 0.0
        %1983 = vmatprep.subr.mxu0 0.0
        %1984 = vmatpush1.msra.mxu0 0.0
        %1985 = vmatprep.subr.mxu0 0.0
        %1986 = vmatpush1.msra.mxu0 0.0
        %1987 = vmatprep.subr.mxu0 0.0
        %1988 = vmatpush1.msra.mxu0 0.0
        %1989 = vmatprep.subr.mxu0 0.0
        %1990 = vmatpush1.msra.mxu0 0.0
        %1991 = vmatprep.subr.mxu0 0.0
        %1992 = vmatpush1.msra.mxu0 0.0
        %1993 = vmatprep.subr.mxu0 0.0
        %1994 = vmatpush1.msra.mxu0 0.0
        %1995 = vmatprep.subr.mxu0 0.0
        %1996 = vmatpush1.msra.mxu0 0.0
        %1997 = vmatprep.subr.mxu0 0.0
        %1998 = vmatpush1.msra.mxu0 0.0
        %1999 = vmatprep.subr.mxu0 0.0
        %2000 = vmatpush1.msra.mxu0 0.0
        %2001 = vmatprep.subr.mxu0 0.0
        %2002 = vmatpush1.msra.mxu0 0.0
        %2003 = vmatprep.subr.mxu0 0.0
        %2004 = vmatpush1.msra.mxu0 0.0
        %2005 = vmatprep.subr.mxu0 0.0
        %2006 = vmatpush1.msra.mxu0 0.0
        %2007 = vmatprep.subr.mxu0 0.0
        %2008 = vmatpush1.msra.mxu0 0.0
        %2009 = vmatprep.mubr.f32.mxu0 0.0
        %2010 = vmatmul.mubr.f32.gmra.mrb[0].mxu0 %v1940
        %v2011 = vpop.f32.mrb[0].mxu0
        %v2012 = vadd.f32 %v1937, %v2011
        %v2013 = vpop.f32.mrb[0].mxu0
        %2014 = vmatprep.mubr.f32.mxu0 0.0
        %2015 = vmatmul.mubr.f32.gmra.mrb[0].mxu0 %v1943
        %v2016 = vpop.f32.mrb[0].mxu0
        %v2017 = vadd.f32 %v1937, %v2016
        %v2018 = vpop.f32.mrb[0].mxu0
        %2019 = vdwg.mxu0
        %v2020 = vmax.f32 %v2012, 0.0
        %v2021 = vmax.f32 %v2017, 0.0
        %v2023 = vlaneseq
        %v2024 = vshrl.u32 %v2023, 7
        %v2025 = vsub.s32 0, %v2024
        %v2026 = vrot.slane %v1932, %v2025
        %vm2028 = vcmask 31744
        %v2030 = vsel %vm2028, %v2020, 0
        %v2033 = vsel %vm2028, %v2021, 0
        %vm2035 = vcmask 1043456
        %v2037 = vsel %vm2035, %v1931, 0
        %2039 = vmatprep.subr.mxu0 0.0
        %2040 = vmatpush1.msra.mxu0 %v2037
        %2041 = vmatprep.subr.mxu0 0.0
        %2042 = vmatpush1.msra.mxu0 0.0
        %2043 = vmatprep.subr.mxu0 0.0
        %2044 = vmatpush1.msra.mxu0 0.0
        %2045 = vmatprep.subr.mxu0 0.0
        %2046 = vmatpush1.msra.mxu0 0.0
        %2047 = vmatprep.subr.mxu0 0.0
        %2048 = vmatpush1.msra.mxu0 0.0
        %2049 = vmatprep.subr.mxu0 0.0
        %2050 = vmatpush1.msra.mxu0 0.0
        %2051 = vmatprep.subr.mxu0 0.0
        %2052 = vmatpush1.msra.mxu0 0.0
        %2053 = vmatprep.subr.mxu0 0.0
        %2054 = vmatpush1.msra.mxu0 0.0
        %2055 = vmatprep.subr.mxu0 0.0
        %2056 = vmatpush1.msra.mxu0 0.0
        %2057 = vmatprep.subr.mxu0 0.0
        %2058 = vmatpush1.msra.mxu0 0.0
        %2059 = vmatprep.subr.mxu0 0.0
        %2060 = vmatpush1.msra.mxu0 0.0
        %2061 = vmatprep.subr.mxu0 0.0
        %2062 = vmatpush1.msra.mxu0 0.0
        %2063 = vmatprep.subr.mxu0 0.0
        %2064 = vmatpush1.msra.mxu0 0.0
        %2065 = vmatprep.subr.mxu0 0.0
        %2066 = vmatpush1.msra.mxu0 0.0
        %2067 = vmatprep.subr.mxu0 0.0
        %2068 = vmatpush1.msra.mxu0 0.0
        %2069 = vmatprep.subr.mxu0 0.0
        %2070 = vmatpush1.msra.mxu0 0.0
        %2071 = vmatprep.subr.mxu0 0.0
        %2072 = vmatpush1.msra.mxu0 0.0
        %2073 = vmatprep.subr.mxu0 0.0
        %2074 = vmatpush1.msra.mxu0 0.0
        %2075 = vmatprep.subr.mxu0 0.0
        %2076 = vmatpush1.msra.mxu0 0.0
        %2077 = vmatprep.subr.mxu0 0.0
        %2078 = vmatpush1.msra.mxu0 0.0
        %2079 = vmatprep.subr.mxu0 0.0
        %2080 = vmatpush1.msra.mxu0 0.0
        %2081 = vmatprep.subr.mxu0 0.0
        %2082 = vmatpush1.msra.mxu0 0.0
        %2083 = vmatprep.subr.mxu0 0.0
        %2084 = vmatpush1.msra.mxu0 0.0
        %2085 = vmatprep.subr.mxu0 0.0
        %2086 = vmatpush1.msra.mxu0 0.0
        %2087 = vmatprep.subr.mxu0 0.0
        %2088 = vmatpush1.msra.mxu0 0.0
        %2089 = vmatprep.subr.mxu0 0.0
        %2090 = vmatpush1.msra.mxu0 0.0
        %2091 = vmatprep.subr.mxu0 0.0
        %2092 = vmatpush1.msra.mxu0 0.0
        %2093 = vmatprep.subr.mxu0 0.0
        %2094 = vmatpush1.msra.mxu0 0.0
        %2095 = vmatprep.subr.mxu0 0.0
        %2096 = vmatpush1.msra.mxu0 0.0
        %2097 = vmatprep.subr.mxu0 0.0
        %2098 = vmatpush1.msra.mxu0 0.0
        %2099 = vmatprep.subr.mxu0 0.0
        %2100 = vmatpush1.msra.mxu0 0.0
        %2101 = vmatprep.subr.mxu0 0.0
        %2102 = vmatpush1.msra.mxu0 0.0
        %2103 = vmatprep.mubr.f32.mxu0 0.0
        %2104 = vmatmul.mubr.f32.gmra.mrb[0].mxu0 %v2030
        %v2105 = vpop.f32.mrb[0].mxu0
        %v2106 = vadd.f32 %v2026, %v2105
        %v2107 = vpop.f32.mrb[0].mxu0
        %2108 = vmatprep.mubr.f32.mxu0 0.0
        %2109 = vmatmul.mubr.f32.gmra.mrb[0].mxu0 %v2033
        %v2110 = vpop.f32.mrb[0].mxu0
        %v2111 = vadd.f32 %v2026, %v2110
        %v2112 = vpop.f32.mrb[0].mxu0
        %2113 = vdwg.mxu0
        %v2114 = vtanh.pop %v2106
        %v2115 = vtanh.pop %v2111
        %v2116 = vmul.f32 %v1926, %v2114
        %v2117 = vmul.f32 %v1927, %v2115
        %2118 = vmatprep.subr.mxu0 0.0
        %2119 = vmatpush1.msra.mxu0 %v2116
        %2120 = vmatprep.subr.mxu0 0.0
        %2121 = vmatpush1.msra.mxu0 %v2117
        %2122 = vmatprep.subr.mxu0 0.0
        %2123 = vmatpush1.msra.mxu0 0.0
        %2124 = vmatprep.subr.mxu0 0.0
        %2125 = vmatpush1.msra.mxu0 0.0
        %2126 = vmatprep.subr.mxu0 0.0
        %2127 = vmatpush1.msra.mxu0 0.0
        %2128 = vmatprep.subr.mxu0 0.0
        %2129 = vmatpush1.msra.mxu0 0.0
        %2130 = vmatprep.subr.mxu0 0.0
        %2131 = vmatpush1.msra.mxu0 0.0
        %2132 = vmatprep.subr.mxu0 0.0
        %2133 = vmatpush1.msra.mxu0 0.0
        %2134 = vmatprep.subr.mxu0 0.0
        %2135 = vmatpush1.msra.mxu0 0.0
        %2136 = vmatprep.subr.mxu0 0.0
        %2137 = vmatpush1.msra.mxu0 0.0
        %2138 = vmatprep.subr.mxu0 0.0
        %2139 = vmatpush1.msra.mxu0 0.0
        %2140 = vmatprep.subr.mxu0 0.0
        %2141 = vmatpush1.msra.mxu0 0.0
        %2142 = vmatprep.subr.mxu0 0.0
        %2143 = vmatpush1.msra.mxu0 0.0
        %2144 = vmatprep.subr.mxu0 0.0
        %2145 = vmatpush1.msra.mxu0 0.0
        %2146 = vmatprep.subr.mxu0 0.0
        %2147 = vmatpush1.msra.mxu0 0.0
        %2148 = vmatprep.subr.mxu0 0.0
        %2149 = vmatpush1.msra.mxu0 0.0
        %2150 = vmatprep.subr.mxu0 0.0
        %2151 = vmatpush1.msra.mxu0 0.0
        %2152 = vmatprep.subr.mxu0 0.0
        %2153 = vmatpush1.msra.mxu0 0.0
        %2154 = vmatprep.subr.mxu0 0.0
        %2155 = vmatpush1.msra.mxu0 0.0
        %2156 = vmatprep.subr.mxu0 0.0
        %2157 = vmatpush1.msra.mxu0 0.0
        %2158 = vmatprep.subr.mxu0 0.0
        %2159 = vmatpush1.msra.mxu0 0.0
        %2160 = vmatprep.subr.mxu0 0.0
        %2161 = vmatpush1.msra.mxu0 0.0
        %2162 = vmatprep.subr.mxu0 0.0
        %2163 = vmatpush1.msra.mxu0 0.0
        %2164 = vmatprep.subr.mxu0 0.0
        %2165 = vmatpush1.msra.mxu0 0.0
        %2166 = vmatprep.subr.mxu0 0.0
        %2167 = vmatpush1.msra.mxu0 0.0
        %2168 = vmatprep.subr.mxu0 0.0
        %2169 = vmatpush1.msra.mxu0 0.0
        %2170 = vmatprep.subr.mxu0 0.0
        %2171 = vmatpush1.msra.mxu0 0.0
        %2172 = vmatprep.subr.mxu0 0.0
        %2173 = vmatpush1.msra.mxu0 0.0
        %2174 = vmatprep.subr.mxu0 0.0
        %2175 = vmatpush1.msra.mxu0 0.0
        %2176 = vmatprep.subr.mxu0 0.0
        %2177 = vmatpush1.msra.mxu0 0.0
        %2178 = vmatprep.subr.mxu0 0.0
        %2179 = vmatpush1.msra.mxu0 0.0
        %2180 = vmatprep.subr.mxu0 0.0
        %2181 = vmatpush1.msra.mxu0 0.0
        %2182 = vmatprep.mubr.f32.mxu0 0.0
        %2183 = vmatmul.mubr.f32.gmra.mrb[0].mxu0 %v1543
        %v2184 = vpop.f32.mrb[0].mxu0
        %v2185 = vadd.f32 0.0, %v2184
        %v2186 = vpop.f32.mrb[0].mxu0
        %2187 = vdwg.mxu0
        %v2188 = vmul.f32 %v2185, %v1618
        %v2189 = vtanh.pop %v2188
        %2190 = vmatprep.subr.mxu0 0.0
        %2191 = vmatpush1.msra.mxu0 %v2189
        %2192 = vmatprep.subr.mxu0 0.0
        %2193 = vmatpush1.msra.mxu0 0.0
        %2194 = vmatprep.subr.mxu0 0.0
        %2195 = vmatpush1.msra.mxu0 0.0
        %2196 = vmatprep.subr.mxu0 0.0
        %2197 = vmatpush1.msra.mxu0 0.0
        %2198 = vmatprep.subr.mxu0 0.0
        %2199 = vmatpush1.msra.mxu0 0.0
        %2200 = vmatprep.subr.mxu0 0.0
        %2201 = vmatpush1.msra.mxu0 0.0
        %2202 = vmatprep.subr.mxu0 0.0
        %2203 = vmatpush1.msra.mxu0 0.0
        %2204 = vmatprep.subr.mxu0 0.0
        %2205 = vmatpush1.msra.mxu0 0.0
        %2206 = vmatprep.subr.mxu0 0.0
        %2207 = vmatpush1.msra.mxu0 0.0
        %2208 = vmatprep.subr.mxu0 0.0
        %2209 = vmatpush1.msra.mxu0 0.0
        %2210 = vmatprep.subr.mxu0 0.0
        %2211 = vmatpush1.msra.mxu0 0.0
        %2212 = vmatprep.subr.mxu0 0.0
        %2213 = vmatpush1.msra.mxu0 0.0
        %2214 = vmatprep.subr.mxu0 0.0
        %2215 = vmatpush1.msra.mxu0 0.0
        %2216 = vmatprep.subr.mxu0 0.0
        %2217 = vmatpush1.msra.mxu0 0.0
        %2218 = vmatprep.subr.mxu0 0.0
        %2219 = vmatpush1.msra.mxu0 0.0
        %2220 = vmatprep.subr.mxu0 0.0
        %2221 = vmatpush1.msra.mxu0 0.0
        %2222 = vmatprep.subr.mxu0 0.0
        %2223 = vmatpush1.msra.mxu0 0.0
        %2224 = vmatprep.subr.mxu0 0.0
        %2225 = vmatpush1.msra.mxu0 0.0
        %2226 = vmatprep.subr.mxu0 0.0
        %2227 = vmatpush1.msra.mxu0 0.0
        %2228 = vmatprep.subr.mxu0 0.0
        %2229 = vmatpush1.msra.mxu0 0.0
        %2230 = vmatprep.subr.mxu0 0.0
        %2231 = vmatpush1.msra.mxu0 0.0
        %2232 = vmatprep.subr.mxu0 0.0
        %2233 = vmatpush1.msra.mxu0 0.0
        %2234 = vmatprep.subr.mxu0 0.0
        %2235 = vmatpush1.msra.mxu0 0.0
        %2236 = vmatprep.subr.mxu0 0.0
        %2237 = vmatpush1.msra.mxu0 0.0
        %2238 = vmatprep.subr.mxu0 0.0
        %2239 = vmatpush1.msra.mxu0 0.0
        %2240 = vmatprep.subr.mxu0 0.0
        %2241 = vmatpush1.msra.mxu0 0.0
        %2242 = vmatprep.subr.mxu0 0.0
        %2243 = vmatpush1.msra.mxu0 0.0
        %2244 = vmatprep.subr.mxu0 0.0
        %2245 = vmatpush1.msra.mxu0 0.0
        %2246 = vmatprep.subr.mxu0 0.0
        %2247 = vmatpush1.msra.mxu0 0.0
        %2248 = vmatprep.subr.mxu0 0.0
        %2249 = vmatpush1.msra.mxu0 0.0
        %2250 = vmatprep.subr.mxu0 0.0
        %2251 = vmatpush1.msra.mxu0 0.0
        %2252 = vmatprep.subr.mxu0 0.0
        %2253 = vmatpush1.msra.mxu0 0.0
        %2254 = vmatprep.mubr.f32.mxu0 0.0
        %2255 = vmatmul.mubr.f32.gmra.mrb[0].mxu0 %v1623
        %v2256 = vpop.f32.mrb[0].mxu0
        %v2257 = vadd.f32 0.0, %v2256
        %v2258 = vpop.f32.mrb[0].mxu0
        %2259 = vmatprep.mubr.f32.mxu0 0.0
        %2260 = vmatmul.mubr.f32.gmra.mrb[0].mxu0 %v1626
        %v2261 = vpop.f32.mrb[0].mxu0
        %v2262 = vadd.f32 0.0, %v2261
        %v2263 = vpop.f32.mrb[0].mxu0
        %2264 = vdwg.mxu0
        %v2265 = vmul.f32 %v1926, %v2257
        %v2266 = vmul.f32 %v1927, %v2262
        %v2267 = vsel %vm1187, %v2265, 0.0
        %2268 = vadd.xlane.f32.xlu0 %v2267
        %v2269 = vpop.xlane.xlu0 %2268
        %v2270 = vsel %vm1187, %v2266, 0.0
        %2271 = vadd.xlane.f32.xlu0 %v2270
        %v2272 = vpop.xlane.xlu0 %2271
        %v2273 = vxor.u32 %v2269, 2147483648
        %v2274 = vxor.u32 %v2272, 2147483648
        %v2275 = vmul.f32 %v2273, 1.442695
        %v2276 = vpow.pop %v2275
        %v2277 = vmul.f32 %v2274, 1.442695
        %v2278 = vpow.pop %v2277
        %v2279 = vadd.f32 %v2276, 1.0
        %v2280 = vadd.f32 %v2278, 1.0
        %v2281 = vrcp.pop %v2279
        %v2282 = vmul.f32 1.0, %v2281
        %v2283 = vrcp.pop %v2280
        %v2284 = vmul.f32 1.0, %v2283
        %v2285 = vmul.f32 %v2282, %v1926
        %v2286 = vmul.f32 %v2284, %v1927
        %2287 = vmatprep.subr.mxu0 0.0
        %2288 = vmatpush1.msra.mxu0 %v2285
        %2289 = vmatprep.subr.mxu0 0.0
        %2290 = vmatpush1.msra.mxu0 %v2286
        %2291 = vmatprep.subr.mxu0 0.0
        %2292 = vmatpush1.msra.mxu0 0.0
        %2293 = vmatprep.subr.mxu0 0.0
        %2294 = vmatpush1.msra.mxu0 0.0
        %2295 = vmatprep.subr.mxu0 0.0
        %2296 = vmatpush1.msra.mxu0 0.0
        %2297 = vmatprep.subr.mxu0 0.0
        %2298 = vmatpush1.msra.mxu0 0.0
        %2299 = vmatprep.subr.mxu0 0.0
        %2300 = vmatpush1.msra.mxu0 0.0
        %2301 = vmatprep.subr.mxu0 0.0
        %2302 = vmatpush1.msra.mxu0 0.0
        %2303 = vmatprep.subr.mxu0 0.0
        %2304 = vmatpush1.msra.mxu0 0.0
        %2305 = vmatprep.subr.mxu0 0.0
        %2306 = vmatpush1.msra.mxu0 0.0
        %2307 = vmatprep.subr.mxu0 0.0
        %2308 = vmatpush1.msra.mxu0 0.0
        %2309 = vmatprep.subr.mxu0 0.0
        %2310 = vmatpush1.msra.mxu0 0.0
        %2311 = vmatprep.subr.mxu0 0.0
        %2312 = vmatpush1.msra.mxu0 0.0
        %2313 = vmatprep.subr.mxu0 0.0
        %2314 = vmatpush1.msra.mxu0 0.0
        %2315 = vmatprep.subr.mxu0 0.0
        %2316 = vmatpush1.msra.mxu0 0.0
        %2317 = vmatprep.subr.mxu0 0.0
        %2318 = vmatpush1.msra.mxu0 0.0
        %2319 = vmatprep.subr.mxu0 0.0
        %2320 = vmatpush1.msra.mxu0 0.0
        %2321 = vmatprep.subr.mxu0 0.0
        %2322 = vmatpush1.msra.mxu0 0.0
        %2323 = vmatprep.subr.mxu0 0.0
        %2324 = vmatpush1.msra.mxu0 0.0
        %2325 = vmatprep.subr.mxu0 0.0
        %2326 = vmatpush1.msra.mxu0 0.0
        %2327 = vmatprep.subr.mxu0 0.0
        %2328 = vmatpush1.msra.mxu0 0.0
        %2329 = vmatprep.subr.mxu0 0.0
        %2330 = vmatpush1.msra.mxu0 0.0
        %2331 = vmatprep.subr.mxu0 0.0
        %2332 = vmatpush1.msra.mxu0 0.0
        %2333 = vmatprep.subr.mxu0 0.0
        %2334 = vmatpush1.msra.mxu0 0.0
        %2335 = vmatprep.subr.mxu0 0.0
        %2336 = vmatpush1.msra.mxu0 0.0
        %2337 = vmatprep.subr.mxu0 0.0
        %2338 = vmatpush1.msra.mxu0 0.0
        %2339 = vmatprep.subr.mxu0 0.0
        %2340 = vmatpush1.msra.mxu0 0.0
        %2341 = vmatprep.subr.mxu0 0.0
        %2342 = vmatpush1.msra.mxu0 0.0
        %2343 = vmatprep.subr.mxu0 0.0
        %2344 = vmatpush1.msra.mxu0 0.0
        %2345 = vmatprep.subr.mxu0 0.0
        %2346 = vmatpush1.msra.mxu0 0.0
        %2347 = vmatprep.subr.mxu0 0.0
        %2348 = vmatpush1.msra.mxu0 0.0
        %2349 = vmatprep.subr.mxu0 0.0
        %2350 = vmatpush1.msra.mxu0 0.0
        %2351 = vmatprep.mubr.f32.mxu0 0.0
        %2352 = vmatmul.mubr.f32.gmra.mrb[0].mxu0 %v1543
        %v2353 = vpop.f32.mrb[0].mxu0
        %v2354 = vadd.f32 0.0, %v2353
        %v2355 = vpop.f32.mrb[0].mxu0
        %2356 = vdwg.mxu0
        %s2357 = scalar_lea.vmem [#allocation3], %s1795
        %2358 = vst.msk [vmem:[%s2357] sm:$0xff] %vm1187, %v2354
        %v2359 = vld [vmem:[%s17] sm:$0xff]
        %v2360 = vld [vmem:[%s17 + $0x8] sm:$0xff]
        %v2361 = vld [vmem:[%s19] sm:$0x1]
        %2362 = vmatprep.subr.mxu0 0.0
        %2363 = vmatpush1.msra.mxu0 %v2359
        %2364 = vmatprep.subr.mxu0 0.0
        %2365 = vmatpush1.msra.mxu0 %v2360
        %2366 = vmatprep.subr.mxu0 0.0
        %2367 = vmatpush1.msra.mxu0 0.0
        %2368 = vmatprep.subr.mxu0 0.0
        %2369 = vmatpush1.msra.mxu0 0.0
        %2370 = vmatprep.subr.mxu0 0.0
        %2371 = vmatpush1.msra.mxu0 0.0
        %2372 = vmatprep.subr.mxu0 0.0
        %2373 = vmatpush1.msra.mxu0 0.0
        %2374 = vmatprep.subr.mxu0 0.0
        %2375 = vmatpush1.msra.mxu0 0.0
        %2376 = vmatprep.subr.mxu0 0.0
        %2377 = vmatpush1.msra.mxu0 0.0
        %2378 = vmatprep.subr.mxu0 0.0
        %2379 = vmatpush1.msra.mxu0 0.0
        %2380 = vmatprep.subr.mxu0 0.0
        %2381 = vmatpush1.msra.mxu0 0.0
        %2382 = vmatprep.subr.mxu0 0.0
        %2383 = vmatpush1.msra.mxu0 0.0
        %2384 = vmatprep.subr.mxu0 0.0
        %2385 = vmatpush1.msra.mxu0 0.0
        %2386 = vmatprep.subr.mxu0 0.0
        %2387 = vmatpush1.msra.mxu0 0.0
        %2388 = vmatprep.subr.mxu0 0.0
        %2389 = vmatpush1.msra.mxu0 0.0
        %2390 = vmatprep.subr.mxu0 0.0
        %2391 = vmatpush1.msra.mxu0 0.0
        %2392 = vmatprep.subr.mxu0 0.0
        %2393 = vmatpush1.msra.mxu0 0.0
        %2394 = vmatprep.subr.mxu0 0.0
        %2395 = vmatpush1.msra.mxu0 0.0
        %2396 = vmatprep.subr.mxu0 0.0
        %2397 = vmatpush1.msra.mxu0 0.0
        %2398 = vmatprep.subr.mxu0 0.0
        %2399 = vmatpush1.msra.mxu0 0.0
        %2400 = vmatprep.subr.mxu0 0.0
        %2401 = vmatpush1.msra.mxu0 0.0
        %2402 = vmatprep.subr.mxu0 0.0
        %2403 = vmatpush1.msra.mxu0 0.0
        %2404 = vmatprep.subr.mxu0 0.0
        %2405 = vmatpush1.msra.mxu0 0.0
        %2406 = vmatprep.subr.mxu0 0.0
        %2407 = vmatpush1.msra.mxu0 0.0
        %2408 = vmatprep.subr.mxu0 0.0
        %2409 = vmatpush1.msra.mxu0 0.0
        %2410 = vmatprep.subr.mxu0 0.0
        %2411 = vmatpush1.msra.mxu0 0.0
        %2412 = vmatprep.subr.mxu0 0.0
        %2413 = vmatpush1.msra.mxu0 0.0
        %2414 = vmatprep.subr.mxu0 0.0
        %2415 = vmatpush1.msra.mxu0 0.0
        %2416 = vmatprep.subr.mxu0 0.0
        %2417 = vmatpush1.msra.mxu0 0.0
        %2418 = vmatprep.subr.mxu0 0.0
        %2419 = vmatpush1.msra.mxu0 0.0
        %2420 = vmatprep.subr.mxu0 0.0
        %2421 = vmatpush1.msra.mxu0 0.0
        %2422 = vmatprep.subr.mxu0 0.0
        %2423 = vmatpush1.msra.mxu0 0.0
        %2424 = vmatprep.subr.mxu0 0.0
        %2425 = vmatpush1.msra.mxu0 0.0
        %2426 = vmatprep.mubr.f32.mxu0 0.0
        %2427 = vmatmul.mubr.f32.gmra.mrb[0].mxu0 %v1940
        %v2428 = vpop.f32.mrb[0].mxu0
        %v2429 = vadd.f32 0.0, %v2428
        %v2430 = vpop.f32.mrb[0].mxu0
        %2431 = vmatprep.mubr.f32.mxu0 0.0
        %2432 = vmatmul.mubr.f32.gmra.mrb[0].mxu0 %v1943
        %v2433 = vpop.f32.mrb[0].mxu0
        %v2434 = vadd.f32 0.0, %v2433
        %v2435 = vpop.f32.mrb[0].mxu0
        %2436 = vdwg.mxu0
        %v2437 = vpack.c.bf16 %v2434, %v2429
        %v2439 = vlaneseq
        %v2440 = vshrl.u32 %v2439, 7
        %v2441 = vsub.s32 0, %v2440
        %v2442 = vrot.slane %v2361, %v2441
        %2444 = vmatprep.subr.bf16.mxu0 0
        %2445 = vmatpush1.bf16.msra.mxu0 %v2437
        %2446 = vmatprep.subr.bf16.mxu0 0
        %2447 = vmatpush1.bf16.msra.mxu0 0
        %2448 = vmatprep.subr.bf16.mxu0 0
        %2449 = vmatpush1.bf16.msra.mxu0 0
        %2450 = vmatprep.subr.bf16.mxu0 0
        %2451 = vmatpush1.bf16.msra.mxu0 0
        %2452 = vmatprep.subr.bf16.mxu0 0
        %2453 = vmatpush1.bf16.msra.mxu0 0
        %2454 = vmatprep.subr.bf16.mxu0 0
        %2455 = vmatpush1.bf16.msra.mxu0 0
        %2456 = vmatprep.subr.bf16.mxu0 0
        %2457 = vmatpush1.bf16.msra.mxu0 0
        %2458 = vmatprep.subr.bf16.mxu0 0
        %2459 = vmatpush1.bf16.msra.mxu0 0
        %2460 = vmatprep.subr.bf16.mxu0 0
        %2461 = vmatpush1.bf16.msra.mxu0 0
        %2462 = vmatprep.subr.bf16.mxu0 0
        %2463 = vmatpush1.bf16.msra.mxu0 0
        %2464 = vmatprep.subr.bf16.mxu0 0
        %2465 = vmatpush1.bf16.msra.mxu0 0
        %2466 = vmatprep.subr.bf16.mxu0 0
        %2467 = vmatpush1.bf16.msra.mxu0 0
        %2468 = vmatprep.subr.bf16.mxu0 0
        %2469 = vmatpush1.bf16.msra.mxu0 0
        %2470 = vmatprep.subr.bf16.mxu0 0
        %2471 = vmatpush1.bf16.msra.mxu0 0
        %2472 = vmatprep.subr.bf16.mxu0 0
        %2473 = vmatpush1.bf16.msra.mxu0 0
        %2474 = vmatprep.subr.bf16.mxu0 0
        %2475 = vmatpush1.bf16.msra.mxu0 0
        %2476 = vmatprep.mubr.bf16.mxu0 0
        %2477 = vmatmul.mubr.bf16.gmra.mrb[0].mxu0 %v1189
        %v2478 = vpop.f32.mrb[0].mxu0
        %v2479 = vadd.f32 %v2442, %v2478
        %v2480 = vpop.f32.mrb[0].mxu0
        %v2481 = vpop.f32.mrb[0].mxu0
        %v2482 = vadd.f32 %v2442, %v2481
        %v2483 = vpop.f32.mrb[0].mxu0
        %2484 = vdwg.mxu0
        %v2485 = vmax.f32 %v2479, 0.0
        %v2486 = vmax.f32 %v2482, 0.0
        %v2487 = vld [vmem:[%s37] sm:$0xff]
        %v2488 = vld [vmem:[%s39] sm:$0x1]
        %v2489 = vld [vmem:[%s41] sm:$0x3]
        %v2490 = vld [vmem:[%s43] sm:$0x1]
        %v2492 = vlaneseq
        %v2493 = vshrl.u32 %v2492, 7
        %v2494 = vsub.s32 0, %v2493
        %v2495 = vrot.slane %v2488, %v2494
        %v2498 = vsel %vm1424, %v2485, 0
        %v2501 = vsel %vm1424, %v2486, 0
        %2503 = vmatprep.subr.mxu0 0.0
        %2504 = vmatpush1.msra.mxu0 %v2487
        %2505 = vmatprep.subr.mxu0 0.0
        %2506 = vmatpush1.msra.mxu0 0.0
        %2507 = vmatprep.subr.mxu0 0.0
        %2508 = vmatpush1.msra.mxu0 0.0
        %2509 = vmatprep.subr.mxu0 0.0
        %2510 = vmatpush1.msra.mxu0 0.0
        %2511 = vmatprep.subr.mxu0 0.0
        %2512 = vmatpush1.msra.mxu0 0.0
        %2513 = vmatprep.subr.mxu0 0.0
        %2514 = vmatpush1.msra.mxu0 0.0
        %2515 = vmatprep.subr.mxu0 0.0
        %2516 = vmatpush1.msra.mxu0 0.0
        %2517 = vmatprep.subr.mxu0 0.0
        %2518 = vmatpush1.msra.mxu0 0.0
        %2519 = vmatprep.subr.mxu0 0.0
        %2520 = vmatpush1.msra.mxu0 0.0
        %2521 = vmatprep.subr.mxu0 0.0
        %2522 = vmatpush1.msra.mxu0 0.0
        %2523 = vmatprep.subr.mxu0 0.0
        %2524 = vmatpush1.msra.mxu0 0.0
        %2525 = vmatprep.subr.mxu0 0.0
        %2526 = vmatpush1.msra.mxu0 0.0
        %2527 = vmatprep.subr.mxu0 0.0
        %2528 = vmatpush1.msra.mxu0 0.0
        %2529 = vmatprep.subr.mxu0 0.0
        %2530 = vmatpush1.msra.mxu0 0.0
        %2531 = vmatprep.subr.mxu0 0.0
        %2532 = vmatpush1.msra.mxu0 0.0
        %2533 = vmatprep.subr.mxu0 0.0
        %2534 = vmatpush1.msra.mxu0 0.0
        %2535 = vmatprep.subr.mxu0 0.0
        %2536 = vmatpush1.msra.mxu0 0.0
        %2537 = vmatprep.subr.mxu0 0.0
        %2538 = vmatpush1.msra.mxu0 0.0
        %2539 = vmatprep.subr.mxu0 0.0
        %2540 = vmatpush1.msra.mxu0 0.0
        %2541 = vmatprep.subr.mxu0 0.0
        %2542 = vmatpush1.msra.mxu0 0.0
        %2543 = vmatprep.subr.mxu0 0.0
        %2544 = vmatpush1.msra.mxu0 0.0
        %2545 = vmatprep.subr.mxu0 0.0
        %2546 = vmatpush1.msra.mxu0 0.0
        %2547 = vmatprep.subr.mxu0 0.0
        %2548 = vmatpush1.msra.mxu0 0.0
        %2549 = vmatprep.subr.mxu0 0.0
        %2550 = vmatpush1.msra.mxu0 0.0
        %2551 = vmatprep.subr.mxu0 0.0
        %2552 = vmatpush1.msra.mxu0 0.0
        %2553 = vmatprep.subr.mxu0 0.0
        %2554 = vmatpush1.msra.mxu0 0.0
        %2555 = vmatprep.subr.mxu0 0.0
        %2556 = vmatpush1.msra.mxu0 0.0
        %2557 = vmatprep.subr.mxu0 0.0
        %2558 = vmatpush1.msra.mxu0 0.0
        %2559 = vmatprep.subr.mxu0 0.0
        %2560 = vmatpush1.msra.mxu0 0.0
        %2561 = vmatprep.subr.mxu0 0.0
        %2562 = vmatpush1.msra.mxu0 0.0
        %2563 = vmatprep.subr.mxu0 0.0
        %2564 = vmatpush1.msra.mxu0 0.0
        %2565 = vmatprep.subr.mxu0 0.0
        %2566 = vmatpush1.msra.mxu0 0.0
        %2567 = vmatprep.mubr.f32.mxu0 0.0
        %2568 = vmatmul.mubr.f32.gmra.mrb[0].mxu0 %v2498
        %v2569 = vpop.f32.mrb[0].mxu0
        %v2570 = vadd.f32 %v2495, %v2569
        %v2571 = vpop.f32.mrb[0].mxu0
        %2572 = vmatprep.mubr.f32.mxu0 0.0
        %2573 = vmatmul.mubr.f32.gmra.mrb[0].mxu0 %v2501
        %v2574 = vpop.f32.mrb[0].mxu0
        %v2575 = vadd.f32 %v2495, %v2574
        %v2576 = vpop.f32.mrb[0].mxu0
        %2577 = vdwg.mxu0
        %v2578 = vmax.f32 %v2570, 0.0
        %v2579 = vmax.f32 %v2575, 0.0
        %v2581 = vlaneseq
        %v2582 = vshrl.u32 %v2581, 7
        %v2583 = vsub.s32 0, %v2582
        %v2584 = vrot.slane %v2490, %v2583
        %vm2586 = vcmask 15360
        %v2588 = vsel %vm2586, %v2578, 0
        %v2591 = vsel %vm2586, %v2579, 0
        %vm2593 = vcmask 1041408
        %v2595 = vsel %vm2593, %v2489, 0
        %2597 = vmatprep.subr.mxu0 0.0
        %2598 = vmatpush1.msra.mxu0 %v2595
        %2599 = vmatprep.subr.mxu0 0.0
        %2600 = vmatpush1.msra.mxu0 0.0
        %2601 = vmatprep.subr.mxu0 0.0
        %2602 = vmatpush1.msra.mxu0 0.0
        %2603 = vmatprep.subr.mxu0 0.0
        %2604 = vmatpush1.msra.mxu0 0.0
        %2605 = vmatprep.subr.mxu0 0.0
        %2606 = vmatpush1.msra.mxu0 0.0
        %2607 = vmatprep.subr.mxu0 0.0
        %2608 = vmatpush1.msra.mxu0 0.0
        %2609 = vmatprep.subr.mxu0 0.0
        %2610 = vmatpush1.msra.mxu0 0.0
        %2611 = vmatprep.subr.mxu0 0.0
        %2612 = vmatpush1.msra.mxu0 0.0
        %2613 = vmatprep.subr.mxu0 0.0
        %2614 = vmatpush1.msra.mxu0 0.0
        %2615 = vmatprep.subr.mxu0 0.0
        %2616 = vmatpush1.msra.mxu0 0.0
        %2617 = vmatprep.subr.mxu0 0.0
        %2618 = vmatpush1.msra.mxu0 0.0
        %2619 = vmatprep.subr.mxu0 0.0
        %2620 = vmatpush1.msra.mxu0 0.0
        %2621 = vmatprep.subr.mxu0 0.0
        %2622 = vmatpush1.msra.mxu0 0.0
        %2623 = vmatprep.subr.mxu0 0.0
        %2624 = vmatpush1.msra.mxu0 0.0
        %2625 = vmatprep.subr.mxu0 0.0
        %2626 = vmatpush1.msra.mxu0 0.0
        %2627 = vmatprep.subr.mxu0 0.0
        %2628 = vmatpush1.msra.mxu0 0.0
        %2629 = vmatprep.subr.mxu0 0.0
        %2630 = vmatpush1.msra.mxu0 0.0
        %2631 = vmatprep.subr.mxu0 0.0
        %2632 = vmatpush1.msra.mxu0 0.0
        %2633 = vmatprep.subr.mxu0 0.0
        %2634 = vmatpush1.msra.mxu0 0.0
        %2635 = vmatprep.subr.mxu0 0.0
        %2636 = vmatpush1.msra.mxu0 0.0
        %2637 = vmatprep.subr.mxu0 0.0
        %2638 = vmatpush1.msra.mxu0 0.0
        %2639 = vmatprep.subr.mxu0 0.0
        %2640 = vmatpush1.msra.mxu0 0.0
        %2641 = vmatprep.subr.mxu0 0.0
        %2642 = vmatpush1.msra.mxu0 0.0
        %2643 = vmatprep.subr.mxu0 0.0
        %2644 = vmatpush1.msra.mxu0 0.0
        %2645 = vmatprep.subr.mxu0 0.0
        %2646 = vmatpush1.msra.mxu0 0.0
        %2647 = vmatprep.subr.mxu0 0.0
        %2648 = vmatpush1.msra.mxu0 0.0
        %2649 = vmatprep.subr.mxu0 0.0
        %2650 = vmatpush1.msra.mxu0 0.0
        %2651 = vmatprep.subr.mxu0 0.0
        %2652 = vmatpush1.msra.mxu0 0.0
        %2653 = vmatprep.subr.mxu0 0.0
        %2654 = vmatpush1.msra.mxu0 0.0
        %2655 = vmatprep.subr.mxu0 0.0
        %2656 = vmatpush1.msra.mxu0 0.0
        %2657 = vmatprep.subr.mxu0 0.0
        %2658 = vmatpush1.msra.mxu0 0.0
        %2659 = vmatprep.subr.mxu0 0.0
        %2660 = vmatpush1.msra.mxu0 0.0
        %2661 = vmatprep.mubr.f32.mxu0 0.0
        %2662 = vmatmul.mubr.f32.gmra.mrb[0].mxu0 %v2588
        %v2663 = vpop.f32.mrb[0].mxu0
        %v2664 = vadd.f32 %v2584, %v2663
        %v2665 = vpop.f32.mrb[0].mxu0
        %2666 = vmatprep.mubr.f32.mxu0 0.0
        %2667 = vmatmul.mubr.f32.gmra.mrb[0].mxu0 %v2591
        %v2668 = vpop.f32.mrb[0].mxu0
        %v2669 = vadd.f32 %v2584, %v2668
        %v2670 = vpop.f32.mrb[0].mxu0
        %2671 = vdwg.mxu0
        %v2672 = vtanh.pop %v2664
        %v2673 = vtanh.pop %v2669
        %v2674 = vmul.f32 %v2485, %v2672
        %v2675 = vmul.f32 %v2486, %v2673
        %2676 = vmatprep.subr.mxu0 0.0
        %2677 = vmatpush1.msra.mxu0 %v2674
        %2678 = vmatprep.subr.mxu0 0.0
        %2679 = vmatpush1.msra.mxu0 %v2675
        %2680 = vmatprep.subr.mxu0 0.0
        %2681 = vmatpush1.msra.mxu0 0.0
        %2682 = vmatprep.subr.mxu0 0.0
        %2683 = vmatpush1.msra.mxu0 0.0
        %2684 = vmatprep.subr.mxu0 0.0
        %2685 = vmatpush1.msra.mxu0 0.0
        %2686 = vmatprep.subr.mxu0 0.0
        %2687 = vmatpush1.msra.mxu0 0.0
        %2688 = vmatprep.subr.mxu0 0.0
        %2689 = vmatpush1.msra.mxu0 0.0
        %2690 = vmatprep.subr.mxu0 0.0
        %2691 = vmatpush1.msra.mxu0 0.0
        %2692 = vmatprep.subr.mxu0 0.0
        %2693 = vmatpush1.msra.mxu0 0.0
        %2694 = vmatprep.subr.mxu0 0.0
        %2695 = vmatpush1.msra.mxu0 0.0
        %2696 = vmatprep.subr.mxu0 0.0
        %2697 = vmatpush1.msra.mxu0 0.0
        %2698 = vmatprep.subr.mxu0 0.0
        %2699 = vmatpush1.msra.mxu0 0.0
        %2700 = vmatprep.subr.mxu0 0.0
        %2701 = vmatpush1.msra.mxu0 0.0
        %2702 = vmatprep.subr.mxu0 0.0
        %2703 = vmatpush1.msra.mxu0 0.0
        %2704 = vmatprep.subr.mxu0 0.0
        %2705 = vmatpush1.msra.mxu0 0.0
        %2706 = vmatprep.subr.mxu0 0.0
        %2707 = vmatpush1.msra.mxu0 0.0
        %2708 = vmatprep.subr.mxu0 0.0
        %2709 = vmatpush1.msra.mxu0 0.0
        %2710 = vmatprep.subr.mxu0 0.0
        %2711 = vmatpush1.msra.mxu0 0.0
        %2712 = vmatprep.subr.mxu0 0.0
        %2713 = vmatpush1.msra.mxu0 0.0
        %2714 = vmatprep.subr.mxu0 0.0
        %2715 = vmatpush1.msra.mxu0 0.0
        %2716 = vmatprep.subr.mxu0 0.0
        %2717 = vmatpush1.msra.mxu0 0.0
        %2718 = vmatprep.subr.mxu0 0.0
        %2719 = vmatpush1.msra.mxu0 0.0
        %2720 = vmatprep.subr.mxu0 0.0
        %2721 = vmatpush1.msra.mxu0 0.0
        %2722 = vmatprep.subr.mxu0 0.0
        %2723 = vmatpush1.msra.mxu0 0.0
        %2724 = vmatprep.subr.mxu0 0.0
        %2725 = vmatpush1.msra.mxu0 0.0
        %2726 = vmatprep.subr.mxu0 0.0
        %2727 = vmatpush1.msra.mxu0 0.0
        %2728 = vmatprep.subr.mxu0 0.0
        %2729 = vmatpush1.msra.mxu0 0.0
        %2730 = vmatprep.subr.mxu0 0.0
        %2731 = vmatpush1.msra.mxu0 0.0
        %2732 = vmatprep.subr.mxu0 0.0
        %2733 = vmatpush1.msra.mxu0 0.0
        %2734 = vmatprep.subr.mxu0 0.0
        %2735 = vmatpush1.msra.mxu0 0.0
        %2736 = vmatprep.subr.mxu0 0.0
        %2737 = vmatpush1.msra.mxu0 0.0
        %2738 = vmatprep.subr.mxu0 0.0
        %2739 = vmatpush1.msra.mxu0 0.0
        %2740 = vmatprep.mubr.f32.mxu0 0.0
        %2741 = vmatmul.mubr.f32.gmra.mrb[0].mxu0 %v1543
        %v2742 = vpop.f32.mrb[0].mxu0
        %v2743 = vadd.f32 0.0, %v2742
        %v2744 = vpop.f32.mrb[0].mxu0
        %2745 = vdwg.mxu0
        %v2746 = vmul.f32 %v2743, %v1618
        %v2747 = vtanh.pop %v2746
        %2748 = vmatprep.subr.mxu0 0.0
        %2749 = vmatpush1.msra.mxu0 %v2747
        %2750 = vmatprep.subr.mxu0 0.0
        %2751 = vmatpush1.msra.mxu0 0.0
        %2752 = vmatprep.subr.mxu0 0.0
        %2753 = vmatpush1.msra.mxu0 0.0
        %2754 = vmatprep.subr.mxu0 0.0
        %2755 = vmatpush1.msra.mxu0 0.0
        %2756 = vmatprep.subr.mxu0 0.0
        %2757 = vmatpush1.msra.mxu0 0.0
        %2758 = vmatprep.subr.mxu0 0.0
        %2759 = vmatpush1.msra.mxu0 0.0
        %2760 = vmatprep.subr.mxu0 0.0
        %2761 = vmatpush1.msra.mxu0 0.0
        %2762 = vmatprep.subr.mxu0 0.0
        %2763 = vmatpush1.msra.mxu0 0.0
        %2764 = vmatprep.subr.mxu0 0.0
        %2765 = vmatpush1.msra.mxu0 0.0
        %2766 = vmatprep.subr.mxu0 0.0
        %2767 = vmatpush1.msra.mxu0 0.0
        %2768 = vmatprep.subr.mxu0 0.0
        %2769 = vmatpush1.msra.mxu0 0.0
        %2770 = vmatprep.subr.mxu0 0.0
        %2771 = vmatpush1.msra.mxu0 0.0
        %2772 = vmatprep.subr.mxu0 0.0
        %2773 = vmatpush1.msra.mxu0 0.0
        %2774 = vmatprep.subr.mxu0 0.0
        %2775 = vmatpush1.msra.mxu0 0.0
        %2776 = vmatprep.subr.mxu0 0.0
        %2777 = vmatpush1.msra.mxu0 0.0
        %2778 = vmatprep.subr.mxu0 0.0
        %2779 = vmatpush1.msra.mxu0 0.0
        %2780 = vmatprep.subr.mxu0 0.0
        %2781 = vmatpush1.msra.mxu0 0.0
        %2782 = vmatprep.subr.mxu0 0.0
        %2783 = vmatpush1.msra.mxu0 0.0
        %2784 = vmatprep.subr.mxu0 0.0
        %2785 = vmatpush1.msra.mxu0 0.0
        %2786 = vmatprep.subr.mxu0 0.0
        %2787 = vmatpush1.msra.mxu0 0.0
        %2788 = vmatprep.subr.mxu0 0.0
        %2789 = vmatpush1.msra.mxu0 0.0
        %2790 = vmatprep.subr.mxu0 0.0
        %2791 = vmatpush1.msra.mxu0 0.0
        %2792 = vmatprep.subr.mxu0 0.0
        %2793 = vmatpush1.msra.mxu0 0.0
        %2794 = vmatprep.subr.mxu0 0.0
        %2795 = vmatpush1.msra.mxu0 0.0
        %2796 = vmatprep.subr.mxu0 0.0
        %2797 = vmatpush1.msra.mxu0 0.0
        %2798 = vmatprep.subr.mxu0 0.0
        %2799 = vmatpush1.msra.mxu0 0.0
        %2800 = vmatprep.subr.mxu0 0.0
        %2801 = vmatpush1.msra.mxu0 0.0
        %2802 = vmatprep.subr.mxu0 0.0
        %2803 = vmatpush1.msra.mxu0 0.0
        %2804 = vmatprep.subr.mxu0 0.0
        %2805 = vmatpush1.msra.mxu0 0.0
        %2806 = vmatprep.subr.mxu0 0.0
        %2807 = vmatpush1.msra.mxu0 0.0
        %2808 = vmatprep.subr.mxu0 0.0
        %2809 = vmatpush1.msra.mxu0 0.0
        %2810 = vmatprep.subr.mxu0 0.0
        %2811 = vmatpush1.msra.mxu0 0.0
        %2812 = vmatprep.mubr.f32.mxu0 0.0
        %2813 = vmatmul.mubr.f32.gmra.mrb[0].mxu0 %v1623
        %v2814 = vpop.f32.mrb[0].mxu0
        %v2815 = vadd.f32 0.0, %v2814
        %v2816 = vpop.f32.mrb[0].mxu0
        %2817 = vmatprep.mubr.f32.mxu0 0.0
        %2818 = vmatmul.mubr.f32.gmra.mrb[0].mxu0 %v1626
        %v2819 = vpop.f32.mrb[0].mxu0
        %v2820 = vadd.f32 0.0, %v2819
        %v2821 = vpop.f32.mrb[0].mxu0
        %2822 = vdwg.mxu0
        %v2823 = vmul.f32 %v2485, %v2815
        %v2824 = vmul.f32 %v2486, %v2820
        %v2825 = vsel %vm1424, %v2823, 0.0
        %2826 = vadd.xlane.f32.xlu0 %v2825
        %v2827 = vpop.xlane.xlu0 %2826
        %v2828 = vsel %vm1424, %v2824, 0.0
        %2829 = vadd.xlane.f32.xlu0 %v2828
        %v2830 = vpop.xlane.xlu0 %2829
        %v2831 = vxor.u32 %v2827, 2147483648
        %v2832 = vxor.u32 %v2830, 2147483648
        %v2833 = vmul.f32 %v2831, 1.442695
        %v2834 = vpow.pop %v2833
        %v2835 = vmul.f32 %v2832, 1.442695
        %v2836 = vpow.pop %v2835
        %v2837 = vadd.f32 %v2834, 1.0
        %v2838 = vadd.f32 %v2836, 1.0
        %v2839 = vrcp.pop %v2837
        %v2840 = vmul.f32 1.0, %v2839
        %v2841 = vrcp.pop %v2838
        %v2842 = vmul.f32 1.0, %v2841
        %v2843 = vmul.f32 %v2840, %v2485
        %v2844 = vmul.f32 %v2842, %v2486
        %2845 = vmatprep.subr.mxu0 0.0
        %2846 = vmatpush1.msra.mxu0 %v2843
        %2847 = vmatprep.subr.mxu0 0.0
        %2848 = vmatpush1.msra.mxu0 %v2844
        %2849 = vmatprep.subr.mxu0 0.0
        %2850 = vmatpush1.msra.mxu0 0.0
        %2851 = vmatprep.subr.mxu0 0.0
        %2852 = vmatpush1.msra.mxu0 0.0
        %2853 = vmatprep.subr.mxu0 0.0
        %2854 = vmatpush1.msra.mxu0 0.0
        %2855 = vmatprep.subr.mxu0 0.0
        %2856 = vmatpush1.msra.mxu0 0.0
        %2857 = vmatprep.subr.mxu0 0.0
        %2858 = vmatpush1.msra.mxu0 0.0
        %2859 = vmatprep.subr.mxu0 0.0
        %2860 = vmatpush1.msra.mxu0 0.0
        %2861 = vmatprep.subr.mxu0 0.0
        %2862 = vmatpush1.msra.mxu0 0.0
        %2863 = vmatprep.subr.mxu0 0.0
        %2864 = vmatpush1.msra.mxu0 0.0
        %2865 = vmatprep.subr.mxu0 0.0
        %2866 = vmatpush1.msra.mxu0 0.0
        %2867 = vmatprep.subr.mxu0 0.0
        %2868 = vmatpush1.msra.mxu0 0.0
        %2869 = vmatprep.subr.mxu0 0.0
        %2870 = vmatpush1.msra.mxu0 0.0
        %2871 = vmatprep.subr.mxu0 0.0
        %2872 = vmatpush1.msra.mxu0 0.0
        %2873 = vmatprep.subr.mxu0 0.0
        %2874 = vmatpush1.msra.mxu0 0.0
        %2875 = vmatprep.subr.mxu0 0.0
        %2876 = vmatpush1.msra.mxu0 0.0
        %2877 = vmatprep.subr.mxu0 0.0
        %2878 = vmatpush1.msra.mxu0 0.0
        %2879 = vmatprep.subr.mxu0 0.0
        %2880 = vmatpush1.msra.mxu0 0.0
        %2881 = vmatprep.subr.mxu0 0.0
        %2882 = vmatpush1.msra.mxu0 0.0
        %2883 = vmatprep.subr.mxu0 0.0
        %2884 = vmatpush1.msra.mxu0 0.0
        %2885 = vmatprep.subr.mxu0 0.0
        %2886 = vmatpush1.msra.mxu0 0.0
        %2887 = vmatprep.subr.mxu0 0.0
        %2888 = vmatpush1.msra.mxu0 0.0
        %2889 = vmatprep.subr.mxu0 0.0
        %2890 = vmatpush1.msra.mxu0 0.0
        %2891 = vmatprep.subr.mxu0 0.0
        %2892 = vmatpush1.msra.mxu0 0.0
        %2893 = vmatprep.subr.mxu0 0.0
        %2894 = vmatpush1.msra.mxu0 0.0
        %2895 = vmatprep.subr.mxu0 0.0
        %2896 = vmatpush1.msra.mxu0 0.0
        %2897 = vmatprep.subr.mxu0 0.0
        %2898 = vmatpush1.msra.mxu0 0.0
        %2899 = vmatprep.subr.mxu0 0.0
        %2900 = vmatpush1.msra.mxu0 0.0
        %2901 = vmatprep.subr.mxu0 0.0
        %2902 = vmatpush1.msra.mxu0 0.0
        %2903 = vmatprep.subr.mxu0 0.0
        %2904 = vmatpush1.msra.mxu0 0.0
        %2905 = vmatprep.subr.mxu0 0.0
        %2906 = vmatpush1.msra.mxu0 0.0
        %2907 = vmatprep.subr.mxu0 0.0
        %2908 = vmatpush1.msra.mxu0 0.0
        %2909 = vmatprep.mubr.f32.mxu0 0.0
        %2910 = vmatmul.mubr.f32.gmra.mrb[0].mxu0 %v1543
        %v2911 = vpop.f32.mrb[0].mxu0
        %v2912 = vadd.f32 0.0, %v2911
        %v2913 = vpop.f32.mrb[0].mxu0
        %2914 = vdwg.mxu0
        %s2915 = scalar_lea.vmem [#allocation4], %s1795
        %2916 = vst.msk [vmem:[%s2915] sm:$0xff] %vm1424, %v2912
        %p2917 = scmp.eq.s32.totalorder %s87, 1
        // Predicated region
        $region169: #{tpu_custom_call.1} parent=167 // pred_check
          %p2918 = pneg %p2917
        $region170: #{tpu_custom_call.1} parent=167 // pred_check_branch
          %2920 = sbr.rel (%p2918) target = $region172
        $region171: #{tpu_custom_call.1} parent=167 // pred_region
          %v2921 = vld [vmem:[#allocation2] sm:$0xff]
          %s2922 = scalar_lea.vmem [#allocation2], 8
          %v2923 = vld [vmem:[%s2922] sm:$0xff]
          %v2924 = vld [vmem:[%s45] sm:$0xff]
          %v2925 = vld [vmem:[%s45 + $0x8] sm:$0xff]
          %v2926 = vld [vmem:[%s45 + $0x10] sm:$0xff]
          %v2927 = vld [vmem:[%s45 + $0x18] sm:$0xff]
          %v2928 = vld [vmem:[%s45 + $0x20] sm:$0xff]
          %v2929 = vld [vmem:[%s45 + $0x28] sm:$0xff]
          %v2930 = vld [vmem:[%s45 + $0x30] sm:$0xff]
          %v2931 = vld [vmem:[%s45 + $0x38] sm:$0xff]
          %v2932 = vld [vmem:[%s45 + $0x40] sm:$0xff]
          %v2933 = vld [vmem:[%s45 + $0x48] sm:$0xff]
          %v2934 = vld [vmem:[%s45 + $0x50] sm:$0xff]
          %v2935 = vld [vmem:[%s45 + $0x58] sm:$0xff]
          %v2936 = vld [vmem:[%s45 + $0x60] sm:$0xff]
          %v2937 = vld [vmem:[%s45 + $0x68] sm:$0xff]
          %v2938 = vld [vmem:[%s45 + $0x70] sm:$0xff]
          %v2939 = vld [vmem:[%s45 + $0x78] sm:$0xff]
          %v2940 = vld [vmem:[%s47] sm:$0xff]
          %v2941 = vld [vmem:[%s47 + $0x8] sm:$0xff]
          %v2942 = vld [vmem:[%s47 + $0x10] sm:$0xff]
          %v2943 = vld [vmem:[%s47 + $0x18] sm:$0xff]
          %v2944 = vld [vmem:[%s47 + $0x20] sm:$0xff]
          %v2945 = vld [vmem:[%s47 + $0x28] sm:$0xff]
          %v2946 = vld [vmem:[%s47 + $0x30] sm:$0xff]
          %v2947 = vld [vmem:[%s47 + $0x38] sm:$0xff]
          %v2948 = vld [vmem:[%s49] sm:$0x1]
          %v2950 = vsel %vm1334, %v2921, 0
          %2952 = vmatprep.subr.mxu0 %v2925
          %2953 = vmatpush1.msra.mxu0 %v2924
          %2954 = vmatprep.subr.mxu0 %v2929
          %2955 = vmatpush1.msra.mxu0 %v2928
          %2956 = vmatprep.subr.mxu0 %v2933
          %2957 = vmatpush1.msra.mxu0 %v2932
          %2958 = vmatprep.subr.mxu0 %v2937
          %2959 = vmatpush1.msra.mxu0 %v2936
          %2960 = vmatprep.subr.mxu0 0.0
          %2961 = vmatpush1.msra.mxu0 0.0
          %2962 = vmatprep.subr.mxu0 0.0
          %2963 = vmatpush1.msra.mxu0 0.0
          %2964 = vmatprep.subr.mxu0 0.0
          %2965 = vmatpush1.msra.mxu0 0.0
          %2966 = vmatprep.subr.mxu0 0.0
          %2967 = vmatpush1.msra.mxu0 0.0
          %2968 = vmatprep.subr.mxu0 0.0
          %2969 = vmatpush1.msra.mxu0 0.0
          %2970 = vmatprep.subr.mxu0 0.0
          %2971 = vmatpush1.msra.mxu0 0.0
          %2972 = vmatprep.subr.mxu0 0.0
          %2973 = vmatpush1.msra.mxu0 0.0
          %2974 = vmatprep.subr.mxu0 0.0
          %2975 = vmatpush1.msra.mxu0 0.0
          %2976 = vmatprep.subr.mxu0 0.0
          %2977 = vmatpush1.msra.mxu0 0.0
          %2978 = vmatprep.subr.mxu0 0.0
          %2979 = vmatpush1.msra.mxu0 0.0
          %2980 = vmatprep.subr.mxu0 0.0
          %2981 = vmatpush1.msra.mxu0 0.0
          %2982 = vmatprep.subr.mxu0 0.0
          %2983 = vmatpush1.msra.mxu0 0.0
          %2984 = vmatprep.subr.mxu0 0.0
          %2985 = vmatpush1.msra.mxu0 0.0
          %2986 = vmatprep.subr.mxu0 0.0
          %2987 = vmatpush1.msra.mxu0 0.0
          %2988 = vmatprep.subr.mxu0 0.0
          %2989 = vmatpush1.msra.mxu0 0.0
          %2990 = vmatprep.subr.mxu0 0.0
          %2991 = vmatpush1.msra.mxu0 0.0
          %2992 = vmatprep.subr.mxu0 0.0
          %2993 = vmatpush1.msra.mxu0 0.0
          %2994 = vmatprep.subr.mxu0 0.0
          %2995 = vmatpush1.msra.mxu0 0.0
          %2996 = vmatprep.subr.mxu0 0.0
          %2997 = vmatpush1.msra.mxu0 0.0
          %2998 = vmatprep.subr.mxu0 0.0
          %2999 = vmatpush1.msra.mxu0 0.0
          %3000 = vmatprep.subr.mxu0 0.0
          %3001 = vmatpush1.msra.mxu0 0.0
          %3002 = vmatprep.subr.mxu0 0.0
          %3003 = vmatpush1.msra.mxu0 0.0
          %3004 = vmatprep.subr.mxu0 0.0
          %3005 = vmatpush1.msra.mxu0 0.0
          %3006 = vmatprep.subr.mxu0 0.0
          %3007 = vmatpush1.msra.mxu0 0.0
          %3008 = vmatprep.subr.mxu0 0.0
          %3009 = vmatpush1.msra.mxu0 0.0
          %3010 = vmatprep.subr.mxu0 0.0
          %3011 = vmatpush1.msra.mxu0 0.0
          %3012 = vmatprep.subr.mxu0 0.0
          %3013 = vmatpush1.msra.mxu0 0.0
          %3014 = vmatprep.subr.mxu0 0.0
          %3015 = vmatpush1.msra.mxu0 0.0
          %3016 = vmatprep.mubr.f32.mxu0 0.0
          %3017 = vmatmul.mubr.f32.gmra.mrb[0].mxu0 %v2950
          %v3018 = vpop.f32.mrb[0].mxu0
          %v3019 = vadd.f32 0.0, %v3018
          %v3020 = vpop.f32.mrb[0].mxu0
          %v3021 = vadd.f32 0.0, %v3020
          %3022 = vdwg.mxu0
          %3023 = vmatprep.subr.mxu0 %v2927
          %3024 = vmatpush1.msra.mxu0 %v2926
          %3025 = vmatprep.subr.mxu0 %v2931
          %3026 = vmatpush1.msra.mxu0 %v2930
          %3027 = vmatprep.subr.mxu0 %v2935
          %3028 = vmatpush1.msra.mxu0 %v2934
          %3029 = vmatprep.subr.mxu0 %v2939
          %3030 = vmatpush1.msra.mxu0 %v2938
          %3031 = vmatprep.subr.mxu0 0.0
          %3032 = vmatpush1.msra.mxu0 0.0
          %3033 = vmatprep.subr.mxu0 0.0
          %3034 = vmatpush1.msra.mxu0 0.0
          %3035 = vmatprep.subr.mxu0 0.0
          %3036 = vmatpush1.msra.mxu0 0.0
          %3037 = vmatprep.subr.mxu0 0.0
          %3038 = vmatpush1.msra.mxu0 0.0
          %3039 = vmatprep.subr.mxu0 0.0
          %3040 = vmatpush1.msra.mxu0 0.0
          %3041 = vmatprep.subr.mxu0 0.0
          %3042 = vmatpush1.msra.mxu0 0.0
          %3043 = vmatprep.subr.mxu0 0.0
          %3044 = vmatpush1.msra.mxu0 0.0
          %3045 = vmatprep.subr.mxu0 0.0
          %3046 = vmatpush1.msra.mxu0 0.0
          %3047 = vmatprep.subr.mxu0 0.0
          %3048 = vmatpush1.msra.mxu0 0.0
          %3049 = vmatprep.subr.mxu0 0.0
          %3050 = vmatpush1.msra.mxu0 0.0
          %3051 = vmatprep.subr.mxu0 0.0
          %3052 = vmatpush1.msra.mxu0 0.0
          %3053 = vmatprep.subr.mxu0 0.0
          %3054 = vmatpush1.msra.mxu0 0.0
          %3055 = vmatprep.subr.mxu0 0.0
          %3056 = vmatpush1.msra.mxu0 0.0
          %3057 = vmatprep.subr.mxu0 0.0
          %3058 = vmatpush1.msra.mxu0 0.0
          %3059 = vmatprep.subr.mxu0 0.0
          %3060 = vmatpush1.msra.mxu0 0.0
          %3061 = vmatprep.subr.mxu0 0.0
          %3062 = vmatpush1.msra.mxu0 0.0
          %3063 = vmatprep.subr.mxu0 0.0
          %3064 = vmatpush1.msra.mxu0 0.0
          %3065 = vmatprep.subr.mxu0 0.0
          %3066 = vmatpush1.msra.mxu0 0.0
          %3067 = vmatprep.subr.mxu0 0.0
          %3068 = vmatpush1.msra.mxu0 0.0
          %3069 = vmatprep.subr.mxu0 0.0
          %3070 = vmatpush1.msra.mxu0 0.0
          %3071 = vmatprep.subr.mxu0 0.0
          %3072 = vmatpush1.msra.mxu0 0.0
          %3073 = vmatprep.subr.mxu0 0.0
          %3074 = vmatpush1.msra.mxu0 0.0
          %3075 = vmatprep.subr.mxu0 0.0
          %3076 = vmatpush1.msra.mxu0 0.0
          %3077 = vmatprep.subr.mxu0 0.0
          %3078 = vmatpush1.msra.mxu0 0.0
          %3079 = vmatprep.subr.mxu0 0.0
          %3080 = vmatpush1.msra.mxu0 0.0
          %3081 = vmatprep.subr.mxu0 0.0
          %3082 = vmatpush1.msra.mxu0 0.0
          %3083 = vmatprep.subr.mxu0 0.0
          %3084 = vmatpush1.msra.mxu0 0.0
          %3085 = vmatprep.subr.mxu0 0.0
          %3086 = vmatpush1.msra.mxu0 0.0
          %3087 = vmatprep.mubr.f32.mxu0 0.0
          %3088 = vmatmul.mubr.f32.gmra.mrb[0].mxu0 %v2950
          %v3089 = vpop.f32.mrb[0].mxu0
          %v3090 = vadd.f32 0.0, %v3089
          %v3091 = vpop.f32.mrb[0].mxu0
          %v3092 = vadd.f32 0.0, %v3091
          %3093 = vdwg.mxu0
          %3095 = vrot.lane.b32.xlu0 %v3019, 96
          %v3096 = vpop.permute.xlu0 %3095
          %3098 = vrot.lane.b32.xlu0 %v3019, 64
          %v3099 = vpop.permute.xlu0 %3098
          %3101 = vrot.lane.b32.xlu0 %v3019, 32
          %v3102 = vpop.permute.xlu0 %3101
          %3105 = vrot.lane.b32.xlu0 %v3021, 96
          %v3106 = vpop.permute.xlu0 %3105
          %3108 = vrot.lane.b32.xlu0 %v3021, 64
          %v3109 = vpop.permute.xlu0 %3108
          %3111 = vrot.lane.b32.xlu0 %v3021, 32
          %v3112 = vpop.permute.xlu0 %3111
          %3115 = vrot.lane.b32.xlu0 %v3090, 96
          %v3116 = vpop.permute.xlu0 %3115
          %3118 = vrot.lane.b32.xlu0 %v3090, 64
          %v3119 = vpop.permute.xlu0 %3118
          %3121 = vrot.lane.b32.xlu0 %v3090, 32
          %v3122 = vpop.permute.xlu0 %3121
          %3125 = vrot.lane.b32.xlu0 %v3092, 96
          %v3126 = vpop.permute.xlu0 %3125
          %3128 = vrot.lane.b32.xlu0 %v3092, 64
          %v3129 = vpop.permute.xlu0 %3128
          %3131 = vrot.lane.b32.xlu0 %v3092, 32
          %v3132 = vpop.permute.xlu0 %3131
          %v3134 = vcombine.low %v3019, %v3099
          %v3135 = vcombine.high %v3019, %v3099
          %v3137 = vunpack.c.l.s4 1983009808
          %v3138 = vunpack.c.0.s8 %v3137
          %v3139 = vlaneseq
          %v3140 = vshrl.u32 %v3139, 7
          %v3141 = vsub.s32 %v3138, %v3140
          %v3142 = vrot.slane %v3134, %v3141
          %v3144 = vunpack.c.l.s4 1983009808
          %v3145 = vunpack.c.0.s8 %v3144
          %v3146 = vlaneseq
          %v3147 = vshrl.u32 %v3146, 7
          %v3148 = vsub.s32 %v3145, %v3147
          %v3149 = vrot.slane %v3135, %v3148
          %v3150 = vcombine.low %v3096, %v3102
          %v3151 = vcombine.high %v3096, %v3102
          %v3153 = vunpack.c.l.s4 1983009808
          %v3154 = vunpack.c.0.s8 %v3153
          %v3155 = vlaneseq
          %v3156 = vshrl.u32 %v3155, 7
          %v3157 = vsub.s32 %v3154, %v3156
          %v3158 = vrot.slane %v3150, %v3157
          %v3160 = vunpack.c.l.s4 1983009808
          %v3161 = vunpack.c.0.s8 %v3160
          %v3162 = vlaneseq
          %v3163 = vshrl.u32 %v3162, 7
          %v3164 = vsub.s32 %v3161, %v3163
          %v3165 = vrot.slane %v3151, %v3164
          %v3166 = vcombine.low %v3021, %v3109
          %v3167 = vcombine.high %v3021, %v3109
          %v3169 = vunpack.c.l.s4 1983009808
          %v3170 = vunpack.c.0.s8 %v3169
          %v3171 = vlaneseq
          %v3172 = vshrl.u32 %v3171, 7
          %v3173 = vsub.s32 %v3170, %v3172
          %v3174 = vrot.slane %v3166, %v3173
          %v3176 = vunpack.c.l.s4 1983009808
          %v3177 = vunpack.c.0.s8 %v3176
          %v3178 = vlaneseq
          %v3179 = vshrl.u32 %v3178, 7
          %v3180 = vsub.s32 %v3177, %v3179
          %v3181 = vrot.slane %v3167, %v3180
          %v3182 = vcombine.low %v3106, %v3112
          %v3183 = vcombine.high %v3106, %v3112
          %v3185 = vunpack.c.l.s4 1983009808
          %v3186 = vunpack.c.0.s8 %v3185
          %v3187 = vlaneseq
          %v3188 = vshrl.u32 %v3187, 7
          %v3189 = vsub.s32 %v3186, %v3188
          %v3190 = vrot.slane %v3182, %v3189
          %v3192 = vunpack.c.l.s4 1983009808
          %v3193 = vunpack.c.0.s8 %v3192
          %v3194 = vlaneseq
          %v3195 = vshrl.u32 %v3194, 7
          %v3196 = vsub.s32 %v3193, %v3195
          %v3197 = vrot.slane %v3183, %v3196
          %v3198 = vcombine.low %v3142, %v3158
          %v3199 = vcombine.high %v3142, %v3158
          %v3201 = vunpack.c.l.s4 1934713408
          %v3202 = vunpack.c.0.s8 %v3201
          %v3203 = vlaneseq
          %v3204 = vshrl.u32 %v3203, 7
          %v3205 = vsub.s32 %v3202, %v3204
          %v3206 = vrot.slane %v3198, %v3205
          %v3208 = vunpack.c.l.s4 1934713408
          %v3209 = vunpack.c.0.s8 %v3208
          %v3210 = vlaneseq
          %v3211 = vshrl.u32 %v3210, 7
          %v3212 = vsub.s32 %v3209, %v3211
          %v3213 = vrot.slane %v3199, %v3212
          %v3214 = vcombine.low %v3149, %v3165
          %v3215 = vcombine.high %v3149, %v3165
          %v3217 = vunpack.c.l.s4 1934713408
          %v3218 = vunpack.c.0.s8 %v3217
          %v3219 = vlaneseq
          %v3220 = vshrl.u32 %v3219, 7
          %v3221 = vsub.s32 %v3218, %v3220
          %v3222 = vrot.slane %v3214, %v3221
          %v3224 = vunpack.c.l.s4 1934713408
          %v3225 = vunpack.c.0.s8 %v3224
          %v3226 = vlaneseq
          %v3227 = vshrl.u32 %v3226, 7
          %v3228 = vsub.s32 %v3225, %v3227
          %v3229 = vrot.slane %v3215, %v3228
          %v3230 = vcombine.low %v3174, %v3190
          %v3231 = vcombine.high %v3174, %v3190
          %v3233 = vunpack.c.l.s4 1934713408
          %v3234 = vunpack.c.0.s8 %v3233
          %v3235 = vlaneseq
          %v3236 = vshrl.u32 %v3235, 7
          %v3237 = vsub.s32 %v3234, %v3236
          %v3238 = vrot.slane %v3230, %v3237
          %v3240 = vunpack.c.l.s4 1934713408
          %v3241 = vunpack.c.0.s8 %v3240
          %v3242 = vlaneseq
          %v3243 = vshrl.u32 %v3242, 7
          %v3244 = vsub.s32 %v3241, %v3243
          %v3245 = vrot.slane %v3231, %v3244
          %v3246 = vcombine.low %v3181, %v3197
          %v3247 = vcombine.high %v3181, %v3197
          %v3249 = vunpack.c.l.s4 1934713408
          %v3250 = vunpack.c.0.s8 %v3249
          %v3251 = vlaneseq
          %v3252 = vshrl.u32 %v3251, 7
          %v3253 = vsub.s32 %v3250, %v3252
          %v3254 = vrot.slane %v3246, %v3253
          %v3256 = vunpack.c.l.s4 1934713408
          %v3257 = vunpack.c.0.s8 %v3256
          %v3258 = vlaneseq
          %v3259 = vshrl.u32 %v3258, 7
          %v3260 = vsub.s32 %v3257, %v3259
          %v3261 = vrot.slane %v3247, %v3260
          %v3262 = vcombine.low %v3206, %v3238
          %v3263 = vcombine.high %v3206, %v3238
          %v3264 = vcombine.low %v3213, %v3245
          %v3265 = vcombine.high %v3213, %v3245
          %v3266 = vcombine.low %v3222, %v3254
          %v3267 = vcombine.high %v3222, %v3254
          %v3268 = vcombine.low %v3229, %v3261
          %v3269 = vcombine.high %v3229, %v3261
          %v3270 = vcombine.low %v3090, %v3119
          %v3271 = vcombine.high %v3090, %v3119
          %v3273 = vunpack.c.l.s4 1983009808
          %v3274 = vunpack.c.0.s8 %v3273
          %v3275 = vlaneseq
          %v3276 = vshrl.u32 %v3275, 7
          %v3277 = vsub.s32 %v3274, %v3276
          %v3278 = vrot.slane %v3270, %v3277
          %v3280 = vunpack.c.l.s4 1983009808
          %v3281 = vunpack.c.0.s8 %v3280
          %v3282 = vlaneseq
          %v3283 = vshrl.u32 %v3282, 7
          %v3284 = vsub.s32 %v3281, %v3283
          %v3285 = vrot.slane %v3271, %v3284
          %v3286 = vcombine.low %v3116, %v3122
          %v3287 = vcombine.high %v3116, %v3122
          %v3289 = vunpack.c.l.s4 1983009808
          %v3290 = vunpack.c.0.s8 %v3289
          %v3291 = vlaneseq
          %v3292 = vshrl.u32 %v3291, 7
          %v3293 = vsub.s32 %v3290, %v3292
          %v3294 = vrot.slane %v3286, %v3293
          %v3296 = vunpack.c.l.s4 1983009808
          %v3297 = vunpack.c.0.s8 %v3296
          %v3298 = vlaneseq
          %v3299 = vshrl.u32 %v3298, 7
          %v3300 = vsub.s32 %v3297, %v3299
          %v3301 = vrot.slane %v3287, %v3300
          %v3302 = vcombine.low %v3092, %v3129
          %v3303 = vcombine.high %v3092, %v3129
          %v3305 = vunpack.c.l.s4 1983009808
          %v3306 = vunpack.c.0.s8 %v3305
          %v3307 = vlaneseq
          %v3308 = vshrl.u32 %v3307, 7
          %v3309 = vsub.s32 %v3306, %v3308
          %v3310 = vrot.slane %v3302, %v3309
          %v3312 = vunpack.c.l.s4 1983009808
          %v3313 = vunpack.c.0.s8 %v3312
          %v3314 = vlaneseq
          %v3315 = vshrl.u32 %v3314, 7
          %v3316 = vsub.s32 %v3313, %v3315
          %v3317 = vrot.slane %v3303, %v3316
          %v3318 = vcombine.low %v3126, %v3132
          %v3319 = vcombine.high %v3126, %v3132
          %v3321 = vunpack.c.l.s4 1983009808
          %v3322 = vunpack.c.0.s8 %v3321
          %v3323 = vlaneseq
          %v3324 = vshrl.u32 %v3323, 7
          %v3325 = vsub.s32 %v3322, %v3324
          %v3326 = vrot.slane %v3318, %v3325
          %v3328 = vunpack.c.l.s4 1983009808
          %v3329 = vunpack.c.0.s8 %v3328
          %v3330 = vlaneseq
          %v3331 = vshrl.u32 %v3330, 7
          %v3332 = vsub.s32 %v3329, %v3331
          %v3333 = vrot.slane %v3319, %v3332
          %v3334 = vcombine.low %v3278, %v3294
          %v3335 = vcombine.high %v3278, %v3294
          %v3337 = vunpack.c.l.s4 1934713408
          %v3338 = vunpack.c.0.s8 %v3337
          %v3339 = vlaneseq
          %v3340 = vshrl.u32 %v3339, 7
          %v3341 = vsub.s32 %v3338, %v3340
          %v3342 = vrot.slane %v3334, %v3341
          %v3344 = vunpack.c.l.s4 1934713408
          %v3345 = vunpack.c.0.s8 %v3344
          %v3346 = vlaneseq
          %v3347 = vshrl.u32 %v3346, 7
          %v3348 = vsub.s32 %v3345, %v3347
          %v3349 = vrot.slane %v3335, %v3348
          %v3350 = vcombine.low %v3285, %v3301
          %v3351 = vcombine.high %v3285, %v3301
          %v3353 = vunpack.c.l.s4 1934713408
          %v3354 = vunpack.c.0.s8 %v3353
          %v3355 = vlaneseq
          %v3356 = vshrl.u32 %v3355, 7
          %v3357 = vsub.s32 %v3354, %v3356
          %v3358 = vrot.slane %v3350, %v3357
          %v3360 = vunpack.c.l.s4 1934713408
          %v3361 = vunpack.c.0.s8 %v3360
          %v3362 = vlaneseq
          %v3363 = vshrl.u32 %v3362, 7
          %v3364 = vsub.s32 %v3361, %v3363
          %v3365 = vrot.slane %v3351, %v3364
          %v3366 = vcombine.low %v3310, %v3326
          %v3367 = vcombine.high %v3310, %v3326
          %v3369 = vunpack.c.l.s4 1934713408
          %v3370 = vunpack.c.0.s8 %v3369
          %v3371 = vlaneseq
          %v3372 = vshrl.u32 %v3371, 7
          %v3373 = vsub.s32 %v3370, %v3372
          %v3374 = vrot.slane %v3366, %v3373
          %v3376 = vunpack.c.l.s4 1934713408
          %v3377 = vunpack.c.0.s8 %v3376
          %v3378 = vlaneseq
          %v3379 = vshrl.u32 %v3378, 7
          %v3380 = vsub.s32 %v3377, %v3379
          %v3381 = vrot.slane %v3367, %v3380
          %v3382 = vcombine.low %v3317, %v3333
          %v3383 = vcombine.high %v3317, %v3333
          %v3385 = vunpack.c.l.s4 1934713408
          %v3386 = vunpack.c.0.s8 %v3385
          %v3387 = vlaneseq
          %v3388 = vshrl.u32 %v3387, 7
          %v3389 = vsub.s32 %v3386, %v3388
          %v3390 = vrot.slane %v3382, %v3389
          %v3392 = vunpack.c.l.s4 1934713408
          %v3393 = vunpack.c.0.s8 %v3392
          %v3394 = vlaneseq
          %v3395 = vshrl.u32 %v3394, 7
          %v3396 = vsub.s32 %v3393, %v3395
          %v3397 = vrot.slane %v3383, %v3396
          %v3398 = vcombine.low %v3342, %v3374
          %v3399 = vcombine.high %v3342, %v3374
          %v3400 = vcombine.low %v3349, %v3381
          %v3401 = vcombine.high %v3349, %v3381
          %v3402 = vcombine.low %v3358, %v3390
          %v3403 = vcombine.high %v3358, %v3390
          %v3404 = vcombine.low %v3365, %v3397
          %v3405 = vcombine.high %v3365, %v3397
          %v3407 = vcombine.high %v2923, %v2923
          %v3409 = vunpack.c.l.s4 1966171168
          %v3410 = vunpack.c.0.s8 %v3409
          %v3411 = vlaneseq
          %v3412 = vshrl.u32 %v3411, 7
          %v3413 = vsub.s32 %v3410, %v3412
          %v3414 = vrot.slane %v2923, %v3413
          %v3416 = vunpack.c.l.s4 1966171168
          %v3417 = vunpack.c.0.s8 %v3416
          %v3418 = vlaneseq
          %v3419 = vshrl.u32 %v3418, 7
          %v3420 = vsub.s32 %v3417, %v3419
          %v3421 = vrot.slane %v3407, %v3420
          %v3422 = vcombine.high %v3414, %v3414
          %v3423 = vcombine.high %v3421, %v3421
          %v3425 = vunpack.c.l.s4 1966171168
          %v3426 = vunpack.c.0.s8 %v3425
          %v3427 = vlaneseq
          %v3428 = vshrl.u32 %v3427, 7
          %v3429 = vsub.s32 %v3426, %v3428
          %v3430 = vrot.slane %v3414, %v3429
          %v3432 = vunpack.c.l.s4 1966171168
          %v3433 = vunpack.c.0.s8 %v3432
          %v3434 = vlaneseq
          %v3435 = vshrl.u32 %v3434, 7
          %v3436 = vsub.s32 %v3433, %v3435
          %v3437 = vrot.slane %v3421, %v3436
          %v3439 = vunpack.c.l.s4 1966171168
          %v3440 = vunpack.c.0.s8 %v3439
          %v3441 = vlaneseq
          %v3442 = vshrl.u32 %v3441, 7
          %v3443 = vsub.s32 %v3440, %v3442
          %v3444 = vrot.slane %v3422, %v3443
          %v3446 = vunpack.c.l.s4 1966171168
          %v3447 = vunpack.c.0.s8 %v3446
          %v3448 = vlaneseq
          %v3449 = vshrl.u32 %v3448, 7
          %v3450 = vsub.s32 %v3447, %v3449
          %v3451 = vrot.slane %v3423, %v3450
          %v3452 = vcombine.high %v3430, %v3430
          %v3453 = vcombine.high %v3437, %v3437
          %v3454 = vcombine.high %v3444, %v3444
          %v3455 = vcombine.high %v3451, %v3451
          %v3456 = vlaneseq
          %v3457 = vshrl.u32 %v3456, 7
          %v3458 = vsub.s32 0, %v3457
          %v3459 = vrot.slane %v3430, %v3458
          %v3460 = vlaneseq
          %v3461 = vshrl.u32 %v3460, 7
          %v3462 = vsub.s32 0, %v3461
          %v3463 = vrot.slane %v3444, %v3462
          %v3464 = vlaneseq
          %v3465 = vshrl.u32 %v3464, 7
          %v3466 = vsub.s32 0, %v3465
          %v3467 = vrot.slane %v3452, %v3466
          %v3468 = vlaneseq
          %v3469 = vshrl.u32 %v3468, 7
          %v3470 = vsub.s32 0, %v3469
          %v3471 = vrot.slane %v3454, %v3470
          %v3472 = vlaneseq
          %v3473 = vshrl.u32 %v3472, 7
          %v3474 = vsub.s32 0, %v3473
          %v3475 = vrot.slane %v3437, %v3474
          %v3476 = vlaneseq
          %v3477 = vshrl.u32 %v3476, 7
          %v3478 = vsub.s32 0, %v3477
          %v3479 = vrot.slane %v3451, %v3478
          %v3480 = vlaneseq
          %v3481 = vshrl.u32 %v3480, 7
          %v3482 = vsub.s32 0, %v3481
          %v3483 = vrot.slane %v3453, %v3482
          %v3484 = vlaneseq
          %v3485 = vshrl.u32 %v3484, 7
          %v3486 = vsub.s32 0, %v3485
          %v3487 = vrot.slane %v3455, %v3486
          %v3496 = vmul.f32 %v3262, %v3459
          %v3497 = vmul.f32 %v3398, %v3459
          %v3498 = vmul.f32 %v3263, %v3463
          %v3499 = vmul.f32 %v3399, %v3463
          %v3500 = vmul.f32 %v3264, %v3467
          %v3501 = vmul.f32 %v3400, %v3467
          %v3502 = vmul.f32 %v3265, %v3471
          %v3503 = vmul.f32 %v3401, %v3471
          %v3504 = vmul.f32 %v3266, %v3475
          %v3505 = vmul.f32 %v3402, %v3475
          %v3506 = vmul.f32 %v3267, %v3479
          %v3507 = vmul.f32 %v3403, %v3479
          %v3508 = vmul.f32 %v3268, %v3483
          %v3509 = vmul.f32 %v3404, %v3483
          %v3510 = vmul.f32 %v3269, %v3487
          %v3511 = vmul.f32 %v3405, %v3487
          %v3512 = vsel %vm1334, %v3496, 0.0
          %3513 = vadd.xlane.f32.xlu0 %v3512
          %v3514 = vpop.xlane.xlu0 %3513
          %v3515 = vsel %vm1334, %v3497, 0.0
          %3516 = vadd.xlane.f32.xlu0 %v3515
          %v3517 = vpop.xlane.xlu0 %3516
          %v3518 = vsel %vm1334, %v3498, 0.0
          %3519 = vadd.xlane.f32.xlu0 %v3518
          %v3520 = vpop.xlane.xlu0 %3519
          %v3521 = vsel %vm1334, %v3499, 0.0
          %3522 = vadd.xlane.f32.xlu0 %v3521
          %v3523 = vpop.xlane.xlu0 %3522
          %v3524 = vsel %vm1334, %v3500, 0.0
          %3525 = vadd.xlane.f32.xlu0 %v3524
          %v3526 = vpop.xlane.xlu0 %3525
          %v3527 = vsel %vm1334, %v3501, 0.0
          %3528 = vadd.xlane.f32.xlu0 %v3527
          %v3529 = vpop.xlane.xlu0 %3528
          %v3530 = vsel %vm1334, %v3502, 0.0
          %3531 = vadd.xlane.f32.xlu0 %v3530
          %v3532 = vpop.xlane.xlu0 %3531
          %v3533 = vsel %vm1334, %v3503, 0.0
          %3534 = vadd.xlane.f32.xlu0 %v3533
          %v3535 = vpop.xlane.xlu0 %3534
          %v3536 = vsel %vm1334, %v3504, 0.0
          %3537 = vadd.xlane.f32.xlu0 %v3536
          %v3538 = vpop.xlane.xlu0 %3537
          %v3539 = vsel %vm1334, %v3505, 0.0
          %3540 = vadd.xlane.f32.xlu0 %v3539
          %v3541 = vpop.xlane.xlu0 %3540
          %v3542 = vsel %vm1334, %v3506, 0.0
          %3543 = vadd.xlane.f32.xlu0 %v3542
          %v3544 = vpop.xlane.xlu0 %3543
          %v3545 = vsel %vm1334, %v3507, 0.0
          %3546 = vadd.xlane.f32.xlu0 %v3545
          %v3547 = vpop.xlane.xlu0 %3546
          %v3548 = vsel %vm1334, %v3508, 0.0
          %3549 = vadd.xlane.f32.xlu0 %v3548
          %v3550 = vpop.xlane.xlu0 %3549
          %v3551 = vsel %vm1334, %v3509, 0.0
          %3552 = vadd.xlane.f32.xlu0 %v3551
          %v3553 = vpop.xlane.xlu0 %3552
          %v3554 = vsel %vm1334, %v3510, 0.0
          %3555 = vadd.xlane.f32.xlu0 %v3554
          %v3556 = vpop.xlane.xlu0 %3555
          %v3557 = vsel %vm1334, %v3511, 0.0
          %3558 = vadd.xlane.f32.xlu0 %v3557
          %v3559 = vpop.xlane.xlu0 %3558
          %3560 = vrot.lane.b32.xlu0 %v2923, 32
          %v3561 = vpop.permute.xlu0 %3560
          %v3563 = vsel %vm1334, %v2921, %v3561
          %vm3564 = vcmask 523264
          %v3566 = vsel %vm3564, %v3563, 0
          %3568 = vmatprep.subr.mxu0 0.0
          %3569 = vmatpush1.msra.mxu0 %v2940
          %3570 = vmatprep.subr.mxu0 0.0
          %3571 = vmatpush1.msra.mxu0 %v2941
          %3572 = vmatprep.subr.mxu0 0.0
          %3573 = vmatpush1.msra.mxu0 %v2942
          %3574 = vmatprep.subr.mxu0 0.0
          %3575 = vmatpush1.msra.mxu0 %v2943
          %3576 = vmatprep.subr.mxu0 0.0
          %3577 = vmatpush1.msra.mxu0 %v2944
          %3578 = vmatprep.subr.mxu0 0.0
          %3579 = vmatpush1.msra.mxu0 %v2945
          %3580 = vmatprep.subr.mxu0 0.0
          %3581 = vmatpush1.msra.mxu0 %v2946
          %3582 = vmatprep.subr.mxu0 0.0
          %3583 = vmatpush1.msra.mxu0 %v2947
          %3584 = vmatprep.subr.mxu0 0.0
          %3585 = vmatpush1.msra.mxu0 0.0
          %3586 = vmatprep.subr.mxu0 0.0
          %3587 = vmatpush1.msra.mxu0 0.0
          %3588 = vmatprep.subr.mxu0 0.0
          %3589 = vmatpush1.msra.mxu0 0.0
          %3590 = vmatprep.subr.mxu0 0.0
          %3591 = vmatpush1.msra.mxu0 0.0
          %3592 = vmatprep.subr.mxu0 0.0
          %3593 = vmatpush1.msra.mxu0 0.0
          %3594 = vmatprep.subr.mxu0 0.0
          %3595 = vmatpush1.msra.mxu0 0.0
          %3596 = vmatprep.subr.mxu0 0.0
          %3597 = vmatpush1.msra.mxu0 0.0
          %3598 = vmatprep.subr.mxu0 0.0
          %3599 = vmatpush1.msra.mxu0 0.0
          %3600 = vmatprep.subr.mxu0 0.0
          %3601 = vmatpush1.msra.mxu0 0.0
          %3602 = vmatprep.subr.mxu0 0.0
          %3603 = vmatpush1.msra.mxu0 0.0
          %3604 = vmatprep.subr.mxu0 0.0
          %3605 = vmatpush1.msra.mxu0 0.0
          %3606 = vmatprep.subr.mxu0 0.0
          %3607 = vmatpush1.msra.mxu0 0.0
          %3608 = vmatprep.subr.mxu0 0.0
          %3609 = vmatpush1.msra.mxu0 0.0
          %3610 = vmatprep.subr.mxu0 0.0
          %3611 = vmatpush1.msra.mxu0 0.0
          %3612 = vmatprep.subr.mxu0 0.0
          %3613 = vmatpush1.msra.mxu0 0.0
          %3614 = vmatprep.subr.mxu0 0.0
          %3615 = vmatpush1.msra.mxu0 0.0
          %3616 = vmatprep.subr.mxu0 0.0
          %3617 = vmatpush1.msra.mxu0 0.0
          %3618 = vmatprep.subr.mxu0 0.0
          %3619 = vmatpush1.msra.mxu0 0.0
          %3620 = vmatprep.subr.mxu0 0.0
          %3621 = vmatpush1.msra.mxu0 0.0
          %3622 = vmatprep.subr.mxu0 0.0
          %3623 = vmatpush1.msra.mxu0 0.0
          %3624 = vmatprep.subr.mxu0 0.0
          %3625 = vmatpush1.msra.mxu0 0.0
          %3626 = vmatprep.subr.mxu0 0.0
          %3627 = vmatpush1.msra.mxu0 0.0
          %3628 = vmatprep.subr.mxu0 0.0
          %3629 = vmatpush1.msra.mxu0 0.0
          %3630 = vmatprep.subr.mxu0 0.0
          %3631 = vmatpush1.msra.mxu0 0.0
          %3632 = vmatprep.mubr.f32.mxu0 0.0
          %3633 = vmatmul.mubr.f32.gmra.mrb[0].mxu0 %v3566
          %v3634 = vpop.f32.mrb[0].mxu0
          %v3635 = vadd.f32 0.0, %v3634
          %v3636 = vpop.f32.mrb[0].mxu0
          %3637 = vdwg.mxu0
          %v3639 = vlaneseq
          %v3640 = vshrl.u32 %v3639, 7
          %v3641 = vsub.s32 0, %v3640
          %v3642 = vrot.slane %v3635, %v3641
          %3644 = vbcast.lane.b32.xlu0 %v3642, 256
          %v3645 = vpop.permute.xlu0 %3644
          %s3647 = sor.u32 256, 8
          %3648 = vbcast.lane.b32.xlu0 %v3642, %s3647
          %v3649 = vpop.permute.xlu0 %3648
          %v3650 = vlaneseq
          %v3651 = vshrl.u32 %v3650, 7
          %v3652 = vsub.s32 1, %v3651
          %v3653 = vrot.slane %v3635, %v3652
          %3655 = vbcast.lane.b32.xlu0 %v3653, 256
          %v3656 = vpop.permute.xlu0 %3655
          %s3658 = sor.u32 256, 8
          %3659 = vbcast.lane.b32.xlu0 %v3653, %s3658
          %v3660 = vpop.permute.xlu0 %3659
          %v3661 = vlaneseq
          %v3662 = vshrl.u32 %v3661, 7
          %v3663 = vsub.s32 2, %v3662
          %v3664 = vrot.slane %v3635, %v3663
          %3666 = vbcast.lane.b32.xlu0 %v3664, 256
          %v3667 = vpop.permute.xlu0 %3666
          %s3669 = sor.u32 256, 8
          %3670 = vbcast.lane.b32.xlu0 %v3664, %s3669
          %v3671 = vpop.permute.xlu0 %3670
          %v3672 = vlaneseq
          %v3673 = vshrl.u32 %v3672, 7
          %v3674 = vsub.s32 3, %v3673
          %v3675 = vrot.slane %v3635, %v3674
          %3677 = vbcast.lane.b32.xlu0 %v3675, 256
          %v3678 = vpop.permute.xlu0 %3677
          %s3680 = sor.u32 256, 8
          %3681 = vbcast.lane.b32.xlu0 %v3675, %s3680
          %v3682 = vpop.permute.xlu0 %3681
          %v3683 = vlaneseq
          %v3684 = vshrl.u32 %v3683, 7
          %v3685 = vsub.s32 4, %v3684
          %v3686 = vrot.slane %v3635, %v3685
          %3688 = vbcast.lane.b32.xlu0 %v3686, 256
          %v3689 = vpop.permute.xlu0 %3688
          %s3691 = sor.u32 256, 8
          %3692 = vbcast.lane.b32.xlu0 %v3686, %s3691
          %v3693 = vpop.permute.xlu0 %3692
          %v3694 = vlaneseq
          %v3695 = vshrl.u32 %v3694, 7
          %v3696 = vsub.s32 5, %v3695
          %v3697 = vrot.slane %v3635, %v3696
          %3699 = vbcast.lane.b32.xlu0 %v3697, 256
          %v3700 = vpop.permute.xlu0 %3699
          %s3702 = sor.u32 256, 8
          %3703 = vbcast.lane.b32.xlu0 %v3697, %s3702
          %v3704 = vpop.permute.xlu0 %3703
          %v3705 = vlaneseq
          %v3706 = vshrl.u32 %v3705, 7
          %v3707 = vsub.s32 6, %v3706
          %v3708 = vrot.slane %v3635, %v3707
          %3710 = vbcast.lane.b32.xlu0 %v3708, 256
          %v3711 = vpop.permute.xlu0 %3710
          %s3713 = sor.u32 256, 8
          %3714 = vbcast.lane.b32.xlu0 %v3708, %s3713
          %v3715 = vpop.permute.xlu0 %3714
          %v3716 = vlaneseq
          %v3717 = vshrl.u32 %v3716, 7
          %v3718 = vsub.s32 7, %v3717
          %v3719 = vrot.slane %v3635, %v3718
          %3721 = vbcast.lane.b32.xlu0 %v3719, 256
          %v3722 = vpop.permute.xlu0 %3721
          %s3724 = sor.u32 256, 8
          %3725 = vbcast.lane.b32.xlu0 %v3719, %s3724
          %v3726 = vpop.permute.xlu0 %3725
          %v3743 = vadd.f32 %v3514, %v3645
          %v3744 = vadd.f32 %v3517, %v3649
          %v3745 = vadd.f32 %v3520, %v3656
          %v3746 = vadd.f32 %v3523, %v3660
          %v3747 = vadd.f32 %v3526, %v3667
          %v3748 = vadd.f32 %v3529, %v3671
          %v3749 = vadd.f32 %v3532, %v3678
          %v3750 = vadd.f32 %v3535, %v3682
          %v3751 = vadd.f32 %v3538, %v3689
          %v3752 = vadd.f32 %v3541, %v3693
          %v3753 = vadd.f32 %v3544, %v3700
          %v3754 = vadd.f32 %v3547, %v3704
          %v3755 = vadd.f32 %v3550, %v3711
          %v3756 = vadd.f32 %v3553, %v3715
          %v3757 = vadd.f32 %v3556, %v3722
          %v3758 = vadd.f32 %v3559, %v3726
          %v3760 = vlaneseq
          %v3761 = vshrl.u32 %v3760, 7
          %v3762 = vsub.s32 0, %v3761
          %v3763 = vrot.slane %v2948, %v3762
          %3765 = vbcast.lane.b32.xlu0 %v3763, 256
          %v3766 = vpop.permute.xlu0 %3765
          %s3768 = sor.u32 256, 8
          %3769 = vbcast.lane.b32.xlu0 %v3763, %s3768
          %v3770 = vpop.permute.xlu0 %3769
          %v3773 = vadd.f32 %v3743, %v3766
          %v3774 = vadd.f32 %v3744, %v3770
          %v3775 = vadd.f32 %v3745, %v3766
          %v3776 = vadd.f32 %v3746, %v3770
          %v3777 = vadd.f32 %v3747, %v3766
          %v3778 = vadd.f32 %v3748, %v3770
          %v3779 = vadd.f32 %v3749, %v3766
          %v3780 = vadd.f32 %v3750, %v3770
          %v3781 = vadd.f32 %v3751, %v3766
          %v3782 = vadd.f32 %v3752, %v3770
          %v3783 = vadd.f32 %v3753, %v3766
          %v3784 = vadd.f32 %v3754, %v3770
          %v3785 = vadd.f32 %v3755, %v3766
          %v3786 = vadd.f32 %v3756, %v3770
          %v3787 = vadd.f32 %v3757, %v3766
          %v3788 = vadd.f32 %v3758, %v3770
          %v3789 = vmax.f32 %v3773, 0.0
          %v3790 = vmax.f32 %v3774, 0.0
          %v3791 = vmax.f32 %v3775, 0.0
          %v3792 = vmax.f32 %v3776, 0.0
          %v3793 = vmax.f32 %v3777, 0.0
          %v3794 = vmax.f32 %v3778, 0.0
          %v3795 = vmax.f32 %v3779, 0.0
          %v3796 = vmax.f32 %v3780, 0.0
          %v3797 = vmax.f32 %v3781, 0.0
          %v3798 = vmax.f32 %v3782, 0.0
          %v3799 = vmax.f32 %v3783, 0.0
          %v3800 = vmax.f32 %v3784, 0.0
          %v3801 = vmax.f32 %v3785, 0.0
          %v3802 = vmax.f32 %v3786, 0.0
          %v3803 = vmax.f32 %v3787, 0.0
          %v3804 = vmax.f32 %v3788, 0.0
          %v3805 = vld [vmem:[#allocation3] sm:$0xff]
          %s3806 = scalar_lea.vmem [#allocation3], 8
          %v3807 = vld [vmem:[%s3806] sm:$0xff]
          %v3808 = vld [vmem:[%s51] sm:$0xff]
          %v3809 = vld [vmem:[%s51 + $0x8] sm:$0xff]
          %v3810 = vld [vmem:[%s53] sm:$0xff]
          %v3811 = vld [vmem:[%s53 + $0x8] sm:$0xff]
          %v3812 = vld [vmem:[%s53 + $0x10] sm:$0xff]
          %v3813 = vld [vmem:[%s53 + $0x18] sm:$0xff]
          %v3814 = vld [vmem:[%s55] sm:$0x1]
          %v3816 = vsel %vm1187, %v3805, 0
          %3818 = vmatprep.subr.mxu0 0.0
          %3819 = vmatpush1.msra.mxu0 %v3808
          %3820 = vmatprep.subr.mxu0 0.0
          %3821 = vmatpush1.msra.mxu0 %v3809
          %3822 = vmatprep.subr.mxu0 0.0
          %3823 = vmatpush1.msra.mxu0 0.0
          %3824 = vmatprep.subr.mxu0 0.0
          %3825 = vmatpush1.msra.mxu0 0.0
          %3826 = vmatprep.subr.mxu0 0.0
          %3827 = vmatpush1.msra.mxu0 0.0
          %3828 = vmatprep.subr.mxu0 0.0
          %3829 = vmatpush1.msra.mxu0 0.0
          %3830 = vmatprep.subr.mxu0 0.0
          %3831 = vmatpush1.msra.mxu0 0.0
          %3832 = vmatprep.subr.mxu0 0.0
          %3833 = vmatpush1.msra.mxu0 0.0
          %3834 = vmatprep.subr.mxu0 0.0
          %3835 = vmatpush1.msra.mxu0 0.0
          %3836 = vmatprep.subr.mxu0 0.0
          %3837 = vmatpush1.msra.mxu0 0.0
          %3838 = vmatprep.subr.mxu0 0.0
          %3839 = vmatpush1.msra.mxu0 0.0
          %3840 = vmatprep.subr.mxu0 0.0
          %3841 = vmatpush1.msra.mxu0 0.0
          %3842 = vmatprep.subr.mxu0 0.0
          %3843 = vmatpush1.msra.mxu0 0.0
          %3844 = vmatprep.subr.mxu0 0.0
          %3845 = vmatpush1.msra.mxu0 0.0
          %3846 = vmatprep.subr.mxu0 0.0
          %3847 = vmatpush1.msra.mxu0 0.0
          %3848 = vmatprep.subr.mxu0 0.0
          %3849 = vmatpush1.msra.mxu0 0.0
          %3850 = vmatprep.subr.mxu0 0.0
          %3851 = vmatpush1.msra.mxu0 0.0
          %3852 = vmatprep.subr.mxu0 0.0
          %3853 = vmatpush1.msra.mxu0 0.0
          %3854 = vmatprep.subr.mxu0 0.0
          %3855 = vmatpush1.msra.mxu0 0.0
          %3856 = vmatprep.subr.mxu0 0.0
          %3857 = vmatpush1.msra.mxu0 0.0
          %3858 = vmatprep.subr.mxu0 0.0
          %3859 = vmatpush1.msra.mxu0 0.0
          %3860 = vmatprep.subr.mxu0 0.0
          %3861 = vmatpush1.msra.mxu0 0.0
          %3862 = vmatprep.subr.mxu0 0.0
          %3863 = vmatpush1.msra.mxu0 0.0
          %3864 = vmatprep.subr.mxu0 0.0
          %3865 = vmatpush1.msra.mxu0 0.0
          %3866 = vmatprep.subr.mxu0 0.0
          %3867 = vmatpush1.msra.mxu0 0.0
          %3868 = vmatprep.subr.mxu0 0.0
          %3869 = vmatpush1.msra.mxu0 0.0
          %3870 = vmatprep.subr.mxu0 0.0
          %3871 = vmatpush1.msra.mxu0 0.0
          %3872 = vmatprep.subr.mxu0 0.0
          %3873 = vmatpush1.msra.mxu0 0.0
          %3874 = vmatprep.subr.mxu0 0.0
          %3875 = vmatpush1.msra.mxu0 0.0
          %3876 = vmatprep.subr.mxu0 0.0
          %3877 = vmatpush1.msra.mxu0 0.0
          %3878 = vmatprep.subr.mxu0 0.0
          %3879 = vmatpush1.msra.mxu0 0.0
          %3880 = vmatprep.subr.mxu0 0.0
          %3881 = vmatpush1.msra.mxu0 0.0
          %3882 = vmatprep.mubr.f32.mxu0 0.0
          %3883 = vmatmul.mubr.f32.gmra.mrb[0].mxu0 %v3816
          %v3884 = vpop.f32.mrb[0].mxu0
          %v3885 = vadd.f32 0.0, %v3884
          %v3886 = vpop.f32.mrb[0].mxu0
          %3887 = vdwg.mxu0
          %3889 = vrot.lane.b32.xlu0 %v3885, 112
          %v3890 = vpop.permute.xlu0 %3889
          %3892 = vrot.lane.b32.xlu0 %v3885, 96
          %v3893 = vpop.permute.xlu0 %3892
          %3895 = vrot.lane.b32.xlu0 %v3885, 80
          %v3896 = vpop.permute.xlu0 %3895
          %3898 = vrot.lane.b32.xlu0 %v3885, 64
          %v3899 = vpop.permute.xlu0 %3898
          %3901 = vrot.lane.b32.xlu0 %v3885, 48
          %v3902 = vpop.permute.xlu0 %3901
          %3904 = vrot.lane.b32.xlu0 %v3885, 32
          %v3905 = vpop.permute.xlu0 %3904
          %3907 = vrot.lane.b32.xlu0 %v3885, 16
          %v3908 = vpop.permute.xlu0 %3907
          %v3910 = vcombine.low %v3885, %v3893
          %v3911 = vcombine.high %v3885, %v3893
          %v3913 = vunpack.c.l.s4 1983009808
          %v3914 = vunpack.c.0.s8 %v3913
          %v3915 = vlaneseq
          %v3916 = vshrl.u32 %v3915, 7
          %v3917 = vsub.s32 %v3914, %v3916
          %v3918 = vrot.slane %v3910, %v3917
          %v3920 = vunpack.c.l.s4 1983009808
          %v3921 = vunpack.c.0.s8 %v3920
          %v3922 = vlaneseq
          %v3923 = vshrl.u32 %v3922, 7
          %v3924 = vsub.s32 %v3921, %v3923
          %v3925 = vrot.slane %v3911, %v3924
          %v3926 = vcombine.low %v3890, %v3896
          %v3927 = vcombine.high %v3890, %v3896
          %v3929 = vunpack.c.l.s4 1983009808
          %v3930 = vunpack.c.0.s8 %v3929
          %v3931 = vlaneseq
          %v3932 = vshrl.u32 %v3931, 7
          %v3933 = vsub.s32 %v3930, %v3932
          %v3934 = vrot.slane %v3926, %v3933
          %v3936 = vunpack.c.l.s4 1983009808
          %v3937 = vunpack.c.0.s8 %v3936
          %v3938 = vlaneseq
          %v3939 = vshrl.u32 %v3938, 7
          %v3940 = vsub.s32 %v3937, %v3939
          %v3941 = vrot.slane %v3927, %v3940
          %v3942 = vcombine.low %v3899, %v3905
          %v3943 = vcombine.high %v3899, %v3905
          %v3945 = vunpack.c.l.s4 1983009808
          %v3946 = vunpack.c.0.s8 %v3945
          %v3947 = vlaneseq
          %v3948 = vshrl.u32 %v3947, 7
          %v3949 = vsub.s32 %v3946, %v3948
          %v3950 = vrot.slane %v3942, %v3949
          %v3952 = vunpack.c.l.s4 1983009808
          %v3953 = vunpack.c.0.s8 %v3952
          %v3954 = vlaneseq
          %v3955 = vshrl.u32 %v3954, 7
          %v3956 = vsub.s32 %v3953, %v3955
          %v3957 = vrot.slane %v3943, %v3956
          %v3958 = vcombine.low %v3902, %v3908
          %v3959 = vcombine.high %v3902, %v3908
          %v3961 = vunpack.c.l.s4 1983009808
          %v3962 = vunpack.c.0.s8 %v3961
          %v3963 = vlaneseq
          %v3964 = vshrl.u32 %v3963, 7
          %v3965 = vsub.s32 %v3962, %v3964
          %v3966 = vrot.slane %v3958, %v3965
          %v3968 = vunpack.c.l.s4 1983009808
          %v3969 = vunpack.c.0.s8 %v3968
          %v3970 = vlaneseq
          %v3971 = vshrl.u32 %v3970, 7
          %v3972 = vsub.s32 %v3969, %v3971
          %v3973 = vrot.slane %v3959, %v3972
          %v3974 = vcombine.low %v3918, %v3934
          %v3975 = vcombine.high %v3918, %v3934
          %v3977 = vunpack.c.l.s4 1934713408
          %v3978 = vunpack.c.0.s8 %v3977
          %v3979 = vlaneseq
          %v3980 = vshrl.u32 %v3979, 7
          %v3981 = vsub.s32 %v3978, %v3980
          %v3982 = vrot.slane %v3974, %v3981
          %v3984 = vunpack.c.l.s4 1934713408
          %v3985 = vunpack.c.0.s8 %v3984
          %v3986 = vlaneseq
          %v3987 = vshrl.u32 %v3986, 7
          %v3988 = vsub.s32 %v3985, %v3987
          %v3989 = vrot.slane %v3975, %v3988
          %v3990 = vcombine.low %v3925, %v3941
          %v3991 = vcombine.high %v3925, %v3941
          %v3993 = vunpack.c.l.s4 1934713408
          %v3994 = vunpack.c.0.s8 %v3993
          %v3995 = vlaneseq
          %v3996 = vshrl.u32 %v3995, 7
          %v3997 = vsub.s32 %v3994, %v3996
          %v3998 = vrot.slane %v3990, %v3997
          %v4000 = vunpack.c.l.s4 1934713408
          %v4001 = vunpack.c.0.s8 %v4000
          %v4002 = vlaneseq
          %v4003 = vshrl.u32 %v4002, 7
          %v4004 = vsub.s32 %v4001, %v4003
          %v4005 = vrot.slane %v3991, %v4004
          %v4006 = vcombine.low %v3950, %v3966
          %v4007 = vcombine.high %v3950, %v3966
          %v4009 = vunpack.c.l.s4 1934713408
          %v4010 = vunpack.c.0.s8 %v4009
          %v4011 = vlaneseq
          %v4012 = vshrl.u32 %v4011, 7
          %v4013 = vsub.s32 %v4010, %v4012
          %v4014 = vrot.slane %v4006, %v4013
          %v4016 = vunpack.c.l.s4 1934713408
          %v4017 = vunpack.c.0.s8 %v4016
          %v4018 = vlaneseq
          %v4019 = vshrl.u32 %v4018, 7
          %v4020 = vsub.s32 %v4017, %v4019
          %v4021 = vrot.slane %v4007, %v4020
          %v4022 = vcombine.low %v3957, %v3973
          %v4023 = vcombine.high %v3957, %v3973
          %v4025 = vunpack.c.l.s4 1934713408
          %v4026 = vunpack.c.0.s8 %v4025
          %v4027 = vlaneseq
          %v4028 = vshrl.u32 %v4027, 7
          %v4029 = vsub.s32 %v4026, %v4028
          %v4030 = vrot.slane %v4022, %v4029
          %v4032 = vunpack.c.l.s4 1934713408
          %v4033 = vunpack.c.0.s8 %v4032
          %v4034 = vlaneseq
          %v4035 = vshrl.u32 %v4034, 7
          %v4036 = vsub.s32 %v4033, %v4035
          %v4037 = vrot.slane %v4023, %v4036
          %v4038 = vcombine.low %v3982, %v4014
          %v4039 = vcombine.high %v3982, %v4014
          %v4040 = vcombine.low %v3989, %v4021
          %v4041 = vcombine.high %v3989, %v4021
          %v4042 = vcombine.low %v3998, %v4030
          %v4043 = vcombine.high %v3998, %v4030
          %v4044 = vcombine.low %v4005, %v4037
          %v4045 = vcombine.high %v4005, %v4037
          %v4047 = vcombine.high %v3807, %v3807
          %v4049 = vunpack.c.l.s4 1966171168
          %v4050 = vunpack.c.0.s8 %v4049
          %v4051 = vlaneseq
          %v4052 = vshrl.u32 %v4051, 7
          %v4053 = vsub.s32 %v4050, %v4052
          %v4054 = vrot.slane %v3807, %v4053
          %v4056 = vunpack.c.l.s4 1966171168
          %v4057 = vunpack.c.0.s8 %v4056
          %v4058 = vlaneseq
          %v4059 = vshrl.u32 %v4058, 7
          %v4060 = vsub.s32 %v4057, %v4059
          %v4061 = vrot.slane %v4047, %v4060
          %v4062 = vcombine.high %v4054, %v4054
          %v4063 = vcombine.high %v4061, %v4061
          %v4065 = vunpack.c.l.s4 1966171168
          %v4066 = vunpack.c.0.s8 %v4065
          %v4067 = vlaneseq
          %v4068 = vshrl.u32 %v4067, 7
          %v4069 = vsub.s32 %v4066, %v4068
          %v4070 = vrot.slane %v4054, %v4069
          %v4072 = vunpack.c.l.s4 1966171168
          %v4073 = vunpack.c.0.s8 %v4072
          %v4074 = vlaneseq
          %v4075 = vshrl.u32 %v4074, 7
          %v4076 = vsub.s32 %v4073, %v4075
          %v4077 = vrot.slane %v4061, %v4076
          %v4079 = vunpack.c.l.s4 1966171168
          %v4080 = vunpack.c.0.s8 %v4079
          %v4081 = vlaneseq
          %v4082 = vshrl.u32 %v4081, 7
          %v4083 = vsub.s32 %v4080, %v4082
          %v4084 = vrot.slane %v4062, %v4083
          %v4086 = vunpack.c.l.s4 1966171168
          %v4087 = vunpack.c.0.s8 %v4086
          %v4088 = vlaneseq
          %v4089 = vshrl.u32 %v4088, 7
          %v4090 = vsub.s32 %v4087, %v4089
          %v4091 = vrot.slane %v4063, %v4090
          %v4092 = vcombine.high %v4070, %v4070
          %v4093 = vcombine.high %v4077, %v4077
          %v4094 = vcombine.high %v4084, %v4084
          %v4095 = vcombine.high %v4091, %v4091
          %v4096 = vlaneseq
          %v4097 = vshrl.u32 %v4096, 7
          %v4098 = vsub.s32 0, %v4097
          %v4099 = vrot.slane %v4070, %v4098
          %v4100 = vlaneseq
          %v4101 = vshrl.u32 %v4100, 7
          %v4102 = vsub.s32 0, %v4101
          %v4103 = vrot.slane %v4084, %v4102
          %v4104 = vlaneseq
          %v4105 = vshrl.u32 %v4104, 7
          %v4106 = vsub.s32 0, %v4105
          %v4107 = vrot.slane %v4092, %v4106
          %v4108 = vlaneseq
          %v4109 = vshrl.u32 %v4108, 7
          %v4110 = vsub.s32 0, %v4109
          %v4111 = vrot.slane %v4094, %v4110
          %v4112 = vlaneseq
          %v4113 = vshrl.u32 %v4112, 7
          %v4114 = vsub.s32 0, %v4113
          %v4115 = vrot.slane %v4077, %v4114
          %v4116 = vlaneseq
          %v4117 = vshrl.u32 %v4116, 7
          %v4118 = vsub.s32 0, %v4117
          %v4119 = vrot.slane %v4091, %v4118
          %v4120 = vlaneseq
          %v4121 = vshrl.u32 %v4120, 7
          %v4122 = vsub.s32 0, %v4121
          %v4123 = vrot.slane %v4093, %v4122
          %v4124 = vlaneseq
          %v4125 = vshrl.u32 %v4124, 7
          %v4126 = vsub.s32 0, %v4125
          %v4127 = vrot.slane %v4095, %v4126
          %v4136 = vmul.f32 %v4038, %v4099
          %v4137 = vmul.f32 %v4039, %v4103
          %v4138 = vmul.f32 %v4040, %v4107
          %v4139 = vmul.f32 %v4041, %v4111
          %v4140 = vmul.f32 %v4042, %v4115
          %v4141 = vmul.f32 %v4043, %v4119
          %v4142 = vmul.f32 %v4044, %v4123
          %v4143 = vmul.f32 %v4045, %v4127
          %v4144 = vsel %vm1187, %v4136, 0.0
          %4145 = vadd.xlane.f32.xlu0 %v4144
          %v4146 = vpop.xlane.xlu0 %4145
          %v4147 = vsel %vm1187, %v4137, 0.0
          %4148 = vadd.xlane.f32.xlu0 %v4147
          %v4149 = vpop.xlane.xlu0 %4148
          %v4150 = vsel %vm1187, %v4138, 0.0
          %4151 = vadd.xlane.f32.xlu0 %v4150
          %v4152 = vpop.xlane.xlu0 %4151
          %v4153 = vsel %vm1187, %v4139, 0.0
          %4154 = vadd.xlane.f32.xlu0 %v4153
          %v4155 = vpop.xlane.xlu0 %4154
          %v4156 = vsel %vm1187, %v4140, 0.0
          %4157 = vadd.xlane.f32.xlu0 %v4156
          %v4158 = vpop.xlane.xlu0 %4157
          %v4159 = vsel %vm1187, %v4141, 0.0
          %4160 = vadd.xlane.f32.xlu0 %v4159
          %v4161 = vpop.xlane.xlu0 %4160
          %v4162 = vsel %vm1187, %v4142, 0.0
          %4163 = vadd.xlane.f32.xlu0 %v4162
          %v4164 = vpop.xlane.xlu0 %4163
          %v4165 = vsel %vm1187, %v4143, 0.0
          %4166 = vadd.xlane.f32.xlu0 %v4165
          %v4167 = vpop.xlane.xlu0 %4166
          %4168 = vrot.lane.b32.xlu0 %v3807, 16
          %v4169 = vpop.permute.xlu0 %4168
          %v4171 = vsel %vm1187, %v3805, %v4169
          %v4173 = vsel %vm1334, %v4171, 0
          %4175 = vmatprep.subr.mxu0 0.0
          %4176 = vmatpush1.msra.mxu0 %v3810
          %4177 = vmatprep.subr.mxu0 0.0
          %4178 = vmatpush1.msra.mxu0 %v3811
          %4179 = vmatprep.subr.mxu0 0.0
          %4180 = vmatpush1.msra.mxu0 %v3812
          %4181 = vmatprep.subr.mxu0 0.0
          %4182 = vmatpush1.msra.mxu0 %v3813
          %4183 = vmatprep.subr.mxu0 0.0
          %4184 = vmatpush1.msra.mxu0 0.0
          %4185 = vmatprep.subr.mxu0 0.0
          %4186 = vmatpush1.msra.mxu0 0.0
          %4187 = vmatprep.subr.mxu0 0.0
          %4188 = vmatpush1.msra.mxu0 0.0
          %4189 = vmatprep.subr.mxu0 0.0
          %4190 = vmatpush1.msra.mxu0 0.0
          %4191 = vmatprep.subr.mxu0 0.0
          %4192 = vmatpush1.msra.mxu0 0.0
          %4193 = vmatprep.subr.mxu0 0.0
          %4194 = vmatpush1.msra.mxu0 0.0
          %4195 = vmatprep.subr.mxu0 0.0
          %4196 = vmatpush1.msra.mxu0 0.0
          %4197 = vmatprep.subr.mxu0 0.0
          %4198 = vmatpush1.msra.mxu0 0.0
          %4199 = vmatprep.subr.mxu0 0.0
          %4200 = vmatpush1.msra.mxu0 0.0
          %4201 = vmatprep.subr.mxu0 0.0
          %4202 = vmatpush1.msra.mxu0 0.0
          %4203 = vmatprep.subr.mxu0 0.0
          %4204 = vmatpush1.msra.mxu0 0.0
          %4205 = vmatprep.subr.mxu0 0.0
          %4206 = vmatpush1.msra.mxu0 0.0
          %4207 = vmatprep.subr.mxu0 0.0
          %4208 = vmatpush1.msra.mxu0 0.0
          %4209 = vmatprep.subr.mxu0 0.0
          %4210 = vmatpush1.msra.mxu0 0.0
          %4211 = vmatprep.subr.mxu0 0.0
          %4212 = vmatpush1.msra.mxu0 0.0
          %4213 = vmatprep.subr.mxu0 0.0
          %4214 = vmatpush1.msra.mxu0 0.0
          %4215 = vmatprep.subr.mxu0 0.0
          %4216 = vmatpush1.msra.mxu0 0.0
          %4217 = vmatprep.subr.mxu0 0.0
          %4218 = vmatpush1.msra.mxu0 0.0
          %4219 = vmatprep.subr.mxu0 0.0
          %4220 = vmatpush1.msra.mxu0 0.0
          %4221 = vmatprep.subr.mxu0 0.0
          %4222 = vmatpush1.msra.mxu0 0.0
          %4223 = vmatprep.subr.mxu0 0.0
          %4224 = vmatpush1.msra.mxu0 0.0
          %4225 = vmatprep.subr.mxu0 0.0
          %4226 = vmatpush1.msra.mxu0 0.0
          %4227 = vmatprep.subr.mxu0 0.0
          %4228 = vmatpush1.msra.mxu0 0.0
          %4229 = vmatprep.subr.mxu0 0.0
          %4230 = vmatpush1.msra.mxu0 0.0
          %4231 = vmatprep.subr.mxu0 0.0
          %4232 = vmatpush1.msra.mxu0 0.0
          %4233 = vmatprep.subr.mxu0 0.0
          %4234 = vmatpush1.msra.mxu0 0.0
          %4235 = vmatprep.subr.mxu0 0.0
          %4236 = vmatpush1.msra.mxu0 0.0
          %4237 = vmatprep.subr.mxu0 0.0
          %4238 = vmatpush1.msra.mxu0 0.0
          %4239 = vmatprep.mubr.f32.mxu0 0.0
          %4240 = vmatmul.mubr.f32.gmra.mrb[0].mxu0 %v4173
          %v4241 = vpop.f32.mrb[0].mxu0
          %v4242 = vadd.f32 0.0, %v4241
          %v4243 = vpop.f32.mrb[0].mxu0
          %4244 = vdwg.mxu0
          %v4246 = vlaneseq
          %v4247 = vshrl.u32 %v4246, 7
          %v4248 = vsub.s32 0, %v4247
          %v4249 = vrot.slane %v4242, %v4248
          %4251 = vbcast.lane.b32.xlu0 %v4249, 256
          %v4252 = vpop.permute.xlu0 %4251
          %v4253 = vlaneseq
          %v4254 = vshrl.u32 %v4253, 7
          %v4255 = vsub.s32 1, %v4254
          %v4256 = vrot.slane %v4242, %v4255
          %4258 = vbcast.lane.b32.xlu0 %v4256, 256
          %v4259 = vpop.permute.xlu0 %4258
          %v4260 = vlaneseq
          %v4261 = vshrl.u32 %v4260, 7
          %v4262 = vsub.s32 2, %v4261
          %v4263 = vrot.slane %v4242, %v4262
          %4265 = vbcast.lane.b32.xlu0 %v4263, 256
          %v4266 = vpop.permute.xlu0 %4265
          %v4267 = vlaneseq
          %v4268 = vshrl.u32 %v4267, 7
          %v4269 = vsub.s32 3, %v4268
          %v4270 = vrot.slane %v4242, %v4269
          %4272 = vbcast.lane.b32.xlu0 %v4270, 256
          %v4273 = vpop.permute.xlu0 %4272
          %v4274 = vlaneseq
          %v4275 = vshrl.u32 %v4274, 7
          %v4276 = vsub.s32 4, %v4275
          %v4277 = vrot.slane %v4242, %v4276
          %4279 = vbcast.lane.b32.xlu0 %v4277, 256
          %v4280 = vpop.permute.xlu0 %4279
          %v4281 = vlaneseq
          %v4282 = vshrl.u32 %v4281, 7
          %v4283 = vsub.s32 5, %v4282
          %v4284 = vrot.slane %v4242, %v4283
          %4286 = vbcast.lane.b32.xlu0 %v4284, 256
          %v4287 = vpop.permute.xlu0 %4286
          %v4288 = vlaneseq
          %v4289 = vshrl.u32 %v4288, 7
          %v4290 = vsub.s32 6, %v4289
          %v4291 = vrot.slane %v4242, %v4290
          %4293 = vbcast.lane.b32.xlu0 %v4291, 256
          %v4294 = vpop.permute.xlu0 %4293
          %v4295 = vlaneseq
          %v4296 = vshrl.u32 %v4295, 7
          %v4297 = vsub.s32 7, %v4296
          %v4298 = vrot.slane %v4242, %v4297
          %4300 = vbcast.lane.b32.xlu0 %v4298, 256
          %v4301 = vpop.permute.xlu0 %4300
          %v4310 = vadd.f32 %v4146, %v4252
          %v4311 = vadd.f32 %v4149, %v4259
          %v4312 = vadd.f32 %v4152, %v4266
          %v4313 = vadd.f32 %v4155, %v4273
          %v4314 = vadd.f32 %v4158, %v4280
          %v4315 = vadd.f32 %v4161, %v4287
          %v4316 = vadd.f32 %v4164, %v4294
          %v4317 = vadd.f32 %v4167, %v4301
          %v4319 = vlaneseq
          %v4320 = vshrl.u32 %v4319, 7
          %v4321 = vsub.s32 0, %v4320
          %v4322 = vrot.slane %v3814, %v4321
          %4324 = vbcast.lane.b32.xlu0 %v4322, 256
          %v4325 = vpop.permute.xlu0 %4324
          %v4327 = vadd.f32 %v4310, %v4325
          %v4328 = vadd.f32 %v4311, %v4325
          %v4329 = vadd.f32 %v4312, %v4325
          %v4330 = vadd.f32 %v4313, %v4325
          %v4331 = vadd.f32 %v4314, %v4325
          %v4332 = vadd.f32 %v4315, %v4325
          %v4333 = vadd.f32 %v4316, %v4325
          %v4334 = vadd.f32 %v4317, %v4325
          %v4335 = vmax.f32 %v4327, 0.0
          %v4336 = vmax.f32 %v4328, 0.0
          %v4337 = vmax.f32 %v4329, 0.0
          %v4338 = vmax.f32 %v4330, 0.0
          %v4339 = vmax.f32 %v4331, 0.0
          %v4340 = vmax.f32 %v4332, 0.0
          %v4341 = vmax.f32 %v4333, 0.0
          %v4342 = vmax.f32 %v4334, 0.0
          %v4343 = vld [vmem:[#allocation4] sm:$0xff]
          %s4344 = scalar_lea.vmem [#allocation4], 8
          %v4345 = vld [vmem:[%s4344] sm:$0xff]
          %v4346 = vld [vmem:[%s57] sm:$0xff]
          %v4347 = vld [vmem:[%s59] sm:$0xff]
          %v4348 = vld [vmem:[%s59 + $0x8] sm:$0xff]
          %v4349 = vld [vmem:[%s61] sm:$0x1]
          %v4351 = vsel %vm1424, %v4343, 0
          %4353 = vmatprep.subr.mxu0 0.0
          %4354 = vmatpush1.msra.mxu0 %v4346
          %4355 = vmatprep.subr.mxu0 0.0
          %4356 = vmatpush1.msra.mxu0 0.0
          %4357 = vmatprep.subr.mxu0 0.0
          %4358 = vmatpush1.msra.mxu0 0.0
          %4359 = vmatprep.subr.mxu0 0.0
          %4360 = vmatpush1.msra.mxu0 0.0
          %4361 = vmatprep.subr.mxu0 0.0
          %4362 = vmatpush1.msra.mxu0 0.0
          %4363 = vmatprep.subr.mxu0 0.0
          %4364 = vmatpush1.msra.mxu0 0.0
          %4365 = vmatprep.subr.mxu0 0.0
          %4366 = vmatpush1.msra.mxu0 0.0
          %4367 = vmatprep.subr.mxu0 0.0
          %4368 = vmatpush1.msra.mxu0 0.0
          %4369 = vmatprep.subr.mxu0 0.0
          %4370 = vmatpush1.msra.mxu0 0.0
          %4371 = vmatprep.subr.mxu0 0.0
          %4372 = vmatpush1.msra.mxu0 0.0
          %4373 = vmatprep.subr.mxu0 0.0
          %4374 = vmatpush1.msra.mxu0 0.0
          %4375 = vmatprep.subr.mxu0 0.0
          %4376 = vmatpush1.msra.mxu0 0.0
          %4377 = vmatprep.subr.mxu0 0.0
          %4378 = vmatpush1.msra.mxu0 0.0
          %4379 = vmatprep.subr.mxu0 0.0
          %4380 = vmatpush1.msra.mxu0 0.0
          %4381 = vmatprep.subr.mxu0 0.0
          %4382 = vmatpush1.msra.mxu0 0.0
          %4383 = vmatprep.subr.mxu0 0.0
          %4384 = vmatpush1.msra.mxu0 0.0
          %4385 = vmatprep.subr.mxu0 0.0
          %4386 = vmatpush1.msra.mxu0 0.0
          %4387 = vmatprep.subr.mxu0 0.0
          %4388 = vmatpush1.msra.mxu0 0.0
          %4389 = vmatprep.subr.mxu0 0.0
          %4390 = vmatpush1.msra.mxu0 0.0
          %4391 = vmatprep.subr.mxu0 0.0
          %4392 = vmatpush1.msra.mxu0 0.0
          %4393 = vmatprep.subr.mxu0 0.0
          %4394 = vmatpush1.msra.mxu0 0.0
          %4395 = vmatprep.subr.mxu0 0.0
          %4396 = vmatpush1.msra.mxu0 0.0
          %4397 = vmatprep.subr.mxu0 0.0
          %4398 = vmatpush1.msra.mxu0 0.0
          %4399 = vmatprep.subr.mxu0 0.0
          %4400 = vmatpush1.msra.mxu0 0.0
          %4401 = vmatprep.subr.mxu0 0.0
          %4402 = vmatpush1.msra.mxu0 0.0
          %4403 = vmatprep.subr.mxu0 0.0
          %4404 = vmatpush1.msra.mxu0 0.0
          %4405 = vmatprep.subr.mxu0 0.0
          %4406 = vmatpush1.msra.mxu0 0.0
          %4407 = vmatprep.subr.mxu0 0.0
          %4408 = vmatpush1.msra.mxu0 0.0
          %4409 = vmatprep.subr.mxu0 0.0
          %4410 = vmatpush1.msra.mxu0 0.0
          %4411 = vmatprep.subr.mxu0 0.0
          %4412 = vmatpush1.msra.mxu0 0.0
          %4413 = vmatprep.subr.mxu0 0.0
          %4414 = vmatpush1.msra.mxu0 0.0
          %4415 = vmatprep.subr.mxu0 0.0
          %4416 = vmatpush1.msra.mxu0 0.0
          %4417 = vmatprep.mubr.f32.mxu0 0.0
          %4418 = vmatmul.mubr.f32.gmra.mrb[0].mxu0 %v4351
          %v4419 = vpop.f32.mrb[0].mxu0
          %v4420 = vadd.f32 0.0, %v4419
          %v4421 = vpop.f32.mrb[0].mxu0
          %4422 = vdwg.mxu0
          %4424 = vrot.lane.b32.xlu0 %v4420, 120
          %v4425 = vpop.permute.xlu0 %4424
          %4427 = vrot.lane.b32.xlu0 %v4420, 112
          %v4428 = vpop.permute.xlu0 %4427
          %4430 = vrot.lane.b32.xlu0 %v4420, 104
          %v4431 = vpop.permute.xlu0 %4430
          %v4433 = vcombine.low %v4420, %v4428
          %v4434 = vcombine.high %v4420, %v4428
          %v4436 = vunpack.c.l.s4 1983009808
          %v4437 = vunpack.c.0.s8 %v4436
          %v4438 = vlaneseq
          %v4439 = vshrl.u32 %v4438, 7
          %v4440 = vsub.s32 %v4437, %v4439
          %v4441 = vrot.slane %v4433, %v4440
          %v4443 = vunpack.c.l.s4 1983009808
          %v4444 = vunpack.c.0.s8 %v4443
          %v4445 = vlaneseq
          %v4446 = vshrl.u32 %v4445, 7
          %v4447 = vsub.s32 %v4444, %v4446
          %v4448 = vrot.slane %v4434, %v4447
          %v4449 = vcombine.low %v4425, %v4431
          %v4450 = vcombine.high %v4425, %v4431
          %v4452 = vunpack.c.l.s4 1983009808
          %v4453 = vunpack.c.0.s8 %v4452
          %v4454 = vlaneseq
          %v4455 = vshrl.u32 %v4454, 7
          %v4456 = vsub.s32 %v4453, %v4455
          %v4457 = vrot.slane %v4449, %v4456
          %v4459 = vunpack.c.l.s4 1983009808
          %v4460 = vunpack.c.0.s8 %v4459
          %v4461 = vlaneseq
          %v4462 = vshrl.u32 %v4461, 7
          %v4463 = vsub.s32 %v4460, %v4462
          %v4464 = vrot.slane %v4450, %v4463
          %v4465 = vcombine.low %v4441, %v4457
          %v4466 = vcombine.high %v4441, %v4457
          %v4468 = vunpack.c.l.s4 1934713408
          %v4469 = vunpack.c.0.s8 %v4468
          %v4470 = vlaneseq
          %v4471 = vshrl.u32 %v4470, 7
          %v4472 = vsub.s32 %v4469, %v4471
          %v4473 = vrot.slane %v4465, %v4472
          %v4475 = vunpack.c.l.s4 1934713408
          %v4476 = vunpack.c.0.s8 %v4475
          %v4477 = vlaneseq
          %v4478 = vshrl.u32 %v4477, 7
          %v4479 = vsub.s32 %v4476, %v4478
          %v4480 = vrot.slane %v4466, %v4479
          %v4481 = vcombine.low %v4448, %v4464
          %v4482 = vcombine.high %v4448, %v4464
          %v4484 = vunpack.c.l.s4 1934713408
          %v4485 = vunpack.c.0.s8 %v4484
          %v4486 = vlaneseq
          %v4487 = vshrl.u32 %v4486, 7
          %v4488 = vsub.s32 %v4485, %v4487
          %v4489 = vrot.slane %v4481, %v4488
          %v4491 = vunpack.c.l.s4 1934713408
          %v4492 = vunpack.c.0.s8 %v4491
          %v4493 = vlaneseq
          %v4494 = vshrl.u32 %v4493, 7
          %v4495 = vsub.s32 %v4492, %v4494
          %v4496 = vrot.slane %v4482, %v4495
          %v4497 = vcombine.high %v4473, 0.0
          %v4498 = vcombine.high %v4480, 0.0
          %v4499 = vcombine.high %v4489, 0.0
          %v4500 = vcombine.high %v4496, 0.0
          %v4502 = vcombine.high %v4345, %v4345
          %v4504 = vunpack.c.l.s4 1966171168
          %v4505 = vunpack.c.0.s8 %v4504
          %v4506 = vlaneseq
          %v4507 = vshrl.u32 %v4506, 7
          %v4508 = vsub.s32 %v4505, %v4507
          %v4509 = vrot.slane %v4345, %v4508
          %v4511 = vunpack.c.l.s4 1966171168
          %v4512 = vunpack.c.0.s8 %v4511
          %v4513 = vlaneseq
          %v4514 = vshrl.u32 %v4513, 7
          %v4515 = vsub.s32 %v4512, %v4514
          %v4516 = vrot.slane %v4502, %v4515
          %v4517 = vcombine.high %v4509, %v4509
          %v4518 = vcombine.high %v4516, %v4516
          %v4520 = vunpack.c.l.s4 1966171168
          %v4521 = vunpack.c.0.s8 %v4520
          %v4522 = vlaneseq
          %v4523 = vshrl.u32 %v4522, 7
          %v4524 = vsub.s32 %v4521, %v4523
          %v4525 = vrot.slane %v4509, %v4524
          %v4527 = vunpack.c.l.s4 1966171168
          %v4528 = vunpack.c.0.s8 %v4527
          %v4529 = vlaneseq
          %v4530 = vshrl.u32 %v4529, 7
          %v4531 = vsub.s32 %v4528, %v4530
          %v4532 = vrot.slane %v4516, %v4531
          %v4534 = vunpack.c.l.s4 1966171168
          %v4535 = vunpack.c.0.s8 %v4534
          %v4536 = vlaneseq
          %v4537 = vshrl.u32 %v4536, 7
          %v4538 = vsub.s32 %v4535, %v4537
          %v4539 = vrot.slane %v4517, %v4538
          %v4541 = vunpack.c.l.s4 1966171168
          %v4542 = vunpack.c.0.s8 %v4541
          %v4543 = vlaneseq
          %v4544 = vshrl.u32 %v4543, 7
          %v4545 = vsub.s32 %v4542, %v4544
          %v4546 = vrot.slane %v4518, %v4545
          %v4547 = vcombine.high %v4525, %v4525
          %v4548 = vcombine.high %v4532, %v4532
          %v4549 = vcombine.high %v4539, %v4539
          %v4550 = vcombine.high %v4546, %v4546
          %v4551 = vlaneseq
          %v4552 = vshrl.u32 %v4551, 7
          %v4553 = vsub.s32 0, %v4552
          %v4554 = vrot.slane %v4525, %v4553
          %v4555 = vlaneseq
          %v4556 = vshrl.u32 %v4555, 7
          %v4557 = vsub.s32 0, %v4556
          %v4558 = vrot.slane %v4539, %v4557
          %v4559 = vlaneseq
          %v4560 = vshrl.u32 %v4559, 7
          %v4561 = vsub.s32 0, %v4560
          %v4562 = vrot.slane %v4547, %v4561
          %v4563 = vlaneseq
          %v4564 = vshrl.u32 %v4563, 7
          %v4565 = vsub.s32 0, %v4564
          %v4566 = vrot.slane %v4549, %v4565
          %v4567 = vlaneseq
          %v4568 = vshrl.u32 %v4567, 7
          %v4569 = vsub.s32 0, %v4568
          %v4570 = vrot.slane %v4532, %v4569
          %v4571 = vlaneseq
          %v4572 = vshrl.u32 %v4571, 7
          %v4573 = vsub.s32 0, %v4572
          %v4574 = vrot.slane %v4546, %v4573
          %v4575 = vlaneseq
          %v4576 = vshrl.u32 %v4575, 7
          %v4577 = vsub.s32 0, %v4576
          %v4578 = vrot.slane %v4548, %v4577
          %v4579 = vlaneseq
          %v4580 = vshrl.u32 %v4579, 7
          %v4581 = vsub.s32 0, %v4580
          %v4582 = vrot.slane %v4550, %v4581
          %v4591 = vmul.f32 %v4473, %v4554
          %v4592 = vmul.f32 %v4497, %v4558
          %v4593 = vmul.f32 %v4480, %v4562
          %v4594 = vmul.f32 %v4498, %v4566
          %v4595 = vmul.f32 %v4489, %v4570
          %v4596 = vmul.f32 %v4499, %v4574
          %v4597 = vmul.f32 %v4496, %v4578
          %v4598 = vmul.f32 %v4500, %v4582
          %vm4599 = vcmask 60416
          %v4600 = vsel %vm4599, %v4591, 0.0
          %4601 = vadd.xlane.f32.xlu0 %v4600
          %v4602 = vpop.xlane.xlu0 %4601
          %v4603 = vsel %vm4599, %v4592, 0.0
          %4604 = vadd.xlane.f32.xlu0 %v4603
          %v4605 = vpop.xlane.xlu0 %4604
          %v4606 = vsel %vm4599, %v4593, 0.0
          %4607 = vadd.xlane.f32.xlu0 %v4606
          %v4608 = vpop.xlane.xlu0 %4607
          %v4609 = vsel %vm4599, %v4594, 0.0
          %4610 = vadd.xlane.f32.xlu0 %v4609
          %v4611 = vpop.xlane.xlu0 %4610
          %v4612 = vsel %vm4599, %v4595, 0.0
          %4613 = vadd.xlane.f32.xlu0 %v4612
          %v4614 = vpop.xlane.xlu0 %4613
          %v4615 = vsel %vm4599, %v4596, 0.0
          %4616 = vadd.xlane.f32.xlu0 %v4615
          %v4617 = vpop.xlane.xlu0 %4616
          %v4618 = vsel %vm4599, %v4597, 0.0
          %4619 = vadd.xlane.f32.xlu0 %v4618
          %v4620 = vpop.xlane.xlu0 %4619
          %v4621 = vsel %vm4599, %v4598, 0.0
          %4622 = vadd.xlane.f32.xlu0 %v4621
          %v4623 = vpop.xlane.xlu0 %4622
          %4624 = vrot.lane.b32.xlu0 %v4345, 8
          %v4625 = vpop.permute.xlu0 %4624
          %v4627 = vsel %vm1424, %v4343, %v4625
          %v4629 = vsel %vm1187, %v4627, 0
          %4631 = vmatprep.subr.mxu0 0.0
          %4632 = vmatpush1.msra.mxu0 %v4347
          %4633 = vmatprep.subr.mxu0 0.0
          %4634 = vmatpush1.msra.mxu0 %v4348
          %4635 = vmatprep.subr.mxu0 0.0
          %4636 = vmatpush1.msra.mxu0 0.0
          %4637 = vmatprep.subr.mxu0 0.0
          %4638 = vmatpush1.msra.mxu0 0.0
          %4639 = vmatprep.subr.mxu0 0.0
          %4640 = vmatpush1.msra.mxu0 0.0
          %4641 = vmatprep.subr.mxu0 0.0
          %4642 = vmatpush1.msra.mxu0 0.0
          %4643 = vmatprep.subr.mxu0 0.0
          %4644 = vmatpush1.msra.mxu0 0.0
          %4645 = vmatprep.subr.mxu0 0.0
          %4646 = vmatpush1.msra.mxu0 0.0
          %4647 = vmatprep.subr.mxu0 0.0
          %4648 = vmatpush1.msra.mxu0 0.0
          %4649 = vmatprep.subr.mxu0 0.0
          %4650 = vmatpush1.msra.mxu0 0.0
          %4651 = vmatprep.subr.mxu0 0.0
          %4652 = vmatpush1.msra.mxu0 0.0
          %4653 = vmatprep.subr.mxu0 0.0
          %4654 = vmatpush1.msra.mxu0 0.0
          %4655 = vmatprep.subr.mxu0 0.0
          %4656 = vmatpush1.msra.mxu0 0.0
          %4657 = vmatprep.subr.mxu0 0.0
          %4658 = vmatpush1.msra.mxu0 0.0
          %4659 = vmatprep.subr.mxu0 0.0
          %4660 = vmatpush1.msra.mxu0 0.0
          %4661 = vmatprep.subr.mxu0 0.0
          %4662 = vmatpush1.msra.mxu0 0.0
          %4663 = vmatprep.subr.mxu0 0.0
          %4664 = vmatpush1.msra.mxu0 0.0
          %4665 = vmatprep.subr.mxu0 0.0
          %4666 = vmatpush1.msra.mxu0 0.0
          %4667 = vmatprep.subr.mxu0 0.0
          %4668 = vmatpush1.msra.mxu0 0.0
          %4669 = vmatprep.subr.mxu0 0.0
          %4670 = vmatpush1.msra.mxu0 0.0
          %4671 = vmatprep.subr.mxu0 0.0
          %4672 = vmatpush1.msra.mxu0 0.0
          %4673 = vmatprep.subr.mxu0 0.0
          %4674 = vmatpush1.msra.mxu0 0.0
          %4675 = vmatprep.subr.mxu0 0.0
          %4676 = vmatpush1.msra.mxu0 0.0
          %4677 = vmatprep.subr.mxu0 0.0
          %4678 = vmatpush1.msra.mxu0 0.0
          %4679 = vmatprep.subr.mxu0 0.0
          %4680 = vmatpush1.msra.mxu0 0.0
          %4681 = vmatprep.subr.mxu0 0.0
          %4682 = vmatpush1.msra.mxu0 0.0
          %4683 = vmatprep.subr.mxu0 0.0
          %4684 = vmatpush1.msra.mxu0 0.0
          %4685 = vmatprep.subr.mxu0 0.0
          %4686 = vmatpush1.msra.mxu0 0.0
          %4687 = vmatprep.subr.mxu0 0.0
          %4688 = vmatpush1.msra.mxu0 0.0
          %4689 = vmatprep.subr.mxu0 0.0
          %4690 = vmatpush1.msra.mxu0 0.0
          %4691 = vmatprep.subr.mxu0 0.0
          %4692 = vmatpush1.msra.mxu0 0.0
          %4693 = vmatprep.subr.mxu0 0.0
          %4694 = vmatpush1.msra.mxu0 0.0
          %4695 = vmatprep.mubr.f32.mxu0 0.0
          %4696 = vmatmul.mubr.f32.gmra.mrb[0].mxu0 %v4629
          %v4697 = vpop.f32.mrb[0].mxu0
          %v4698 = vadd.f32 0.0, %v4697
          %v4699 = vpop.f32.mrb[0].mxu0
          %4700 = vdwg.mxu0
          %v4702 = vlaneseq
          %v4703 = vshrl.u32 %v4702, 7
          %v4704 = vsub.s32 0, %v4703
          %v4705 = vrot.slane %v4698, %v4704
          %4707 = vbcast.lane.b32.xlu0 %v4705, 256
          %v4708 = vpop.permute.xlu0 %4707
          %v4709 = vlaneseq
          %v4710 = vshrl.u32 %v4709, 7
          %v4711 = vsub.s32 1, %v4710
          %v4712 = vrot.slane %v4698, %v4711
          %4714 = vbcast.lane.b32.xlu0 %v4712, 256
          %v4715 = vpop.permute.xlu0 %4714
          %v4716 = vlaneseq
          %v4717 = vshrl.u32 %v4716, 7
          %v4718 = vsub.s32 2, %v4717
          %v4719 = vrot.slane %v4698, %v4718
          %4721 = vbcast.lane.b32.xlu0 %v4719, 256
          %v4722 = vpop.permute.xlu0 %4721
          %v4723 = vlaneseq
          %v4724 = vshrl.u32 %v4723, 7
          %v4725 = vsub.s32 3, %v4724
          %v4726 = vrot.slane %v4698, %v4725
          %4728 = vbcast.lane.b32.xlu0 %v4726, 256
          %v4729 = vpop.permute.xlu0 %4728
          %v4730 = vlaneseq
          %v4731 = vshrl.u32 %v4730, 7
          %v4732 = vsub.s32 4, %v4731
          %v4733 = vrot.slane %v4698, %v4732
          %4735 = vbcast.lane.b32.xlu0 %v4733, 256
          %v4736 = vpop.permute.xlu0 %4735
          %v4737 = vlaneseq
          %v4738 = vshrl.u32 %v4737, 7
          %v4739 = vsub.s32 5, %v4738
          %v4740 = vrot.slane %v4698, %v4739
          %4742 = vbcast.lane.b32.xlu0 %v4740, 256
          %v4743 = vpop.permute.xlu0 %4742
          %v4744 = vlaneseq
          %v4745 = vshrl.u32 %v4744, 7
          %v4746 = vsub.s32 6, %v4745
          %v4747 = vrot.slane %v4698, %v4746
          %4749 = vbcast.lane.b32.xlu0 %v4747, 256
          %v4750 = vpop.permute.xlu0 %4749
          %v4751 = vlaneseq
          %v4752 = vshrl.u32 %v4751, 7
          %v4753 = vsub.s32 7, %v4752
          %v4754 = vrot.slane %v4698, %v4753
          %4756 = vbcast.lane.b32.xlu0 %v4754, 256
          %v4757 = vpop.permute.xlu0 %4756
          %v4766 = vadd.f32 %v4602, %v4708
          %v4767 = vadd.f32 %v4605, %v4715
          %v4768 = vadd.f32 %v4608, %v4722
          %v4769 = vadd.f32 %v4611, %v4729
          %v4770 = vadd.f32 %v4614, %v4736
          %v4771 = vadd.f32 %v4617, %v4743
          %v4772 = vadd.f32 %v4620, %v4750
          %v4773 = vadd.f32 %v4623, %v4757
          %v4775 = vlaneseq
          %v4776 = vshrl.u32 %v4775, 7
          %v4777 = vsub.s32 0, %v4776
          %v4778 = vrot.slane %v4349, %v4777
          %4780 = vbcast.lane.b32.xlu0 %v4778, 256
          %v4781 = vpop.permute.xlu0 %4780
          %v4783 = vadd.f32 %v4766, %v4781
          %v4784 = vadd.f32 %v4767, %v4781
          %v4785 = vadd.f32 %v4768, %v4781
          %v4786 = vadd.f32 %v4769, %v4781
          %v4787 = vadd.f32 %v4770, %v4781
          %v4788 = vadd.f32 %v4771, %v4781
          %v4789 = vadd.f32 %v4772, %v4781
          %v4790 = vadd.f32 %v4773, %v4781
          %v4791 = vmax.f32 %v4783, 0.0
          %v4792 = vmax.f32 %v4784, 0.0
          %v4793 = vmax.f32 %v4785, 0.0
          %v4794 = vmax.f32 %v4786, 0.0
          %v4795 = vmax.f32 %v4787, 0.0
          %v4796 = vmax.f32 %v4788, 0.0
          %v4797 = vmax.f32 %v4789, 0.0
          %v4798 = vmax.f32 %v4790, 0.0
          %4807 = vset.pattern.permute.xlu0 0
          %4808 = vperm.xlu0 %4807, %v4791
          %v4809 = vpop.permute.xlu0 %4808
          %4810 = vset.pattern.permute.xlu0 0
          %4811 = vperm.xlu0 %4810, %v4792
          %v4812 = vpop.permute.xlu0 %4811
          %4813 = vset.pattern.permute.xlu0 0
          %4814 = vperm.xlu0 %4813, %v4793
          %v4815 = vpop.permute.xlu0 %4814
          %4816 = vset.pattern.permute.xlu0 0
          %4817 = vperm.xlu0 %4816, %v4794
          %v4818 = vpop.permute.xlu0 %4817
          %4819 = vset.pattern.permute.xlu0 0
          %4820 = vperm.xlu0 %4819, %v4795
          %v4821 = vpop.permute.xlu0 %4820
          %4822 = vset.pattern.permute.xlu0 0
          %4823 = vperm.xlu0 %4822, %v4796
          %v4824 = vpop.permute.xlu0 %4823
          %4825 = vset.pattern.permute.xlu0 0
          %4826 = vperm.xlu0 %4825, %v4797
          %v4827 = vpop.permute.xlu0 %4826
          %4828 = vset.pattern.permute.xlu0 0
          %4829 = vperm.xlu0 %4828, %v4798
          %v4830 = vpop.permute.xlu0 %4829
          %v4831 = vlaneseq
          %v4832 = vand.u32 %v4831, 127
          %v4833 = vlaneseq
          %v4834 = vshrl.u32 %v4833, 7
          %v4835 = vsub.s32 %v4832, %v4834
          %v4836 = vrot.slane %v4809, %v4835
          %v4837 = vlaneseq
          %v4838 = vshrl.u32 %v4837, 7
          %v4839 = vsub.s32 %v4832, %v4838
          %v4840 = vrot.slane %v4812, %v4839
          %v4841 = vlaneseq
          %v4842 = vshrl.u32 %v4841, 7
          %v4843 = vsub.s32 %v4832, %v4842
          %v4844 = vrot.slane %v4815, %v4843
          %v4845 = vlaneseq
          %v4846 = vshrl.u32 %v4845, 7
          %v4847 = vsub.s32 %v4832, %v4846
          %v4848 = vrot.slane %v4818, %v4847
          %v4849 = vlaneseq
          %v4850 = vshrl.u32 %v4849, 7
          %v4851 = vsub.s32 %v4832, %v4850
          %v4852 = vrot.slane %v4821, %v4851
          %v4853 = vlaneseq
          %v4854 = vshrl.u32 %v4853, 7
          %v4855 = vsub.s32 %v4832, %v4854
          %v4856 = vrot.slane %v4824, %v4855
          %v4857 = vlaneseq
          %v4858 = vshrl.u32 %v4857, 7
          %v4859 = vsub.s32 %v4832, %v4858
          %v4860 = vrot.slane %v4827, %v4859
          %v4861 = vlaneseq
          %v4862 = vshrl.u32 %v4861, 7
          %v4863 = vsub.s32 %v4832, %v4862
          %v4864 = vrot.slane %v4830, %v4863
          %vm4865 = vcmask 1041409
          %v4866 = vsel %vm4865, %v4840, %v4836
          %vm4867 = vcmask 1042434
          %v4868 = vsel %vm4867, %v4844, %v4866
          %vm4869 = vcmask 1043459
          %v4870 = vsel %vm4869, %v4848, %v4868
          %vm4871 = vcmask 1044484
          %v4872 = vsel %vm4871, %v4852, %v4870
          %vm4873 = vcmask 1045509
          %v4874 = vsel %vm4873, %v4856, %v4872
          %vm4875 = vcmask 1046534
          %v4876 = vsel %vm4875, %v4860, %v4874
          %vm4877 = vcmask 1047559
          %v4878 = vsel %vm4877, %v4864, %v4876
          %4888 = vset.pattern.permute.xlu0 0
          %4889 = vperm.xlu0 %4888, %v4335
          %v4890 = vpop.permute.xlu0 %4889
          %4891 = vset.pattern.permute.xlu0 0
          %4892 = vperm.xlu0 %4891, %v4336
          %v4893 = vpop.permute.xlu0 %4892
          %4894 = vset.pattern.permute.xlu0 0
          %4895 = vperm.xlu0 %4894, %v4337
          %v4896 = vpop.permute.xlu0 %4895
          %4897 = vset.pattern.permute.xlu0 0
          %4898 = vperm.xlu0 %4897, %v4338
          %v4899 = vpop.permute.xlu0 %4898
          %4900 = vset.pattern.permute.xlu0 0
          %4901 = vperm.xlu0 %4900, %v4339
          %v4902 = vpop.permute.xlu0 %4901
          %4903 = vset.pattern.permute.xlu0 0
          %4904 = vperm.xlu0 %4903, %v4340
          %v4905 = vpop.permute.xlu0 %4904
          %4906 = vset.pattern.permute.xlu0 0
          %4907 = vperm.xlu0 %4906, %v4341
          %v4908 = vpop.permute.xlu0 %4907
          %4909 = vset.pattern.permute.xlu0 0
          %4910 = vperm.xlu0 %4909, %v4342
          %v4911 = vpop.permute.xlu0 %4910
          %v4912 = vadd.s32 %v4832, 4294967292
          %v4913 = vlaneseq
          %v4914 = vshrl.u32 %v4913, 7
          %v4915 = vsub.s32 %v4912, %v4914
          %v4916 = vrot.slane %v4890, %v4915
          %v4917 = vlaneseq
          %v4918 = vshrl.u32 %v4917, 7
          %v4919 = vsub.s32 %v4912, %v4918
          %v4920 = vrot.slane %v4893, %v4919
          %v4921 = vlaneseq
          %v4922 = vshrl.u32 %v4921, 7
          %v4923 = vsub.s32 %v4912, %v4922
          %v4924 = vrot.slane %v4896, %v4923
          %v4925 = vlaneseq
          %v4926 = vshrl.u32 %v4925, 7
          %v4927 = vsub.s32 %v4912, %v4926
          %v4928 = vrot.slane %v4899, %v4927
          %v4929 = vlaneseq
          %v4930 = vshrl.u32 %v4929, 7
          %v4931 = vsub.s32 %v4912, %v4930
          %v4932 = vrot.slane %v4902, %v4931
          %v4933 = vlaneseq
          %v4934 = vshrl.u32 %v4933, 7
          %v4935 = vsub.s32 %v4912, %v4934
          %v4936 = vrot.slane %v4905, %v4935
          %v4937 = vlaneseq
          %v4938 = vshrl.u32 %v4937, 7
          %v4939 = vsub.s32 %v4912, %v4938
          %v4940 = vrot.slane %v4908, %v4939
          %v4941 = vlaneseq
          %v4942 = vshrl.u32 %v4941, 7
          %v4943 = vsub.s32 %v4912, %v4942
          %v4944 = vrot.slane %v4911, %v4943
          %v4945 = vsel %vm4865, %v4920, %v4916
          %v4946 = vsel %vm4867, %v4924, %v4945
          %v4947 = vsel %vm4869, %v4928, %v4946
          %v4948 = vsel %vm4871, %v4932, %v4947
          %v4949 = vsel %vm4873, %v4936, %v4948
          %v4950 = vsel %vm4875, %v4940, %v4949
          %v4951 = vsel %vm4877, %v4944, %v4950
          %4969 = vset.pattern.permute.xlu0 0
          %4970 = vperm.xlu0 %4969, %v3789
          %v4971 = vpop.permute.xlu0 %4970
          %4972 = vset.pattern.permute.xlu0 0
          %4973 = vperm.xlu0 %4972, %v3790
          %v4974 = vpop.permute.xlu0 %4973
          %4975 = vset.pattern.permute.xlu0 0
          %4976 = vperm.xlu0 %4975, %v3791
          %v4977 = vpop.permute.xlu0 %4976
          %4978 = vset.pattern.permute.xlu0 0
          %4979 = vperm.xlu0 %4978, %v3792
          %v4980 = vpop.permute.xlu0 %4979
          %4981 = vset.pattern.permute.xlu0 0
          %4982 = vperm.xlu0 %4981, %v3793
          %v4983 = vpop.permute.xlu0 %4982
          %4984 = vset.pattern.permute.xlu0 0
          %4985 = vperm.xlu0 %4984, %v3794
          %v4986 = vpop.permute.xlu0 %4985
          %4987 = vset.pattern.permute.xlu0 0
          %4988 = vperm.xlu0 %4987, %v3795
          %v4989 = vpop.permute.xlu0 %4988
          %4990 = vset.pattern.permute.xlu0 0
          %4991 = vperm.xlu0 %4990, %v3796
          %v4992 = vpop.permute.xlu0 %4991
          %4993 = vset.pattern.permute.xlu0 0
          %4994 = vperm.xlu0 %4993, %v3797
          %v4995 = vpop.permute.xlu0 %4994
          %4996 = vset.pattern.permute.xlu0 0
          %4997 = vperm.xlu0 %4996, %v3798
          %v4998 = vpop.permute.xlu0 %4997
          %4999 = vset.pattern.permute.xlu0 0
          %5000 = vperm.xlu0 %4999, %v3799
          %v5001 = vpop.permute.xlu0 %5000
          %5002 = vset.pattern.permute.xlu0 0
          %5003 = vperm.xlu0 %5002, %v3800
          %v5004 = vpop.permute.xlu0 %5003
          %5005 = vset.pattern.permute.xlu0 0
          %5006 = vperm.xlu0 %5005, %v3801
          %v5007 = vpop.permute.xlu0 %5006
          %5008 = vset.pattern.permute.xlu0 0
          %5009 = vperm.xlu0 %5008, %v3802
          %v5010 = vpop.permute.xlu0 %5009
          %5011 = vset.pattern.permute.xlu0 0
          %5012 = vperm.xlu0 %5011, %v3803
          %v5013 = vpop.permute.xlu0 %5012
          %5014 = vset.pattern.permute.xlu0 0
          %5015 = vperm.xlu0 %5014, %v3804
          %v5016 = vpop.permute.xlu0 %5015
          %v5017 = vadd.s32 %v4832, 4294967284
          %v5018 = vlaneseq
          %v5019 = vshrl.u32 %v5018, 7
          %v5020 = vsub.s32 %v5017, %v5019
          %v5021 = vrot.slane %v4971, %v5020
          %v5022 = vadd.s32 %v4832, 4294967276
          %v5023 = vlaneseq
          %v5024 = vshrl.u32 %v5023, 7
          %v5025 = vsub.s32 %v5022, %v5024
          %v5026 = vrot.slane %v4974, %v5025
          %vm5027 = vcmask 228512
          %v5028 = vsel %vm5027, %v5026, %v5021
          %v5029 = vlaneseq
          %v5030 = vshrl.u32 %v5029, 7
          %v5031 = vsub.s32 %v5017, %v5030
          %v5032 = vrot.slane %v4977, %v5031
          %v5033 = vlaneseq
          %v5034 = vshrl.u32 %v5033, 7
          %v5035 = vsub.s32 %v5022, %v5034
          %v5036 = vrot.slane %v4980, %v5035
          %v5037 = vsel %vm5027, %v5036, %v5032
          %v5038 = vlaneseq
          %v5039 = vshrl.u32 %v5038, 7
          %v5040 = vsub.s32 %v5017, %v5039
          %v5041 = vrot.slane %v4983, %v5040
          %v5042 = vlaneseq
          %v5043 = vshrl.u32 %v5042, 7
          %v5044 = vsub.s32 %v5022, %v5043
          %v5045 = vrot.slane %v4986, %v5044
          %v5046 = vsel %vm5027, %v5045, %v5041
          %v5047 = vlaneseq
          %v5048 = vshrl.u32 %v5047, 7
          %v5049 = vsub.s32 %v5017, %v5048
          %v5050 = vrot.slane %v4989, %v5049
          %v5051 = vlaneseq
          %v5052 = vshrl.u32 %v5051, 7
          %v5053 = vsub.s32 %v5022, %v5052
          %v5054 = vrot.slane %v4992, %v5053
          %v5055 = vsel %vm5027, %v5054, %v5050
          %v5056 = vlaneseq
          %v5057 = vshrl.u32 %v5056, 7
          %v5058 = vsub.s32 %v5017, %v5057
          %v5059 = vrot.slane %v4995, %v5058
          %v5060 = vlaneseq
          %v5061 = vshrl.u32 %v5060, 7
          %v5062 = vsub.s32 %v5022, %v5061
          %v5063 = vrot.slane %v4998, %v5062
          %v5064 = vsel %vm5027, %v5063, %v5059
          %v5065 = vlaneseq
          %v5066 = vshrl.u32 %v5065, 7
          %v5067 = vsub.s32 %v5017, %v5066
          %v5068 = vrot.slane %v5001, %v5067
          %v5069 = vlaneseq
          %v5070 = vshrl.u32 %v5069, 7
          %v5071 = vsub.s32 %v5022, %v5070
          %v5072 = vrot.slane %v5004, %v5071
          %v5073 = vsel %vm5027, %v5072, %v5068
          %v5074 = vlaneseq
          %v5075 = vshrl.u32 %v5074, 7
          %v5076 = vsub.s32 %v5017, %v5075
          %v5077 = vrot.slane %v5007, %v5076
          %v5078 = vlaneseq
          %v5079 = vshrl.u32 %v5078, 7
          %v5080 = vsub.s32 %v5022, %v5079
          %v5081 = vrot.slane %v5010, %v5080
          %v5082 = vsel %vm5027, %v5081, %v5077
          %v5083 = vlaneseq
          %v5084 = vshrl.u32 %v5083, 7
          %v5085 = vsub.s32 %v5017, %v5084
          %v5086 = vrot.slane %v5013, %v5085
          %v5087 = vlaneseq
          %v5088 = vshrl.u32 %v5087, 7
          %v5089 = vsub.s32 %v5022, %v5088
          %v5090 = vrot.slane %v5016, %v5089
          %v5091 = vsel %vm5027, %v5090, %v5086
          %v5092 = vsel %vm4865, %v5037, %v5028
          %v5093 = vsel %vm4867, %v5046, %v5092
          %v5094 = vsel %vm4869, %v5055, %v5093
          %v5095 = vsel %vm4871, %v5064, %v5094
          %v5096 = vsel %vm4873, %v5073, %v5095
          %v5097 = vsel %vm4875, %v5082, %v5096
          %v5098 = vsel %vm4877, %v5091, %v5097
          %v5100 = vsel %vm2028, %v4878, %v4951
          %vm5101 = vcmask 97280
          %v5102 = vsel %vm5101, %v5100, %v5098
          %v5103 = vld [vmem:[%s63] sm:$0xff]
          %v5104 = vld [vmem:[%s63 + $0x8] sm:$0xff]
          %v5105 = vld [vmem:[%s63 + $0x10] sm:$0xff]
          %v5106 = vld [vmem:[%s63 + $0x18] sm:$0xf]
          %v5107 = vld [vmem:[%s65] sm:$0x1]
          %v5109 = vlaneseq
          %v5110 = vshrl.u32 %v5109, 7
          %v5111 = vsub.s32 0, %v5110
          %v5112 = vrot.slane %v5107, %v5111
          %vm5114 = vcmask 228352
          %v5116 = vsel %vm5114, %v5102, 0
          %v5119 = vsel %vm2035, %v5106, 0
          %5121 = vmatprep.subr.mxu0 0.0
          %5122 = vmatpush1.msra.mxu0 %v5103
          %5123 = vmatprep.subr.mxu0 0.0
          %5124 = vmatpush1.msra.mxu0 %v5104
          %5125 = vmatprep.subr.mxu0 0.0
          %5126 = vmatpush1.msra.mxu0 %v5105
          %5127 = vmatprep.subr.mxu0 0.0
          %5128 = vmatpush1.msra.mxu0 %v5119
          %5129 = vmatprep.subr.mxu0 0.0
          %5130 = vmatpush1.msra.mxu0 0.0
          %5131 = vmatprep.subr.mxu0 0.0
          %5132 = vmatpush1.msra.mxu0 0.0
          %5133 = vmatprep.subr.mxu0 0.0
          %5134 = vmatpush1.msra.mxu0 0.0
          %5135 = vmatprep.subr.mxu0 0.0
          %5136 = vmatpush1.msra.mxu0 0.0
          %5137 = vmatprep.subr.mxu0 0.0
          %5138 = vmatpush1.msra.mxu0 0.0
          %5139 = vmatprep.subr.mxu0 0.0
          %5140 = vmatpush1.msra.mxu0 0.0
          %5141 = vmatprep.subr.mxu0 0.0
          %5142 = vmatpush1.msra.mxu0 0.0
          %5143 = vmatprep.subr.mxu0 0.0
          %5144 = vmatpush1.msra.mxu0 0.0
          %5145 = vmatprep.subr.mxu0 0.0
          %5146 = vmatpush1.msra.mxu0 0.0
          %5147 = vmatprep.subr.mxu0 0.0
          %5148 = vmatpush1.msra.mxu0 0.0
          %5149 = vmatprep.subr.mxu0 0.0
          %5150 = vmatpush1.msra.mxu0 0.0
          %5151 = vmatprep.subr.mxu0 0.0
          %5152 = vmatpush1.msra.mxu0 0.0
          %5153 = vmatprep.subr.mxu0 0.0
          %5154 = vmatpush1.msra.mxu0 0.0
          %5155 = vmatprep.subr.mxu0 0.0
          %5156 = vmatpush1.msra.mxu0 0.0
          %5157 = vmatprep.subr.mxu0 0.0
          %5158 = vmatpush1.msra.mxu0 0.0
          %5159 = vmatprep.subr.mxu0 0.0
          %5160 = vmatpush1.msra.mxu0 0.0
          %5161 = vmatprep.subr.mxu0 0.0
          %5162 = vmatpush1.msra.mxu0 0.0
          %5163 = vmatprep.subr.mxu0 0.0
          %5164 = vmatpush1.msra.mxu0 0.0
          %5165 = vmatprep.subr.mxu0 0.0
          %5166 = vmatpush1.msra.mxu0 0.0
          %5167 = vmatprep.subr.mxu0 0.0
          %5168 = vmatpush1.msra.mxu0 0.0
          %5169 = vmatprep.subr.mxu0 0.0
          %5170 = vmatpush1.msra.mxu0 0.0
          %5171 = vmatprep.subr.mxu0 0.0
          %5172 = vmatpush1.msra.mxu0 0.0
          %5173 = vmatprep.subr.mxu0 0.0
          %5174 = vmatpush1.msra.mxu0 0.0
          %5175 = vmatprep.subr.mxu0 0.0
          %5176 = vmatpush1.msra.mxu0 0.0
          %5177 = vmatprep.subr.mxu0 0.0
          %5178 = vmatpush1.msra.mxu0 0.0
          %5179 = vmatprep.subr.mxu0 0.0
          %5180 = vmatpush1.msra.mxu0 0.0
          %5181 = vmatprep.subr.mxu0 0.0
          %5182 = vmatpush1.msra.mxu0 0.0
          %5183 = vmatprep.subr.mxu0 0.0
          %5184 = vmatpush1.msra.mxu0 0.0
          %5185 = vmatprep.mubr.f32.mxu0 0.0
          %5186 = vmatmul.mubr.f32.gmra.mrb[0].mxu0 %v5116
          %v5187 = vpop.f32.mrb[0].mxu0
          %v5188 = vadd.f32 %v5112, %v5187
          %v5189 = vpop.f32.mrb[0].mxu0
          %5190 = vdwg.mxu0
          %v5191 = vmax.f32 %v5188, 0.0
          %v5192 = vld [vmem:[%s67] sm:$0x7f]
          %v5193 = vld [vmem:[%s69] sm:$0x1]
          %v5195 = vlaneseq
          %v5196 = vshrl.u32 %v5195, 7
          %v5197 = vsub.s32 0, %v5196
          %v5198 = vrot.slane %v5193, %v5197
          %vm5200 = vcmask 56320
          %v5202 = vsel %vm5200, %v5191, 0
          %vm5204 = vcmask 1046528
          %v5206 = vsel %vm5204, %v5192, 0
          %5208 = vmatprep.subr.mxu0 0.0
          %5209 = vmatpush1.msra.mxu0 %v5206
          %5210 = vmatprep.subr.mxu0 0.0
          %5211 = vmatpush1.msra.mxu0 0.0
          %5212 = vmatprep.subr.mxu0 0.0
          %5213 = vmatpush1.msra.mxu0 0.0
          %5214 = vmatprep.subr.mxu0 0.0
          %5215 = vmatpush1.msra.mxu0 0.0
          %5216 = vmatprep.subr.mxu0 0.0
          %5217 = vmatpush1.msra.mxu0 0.0
          %5218 = vmatprep.subr.mxu0 0.0
          %5219 = vmatpush1.msra.mxu0 0.0
          %5220 = vmatprep.subr.mxu0 0.0
          %5221 = vmatpush1.msra.mxu0 0.0
          %5222 = vmatprep.subr.mxu0 0.0
          %5223 = vmatpush1.msra.mxu0 0.0
          %5224 = vmatprep.subr.mxu0 0.0
          %5225 = vmatpush1.msra.mxu0 0.0
          %5226 = vmatprep.subr.mxu0 0.0
          %5227 = vmatpush1.msra.mxu0 0.0
          %5228 = vmatprep.subr.mxu0 0.0
          %5229 = vmatpush1.msra.mxu0 0.0
          %5230 = vmatprep.subr.mxu0 0.0
          %5231 = vmatpush1.msra.mxu0 0.0
          %5232 = vmatprep.subr.mxu0 0.0
          %5233 = vmatpush1.msra.mxu0 0.0
          %5234 = vmatprep.subr.mxu0 0.0
          %5235 = vmatpush1.msra.mxu0 0.0
          %5236 = vmatprep.subr.mxu0 0.0
          %5237 = vmatpush1.msra.mxu0 0.0
          %5238 = vmatprep.subr.mxu0 0.0
          %5239 = vmatpush1.msra.mxu0 0.0
          %5240 = vmatprep.subr.mxu0 0.0
          %5241 = vmatpush1.msra.mxu0 0.0
          %5242 = vmatprep.subr.mxu0 0.0
          %5243 = vmatpush1.msra.mxu0 0.0
          %5244 = vmatprep.subr.mxu0 0.0
          %5245 = vmatpush1.msra.mxu0 0.0
          %5246 = vmatprep.subr.mxu0 0.0
          %5247 = vmatpush1.msra.mxu0 0.0
          %5248 = vmatprep.subr.mxu0 0.0
          %5249 = vmatpush1.msra.mxu0 0.0
          %5250 = vmatprep.subr.mxu0 0.0
          %5251 = vmatpush1.msra.mxu0 0.0
          %5252 = vmatprep.subr.mxu0 0.0
          %5253 = vmatpush1.msra.mxu0 0.0
          %5254 = vmatprep.subr.mxu0 0.0
          %5255 = vmatpush1.msra.mxu0 0.0
          %5256 = vmatprep.subr.mxu0 0.0
          %5257 = vmatpush1.msra.mxu0 0.0
          %5258 = vmatprep.subr.mxu0 0.0
          %5259 = vmatpush1.msra.mxu0 0.0
          %5260 = vmatprep.subr.mxu0 0.0
          %5261 = vmatpush1.msra.mxu0 0.0
          %5262 = vmatprep.subr.mxu0 0.0
          %5263 = vmatpush1.msra.mxu0 0.0
          %5264 = vmatprep.subr.mxu0 0.0
          %5265 = vmatpush1.msra.mxu0 0.0
          %5266 = vmatprep.subr.mxu0 0.0
          %5267 = vmatpush1.msra.mxu0 0.0
          %5268 = vmatprep.subr.mxu0 0.0
          %5269 = vmatpush1.msra.mxu0 0.0
          %5270 = vmatprep.subr.mxu0 0.0
          %5271 = vmatpush1.msra.mxu0 0.0
          %5272 = vmatprep.mubr.f32.mxu0 0.0
          %5273 = vmatmul.mubr.f32.gmra.mrb[0].mxu0 %v5202
          %v5274 = vpop.f32.mrb[0].mxu0
          %v5275 = vadd.f32 %v5198, %v5274
          %v5276 = vpop.f32.mrb[0].mxu0
          %5277 = vdwg.mxu0
          %v5278 = vxor.u32 %v5275, 2147483648
          %v5279 = vmul.f32 %v5278, 1.442695
          %v5280 = vpow.pop %v5279
          %v5281 = vadd.f32 %v5280, 1.0
          %v5282 = vrcp.pop %v5281
          %v5283 = vmul.f32 1.0, %v5282
          %v5284 = vmul.f32 %v5283, %v5102
          %v5285 = vadd.f32 %v5284, %v5102
          %v5286 = vld [vmem:[%s71] sm:$0xff]
          %v5287 = vld [vmem:[%s71 + $0x8] sm:$0xff]
          %v5288 = vld [vmem:[%s71 + $0x10] sm:$0xff]
          %v5289 = vld [vmem:[%s71 + $0x18] sm:$0xf]
          %v5290 = vld [vmem:[%s73] sm:$0x1]
          %v5292 = vlaneseq
          %v5293 = vshrl.u32 %v5292, 7
          %v5294 = vsub.s32 0, %v5293
          %v5295 = vrot.slane %v5290, %v5294
          %v5298 = vsel %vm5114, %v5285, 0
          %v5301 = vsel %vm2035, %v5289, 0
          %5303 = vmatprep.subr.mxu0 0.0
          %5304 = vmatpush1.msra.mxu0 %v5286
          %5305 = vmatprep.subr.mxu0 0.0
          %5306 = vmatpush1.msra.mxu0 %v5287
          %5307 = vmatprep.subr.mxu0 0.0
          %5308 = vmatpush1.msra.mxu0 %v5288
          %5309 = vmatprep.subr.mxu0 0.0
          %5310 = vmatpush1.msra.mxu0 %v5301
          %5311 = vmatprep.subr.mxu0 0.0
          %5312 = vmatpush1.msra.mxu0 0.0
          %5313 = vmatprep.subr.mxu0 0.0
          %5314 = vmatpush1.msra.mxu0 0.0
          %5315 = vmatprep.subr.mxu0 0.0
          %5316 = vmatpush1.msra.mxu0 0.0
          %5317 = vmatprep.subr.mxu0 0.0
          %5318 = vmatpush1.msra.mxu0 0.0
          %5319 = vmatprep.subr.mxu0 0.0
          %5320 = vmatpush1.msra.mxu0 0.0
          %5321 = vmatprep.subr.mxu0 0.0
          %5322 = vmatpush1.msra.mxu0 0.0
          %5323 = vmatprep.subr.mxu0 0.0
          %5324 = vmatpush1.msra.mxu0 0.0
          %5325 = vmatprep.subr.mxu0 0.0
          %5326 = vmatpush1.msra.mxu0 0.0
          %5327 = vmatprep.subr.mxu0 0.0
          %5328 = vmatpush1.msra.mxu0 0.0
          %5329 = vmatprep.subr.mxu0 0.0
          %5330 = vmatpush1.msra.mxu0 0.0
          %5331 = vmatprep.subr.mxu0 0.0
          %5332 = vmatpush1.msra.mxu0 0.0
          %5333 = vmatprep.subr.mxu0 0.0
          %5334 = vmatpush1.msra.mxu0 0.0
          %5335 = vmatprep.subr.mxu0 0.0
          %5336 = vmatpush1.msra.mxu0 0.0
          %5337 = vmatprep.subr.mxu0 0.0
          %5338 = vmatpush1.msra.mxu0 0.0
          %5339 = vmatprep.subr.mxu0 0.0
          %5340 = vmatpush1.msra.mxu0 0.0
          %5341 = vmatprep.subr.mxu0 0.0
          %5342 = vmatpush1.msra.mxu0 0.0
          %5343 = vmatprep.subr.mxu0 0.0
          %5344 = vmatpush1.msra.mxu0 0.0
          %5345 = vmatprep.subr.mxu0 0.0
          %5346 = vmatpush1.msra.mxu0 0.0
          %5347 = vmatprep.subr.mxu0 0.0
          %5348 = vmatpush1.msra.mxu0 0.0
          %5349 = vmatprep.subr.mxu0 0.0
          %5350 = vmatpush1.msra.mxu0 0.0
          %5351 = vmatprep.subr.mxu0 0.0
          %5352 = vmatpush1.msra.mxu0 0.0
          %5353 = vmatprep.subr.mxu0 0.0
          %5354 = vmatpush1.msra.mxu0 0.0
          %5355 = vmatprep.subr.mxu0 0.0
          %5356 = vmatpush1.msra.mxu0 0.0
          %5357 = vmatprep.subr.mxu0 0.0
          %5358 = vmatpush1.msra.mxu0 0.0
          %5359 = vmatprep.subr.mxu0 0.0
          %5360 = vmatpush1.msra.mxu0 0.0
          %5361 = vmatprep.subr.mxu0 0.0
          %5362 = vmatpush1.msra.mxu0 0.0
          %5363 = vmatprep.subr.mxu0 0.0
          %5364 = vmatpush1.msra.mxu0 0.0
          %5365 = vmatprep.subr.mxu0 0.0
          %5366 = vmatpush1.msra.mxu0 0.0
          %5367 = vmatprep.mubr.f32.mxu0 0.0
          %5368 = vmatmul.mubr.f32.gmra.mrb[0].mxu0 %v5298
          %v5369 = vpop.f32.mrb[0].mxu0
          %v5370 = vadd.f32 %v5295, %v5369
          %v5371 = vpop.f32.mrb[0].mxu0
          %5372 = vdwg.mxu0
          %v5373 = vmax.f32 %v5370, 0.0
          %5374 = vst.msk [vmem:[#allocation5] sm:$0xff] %vm1187, %v5373
        $region172: #{tpu_custom_call.1} parent=167 // pred_fallthru
          _
        // Predicated region
        $region173: #{tpu_custom_call.1} parent=167 // pred_check
          %p5375 = pneg %p897
        $region174: #{tpu_custom_call.1} parent=167 // pred_check_branch
          %5377 = sbr.rel (%p5375) target = $region176
        $region175: #{tpu_custom_call.1} parent=167 // pred_region
          %s5379 = ssub.s32 128, 128
          %5380 = vsyncadd [#allocation6], %s5379
          %s5382 = sshll.u32 [#allocation5], 4
          %s5383 = int_to_ptr.vmem [resolvable:$true] %s5382
          %5385 = dma.vmem_to_hbm [thread:$0]  %s5383, 128, %s75, [#allocation6]
        $region176: #{tpu_custom_call.1} parent=167 // pred_fallthru
          _
        // Predicated region
        $region177: #{tpu_custom_call.1} parent=167 // pred_check
          %p5386 = pneg %p897
        $region178: #{tpu_custom_call.1} parent=167 // pred_check_branch
          %5388 = sbr.rel (%p5386) target = $region180
        $region179: #{tpu_custom_call.1} parent=167 // pred_region
          %5389 = dma.done [#allocation6], 128
        $region180: #{tpu_custom_call.1} parent=167 // pred_fallthru
          _
      $region168: #{tpu_custom_call.1} parent=5 // pred_fallthru
        _
      %p5390 = scmp.le.s32.totalorder 2, %s82
      // Predicated region
      $region181: #{tpu_custom_call.1} parent=5 // pred_check
        %p5391 = pneg %p5390
      $region182: #{tpu_custom_call.1} parent=5 // pred_check_branch
        %5393 = sbr.rel (%p5391) target = $region184
      $region183: #{tpu_custom_call.1} parent=5 // pred_region
        %s5394 = ssub.s32 %s82, 2
      $region184: #{tpu_custom_call.1} parent=5 // pred_fallthru
        _
    $region6: #{tpu_custom_call.1} parent=1 // loop_footer
      %s86 = sadd.s32 1, %s82
    $region7: #{tpu_custom_call.1} parent=1 // loop_footer_branch
      %81 = sbr.rel target = $region3
    $region8: #{tpu_custom_call.1} parent=1 // loop_exit
      _
    %5395 = vsyncpa [#allocation6], 1
    %s5396 = scalar_lea.sflag [#allocation6], 1
    %5397 = vsyncpa %s5396, 1

</llo_original>
